<compile_context>
chip_gen: v7x
topology: tpu7x:2x2x1
jax: 0.10.0
libtpu: 0.0.40
codegen_flags: <defaults>
</compile_context>

<pallas_src>
import math

import jax
import jax.numpy as jnp
from jax import lax
from jax.experimental import pallas as pl
from jax.experimental.pallas import tpu as pltpu

# ---------------- config (small, consistent with the module) ----------------
VOCAB = 30
VOCAB_PAD = (2 + VOCAB // 8) * 8          # 40, as in BERTLSTM.__init__
N_EMB = 16                                # n_embedding
N_HID = 32                                # n_hidden (divisible by n_head)
N_LAYER = 2
N_HEAD = 4
HEAD_DIM = N_HID // N_HEAD                # 8
FFN = 4 * N_HID                           # dim_feedforward
BATCH = 2
SEQ = 8
LN_EPS = 1e-5

_HID = N_HID // 2                         # per-direction LSTM hidden (16)
_ROWS = BATCH * SEQ                       # token rows, ordered (t, b) in-kernel
_SEL = 3 * BATCH                          # number of masked positions
_SEL_PAD = 8                              # padded rows for the prediction head
assert _SEL <= _SEL_PAD

_VMEM_SPEC = pl.BlockSpec(memory_space=pltpu.MemorySpace.VMEM)


# --------------------- static row layout of the two param slabs ---------------------
def _build_layouts():
    la, lb = {}, {}
    ra = 0

    def add_a(name, rows):
        nonlocal ra
        la[name] = (ra, rows, 128)
        ra += rows

    add_a("lstm_w", 2 * N_EMB)            # block-diag fwd/bwd input proj, gate-interleaved
    add_a("whh", 2 * _HID)                # block-diag fwd/bwd recurrent weights
    add_a("lstm_b", 1)                    # b_ih + b_hh (both directions) folded
    for l in range(N_LAYER):
        add_a(f"w1_{l}", N_HID)           # FFN up-proj (H, FFN)
        add_a(f"b1_{l}", 1)

    rb = 0

    def add_b(name, rows, cols=N_HID):
        nonlocal rb
        lb[name] = (rb, rows, cols)
        rb += rows

    for l in range(N_LAYER):
        add_b(f"mq_{l}", N_HEAD * N_HID)      # per-head scale*Wq@Wk^T, heads stacked on rows
        add_b(f"wvo_{l}", N_HEAD * N_HID)     # per-head Wv@Wo, heads stacked on rows
        add_b(f"w2_{l}", FFN)                 # FFN down-proj (FFN, H)
        add_b(f"ln2w_{l}", 1)
        add_b(f"ln2b_{l}", 1)
        add_b(f"ln1w_{l}", 1)
        add_b(f"ln1b_{l}", 1)
        add_b(f"b2_{l}", 1)
    add_b("oln_w", 1)
    add_b("oln_b", 1)
    add_b("pw1", N_HID, N_HID // 2)
    add_b("pb1", 1, N_HID // 2)
    add_b("pw2", N_HID // 2, 1)
    add_b("attn_bias", _ROWS, _ROWS)          # same-batch block mask (rows ordered (t, b))
    add_b("timerev", _ROWS, _ROWS)            # time-block reversal permutation
    add_b("grp", BATCH, _SEL_PAD)             # per-batch group matrix for the CE logsumexp
    return la, -(-ra // 8) * 8, lb, -(-rb // 8) * 8


_LAYOUT_A, _ROWS_A, _LAYOUT_B, _ROWS_B = _build_layouts()


# ------------------------------ fused kernel --------------------------------
def _bert_fused_kernel(x_ref, d_ref, pa_ref, pb_ref, o_ref):
    f32 = jnp.float32
    B, T, H, hid = BATCH, SEQ, N_HID, _HID

    def pa(name):
        r, n, c = _LAYOUT_A[name]
        return pa_ref[r:r + n, 0:c]

    def pb(name):
        r, n, c = _LAYOUT_B[name]
        return pb_ref[r:r + n, 0:c]

    def layer_norm(x, w, b):
        mu = jnp.mean(x, axis=-1, keepdims=True)
        var = jnp.mean((x - mu) ** 2, axis=-1, keepdims=True)
        return (x - mu) * lax.rsqrt(var + LN_EPS) * w + b

    def sigmoid(x):                            # == 1/(1+exp(-x)); a single EUP tanh
        return 0.5 * (jnp.tanh(0.5 * x) + 1.0)

    # ---- bidirectional LSTM ----
    # x_ref rows are (t, b)-ordered; cols [0:E] = x_t, [E:2E] = x_{T-1-t}, so one
    # block-diagonal matmul gives fwd AND bwd gate pre-activations for all steps.
    proj = jnp.dot(x_ref[...], pa("lstm_w"), preferred_element_type=f32) + pa("lstm_b")
    whh = pa("whh")                            # (2*hid, 8*hid) block-diag, gate-interleaved
    h = jnp.zeros((B, 2 * hid), f32)           # [h_fwd | h_bwd]
    c = jnp.zeros((B, 2 * hid), f32)
    hs = []
    for s in range(T):                         # strictly serial recurrence, unrolled
        g = proj[s * B:(s + 1) * B, :] + jnp.dot(h, whh, preferred_element_type=f32)
        i_g = sigmoid(g[:, 0:2 * hid])         # gate-major, direction-minor column layout
        f_g = sigmoid(g[:, 2 * hid:4 * hid])
        c_g = jnp.tanh(g[:, 4 * hid:6 * hid])
        o_g = sigmoid(g[:, 6 * hid:8 * hid])
        c = f_g * c + i_g * c_g
        h = o_g * jnp.tanh(c)
        hs.append(h)

    # hs[s] holds fwd state of time s and bwd state of time T-1-s; fix the bwd
    # half's time order with one permutation matmul + select (no row shuffles).
    x_all = jnp.concatenate(hs, axis=0)                                 # (R, H)
    x_rev = jnp.dot(pb("timerev"), x_all, preferred_element_type=f32)
    col_is_fwd = lax.broadcasted_iota(jnp.int32, (1, H), 1) < hid
    x = jnp.where(col_is_fwd, x_all, x_rev)                             # rows (t, b)

    # ---- transformer encoder layers (per-head folded QK^T / VO weights) ----
    bias = pb("attn_bias")                      # (R, R) same-batch block mask (additive -1e30)
    for l in range(N_LAYER):
        x = layer_norm(x, pb(f"ln2w_{l}"), pb(f"ln2b_{l}"))             # src = norm2(src)
        xT = jnp.transpose(x)                   # one XLU transpose shared by all heads
        mq0 = _LAYOUT_B[f"mq_{l}"][0]
        vo0 = _LAYOUT_B[f"wvo_{l}"][0]
        attn = jnp.zeros((B * T, H), f32)
        for hd in range(N_HEAD):
            mq = pb_ref[mq0 + hd * H:mq0 + (hd + 1) * H, :]             # scale*Wq@Wk^T
            wvo = pb_ref[vo0 + hd * H:vo0 + (hd + 1) * H, :]            # Wv@Wo
            sc = jnp.dot(jnp.dot(x, mq, preferred_element_type=f32), xT,
                         preferred_element_type=f32) + bias             # (R, R)
            sc = sc - jnp.max(sc, axis=-1, keepdims=True)
            p = jnp.exp(sc)
            p = p * pl.reciprocal(jnp.sum(p, axis=-1, keepdims=True), approx=True)
            attn = attn + jnp.dot(p, jnp.dot(x, wvo, preferred_element_type=f32),
                                  preferred_element_type=f32)
        # TODO(synk): attention/FFN dropout omitted (eval mode / is_training=False).
        x = x + attn                                                    # src = src + src2
        x = layer_norm(x, pb(f"ln1w_{l}"), pb(f"ln1b_{l}"))             # src = norm1(src)
        hmid = jnp.maximum(
            jnp.dot(x, pa(f"w1_{l}"), preferred_element_type=f32) + pa(f"b1_{l}"), 0.0)
        x = x + jnp.dot(hmid, pb(f"w2_{l}"), preferred_element_type=f32) + pb(f"b2_{l}")

    x = layer_norm(x, pb("oln_w"), pb("oln_b"))                         # output_ln

    # ---- masked_select (one-hot matmul) + prediction head + cross-entropy ----
    sel = jnp.dot(d_ref[0:_SEL_PAD, :], x, preferred_element_type=f32)  # (8, H); pad rows zero
    h1 = jnp.dot(sel, pb("pw1"), preferred_element_type=f32) + pb("pb1")
    h1 = 0.5 * h1 * (1.0 + lax.erf(h1 * (1.0 / math.sqrt(2.0))))        # exact GELU (parity)
    logits = jnp.dot(h1, pb("pw2"), preferred_element_type=f32)         # (8, 1)

    m = jnp.max(logits, axis=0, keepdims=True)                          # global LSE shift (safe)
    e = jnp.exp(logits - m)
    lse = m + jnp.log(jnp.dot(pb("grp"), e, preferred_element_type=f32))    # (B, 1)
    gold = jnp.dot(d_ref[_SEL_PAD:_SEL_PAD + 1, 0:_SEL_PAD], logits,
                   preferred_element_type=f32)                          # (1, 1) sum of gold logits
    o_ref[...] = (jnp.sum(lse, axis=0, keepdims=True) - gold) * (1.0 / B)


def _bert_pallas(x_cat, sel_lab, slab_a, slab_b):
    # TODO(synk): at realistic BERT sizes, add a grid over rows with
    # dimension_semantics=("parallel",) (2 TCs on v7x), K-tiled BlockSpecs with a
    # VMEM accumulator, bf16 weight storage, and re-derive tiles for v7x's
    # 64 MiB VMEM; at B*T=16/H=32 everything fits in VMEM so one grid point wins.
    out = pl.pallas_call(
        _bert_fused_kernel,
        out_shape=jax.ShapeDtypeStruct((1, 1), jnp.float32),
        in_specs=[_VMEM_SPEC] * 4,
        out_specs=_VMEM_SPEC,
    )(x_cat, sel_lab, slab_a, slab_b)
    return out[0, 0]


# ------------------------------- forward glue --------------------------------
@jax.jit
def bert_forward(prep, emb_table, seq, label):
    B, T = BATCH, SEQ
    x_emb = emb_table[seq]                                            # (B, T, E) gather (glue)
    x_tm = jnp.transpose(x_emb, (1, 0, 2)).reshape(T * B, N_EMB)      # rows (t, b)
    x_rv = jnp.transpose(x_emb[:, ::-1, :], (1, 0, 2)).reshape(T * B, N_EMB)
    x_cat = jnp.concatenate([x_tm, x_rv], axis=1)                     # (T*B, 2E)

    # NOTE: assumes exactly 3 mask tokens (id == 1) per sample, like the reference;
    # jnp.nonzero(size=...) silently pads/truncates otherwise.
    flat = (seq == 1).reshape(-1)                                     # flat index = b*T + t
    idx = jnp.nonzero(flat, size=_SEL)[0]
    row_idx = (idx % T) * B + idx // T                                # kernel row order (t, b)
    sel = jax.nn.one_hot(row_idx, B * T, dtype=jnp.float32)           # (3B, B*T)
    sel = jnp.pad(sel, ((0, _SEL_PAD - _SEL), (0, 0)))                # (8, B*T)
    lab = jax.nn.one_hot(label, 3, dtype=jnp.float32).reshape(1, _SEL)
    lab = jnp.pad(lab, ((0, 0), (0, B * T - _SEL)))                   # (1, B*T)
    sel_lab = jnp.concatenate([sel, lab], axis=0)                     # (9, B*T)

    return _bert_pallas(x_cat, sel_lab, prep["slab_a"], prep["slab_b"])


# ------------------------------- params --------------------------------------
def init_params(key):
    ks = iter(jax.random.split(key, 64))

    def w(shape, scale=0.1):
        return (scale * jax.random.normal(next(ks), shape)).astype(jnp.float32)

    hid = _HID
    params = {
        "emb": w((VOCAB_PAD, N_EMB)),
        "lstm": {
            "w_ih_f": w((4 * hid, N_EMB)), "w_hh_f": w((4 * hid, hid)),
            "b_ih_f": w((4 * hid,)),       "b_hh_f": w((4 * hid,)),
            "w_ih_b": w((4 * hid, N_EMB)), "w_hh_b": w((4 * hid, hid)),
            "b_ih_b": w((4 * hid,)),       "b_hh_b": w((4 * hid,)),
        },
        "layers": [],
        "out_ln_w": jnp.ones((N_HID,), jnp.float32),
        "out_ln_b": jnp.zeros((N_HID,), jnp.float32),
        "pred": {
            "w1": w((N_HID // 2, N_HID)),
            "b1": jnp.zeros((N_HID // 2,), jnp.float32),
            "w2": w((1, N_HID // 2)),
        },
    }
    for _ in range(N_LAYER):
        params["layers"].append({
            "ln2_w": jnp.ones((N_HID,), jnp.float32),
            "ln2_b": jnp.zeros((N_HID,), jnp.float32),
            "qkv_w": w((3 * N_HID, N_HID)),        # apex SelfMultiheadAttn (no bias)
            "out_w": w((N_HID, N_HID)),
            "ln1_w": jnp.ones((N_HID,), jnp.float32),
            "ln1_b": jnp.zeros((N_HID,), jnp.float32),
            "w1": w((FFN, N_HID)), "b1": jnp.zeros((FFN,), jnp.float32),
            "w2": w((N_HID, FFN)), "b2": jnp.zeros((N_HID,), jnp.float32),
        })
    return params


def prepare_params(params):
    """One-time weight re-layout (NOT on the forward path): fold biases, build the
    block-diagonal gate-interleaved LSTM matrices, fold scale*Wq@Wk^T and Wv@Wo per
    head, transpose all matmul weights to (in, out), precompute the static
    attention mask / time-reversal / CE-group matrices, and pack everything into
    TWO slabs so the kernel does 2 parameter DMAs."""
    # TODO(synk): for the scale-up TODO, store these slabs in bf16 (f32 accumulate).
    f32 = jnp.float32
    hid = _HID
    L = params["lstm"]

    def gate_cols(w4h, direction):
        # Map [i f g o] column blocks into the combined gate-major layout
        # [i_f i_b | f_f f_b | g_f g_b | o_f o_b]; zeros in the other direction.
        w4h = jnp.asarray(w4h, f32)
        out = jnp.zeros((w4h.shape[0], 8 * hid), f32)
        for gg in range(4):
            out = out.at[:, (2 * gg + direction) * hid:
                         (2 * gg + direction + 1) * hid].set(w4h[:, gg * hid:(gg + 1) * hid])
        return out

    def put(slab, layout, name, arr):
        arr = jnp.asarray(arr, f32)
        if arr.ndim == 1:
            arr = arr.reshape(1, -1)
        r, nrows, ncols = layout[name]
        assert arr.shape == (nrows, ncols), (name, arr.shape, (nrows, ncols))
        return slab.at[r:r + nrows, 0:ncols].set(arr)

    sa = jnp.zeros((_ROWS_A, 128), f32)
    sb = jnp.zeros((_ROWS_B, N_HID), f32)

    sa = put(sa, _LAYOUT_A, "lstm_w",
             jnp.concatenate([gate_cols(L["w_ih_f"].T, 0), gate_cols(L["w_ih_b"].T, 1)], axis=0))
    sa = put(sa, _LAYOUT_A, "whh",
             jnp.concatenate([gate_cols(L["w_hh_f"].T, 0), gate_cols(L["w_hh_b"].T, 1)], axis=0))
    sa = put(sa, _LAYOUT_A, "lstm_b",
             gate_cols((L["b_ih_f"] + L["b_hh_f"]).reshape(1, -1), 0)
             + gate_cols((L["b_ih_b"] + L["b_hh_b"]).reshape(1, -1), 1))

    scale = 1.0 / math.sqrt(HEAD_DIM)
    for l, lp in enumerate(params["layers"]):
        sa = put(sa, _LAYOUT_A, f"w1_{l}", lp["w1"].T)                   # (H, FFN)
        sa = put(sa, _LAYOUT_A, f"b1_{l}", lp["b1"])
        qkvT = jnp.asarray(lp["qkv_w"], f32).T                           # (H, 3H)
        outT = jnp.asarray(lp["out_w"], f32).T                           # (H, H), rows = ctx feats
        mq, wvo = [], []
        for hh in range(N_HEAD):
            wq = qkvT[:, hh * HEAD_DIM:(hh + 1) * HEAD_DIM]
            wk = qkvT[:, N_HID + hh * HEAD_DIM:N_HID + (hh + 1) * HEAD_DIM]
            wv = qkvT[:, 2 * N_HID + hh * HEAD_DIM:2 * N_HID + (hh + 1) * HEAD_DIM]
            wo = outT[hh * HEAD_DIM:(hh + 1) * HEAD_DIM, :]
            mq.append(scale * (wq @ wk.T))                               # (H, H)
            wvo.append(wv @ wo)                                          # (H, H)
        sb = put(sb, _LAYOUT_B, f"mq_{l}", jnp.concatenate(mq, axis=0))
        sb = put(sb, _LAYOUT_B, f"wvo_{l}", jnp.concatenate(wvo, axis=0))
        sb = put(sb, _LAYOUT_B, f"w2_{l}", lp["w2"].T)                   # (FFN, H)
        sb = put(sb, _LAYOUT_B, f"ln2w_{l}", lp["ln2_w"])
        sb = put(sb, _LAYOUT_B, f"ln2b_{l}", lp["ln2_b"])
        sb = put(sb, _LAYOUT_B, f"ln1w_{l}", lp["ln1_w"])
        sb = put(sb, _LAYOUT_B, f"ln1b_{l}", lp["ln1_b"])
        sb = put(sb, _LAYOUT_B, f"b2_{l}", lp["b2"])

    sb = put(sb, _LAYOUT_B, "oln_w", params["out_ln_w"])
    sb = put(sb, _LAYOUT_B, "oln_b", params["out_ln_b"])
    sb = put(sb, _LAYOUT_B, "pw1", params["pred"]["w1"].T)
    sb = put(sb, _LAYOUT_B, "pb1", params["pred"]["b1"])
    sb = put(sb, _LAYOUT_B, "pw2", params["pred"]["w2"].T)

    # Static masks / permutations, precomputed on the host (not built in-kernel).
    ri = jnp.arange(_ROWS)
    bi, ti = ri % BATCH, ri // BATCH
    attn_bias = jnp.where(bi[:, None] == bi[None, :], 0.0, -1e30).astype(f32)
    timerev = ((bi[:, None] == bi[None, :])
               & (ti[:, None] == (SEQ - 1 - ti)[None, :])).astype(f32)
    jc = jnp.arange(_SEL_PAD)
    grp = (((jc[None, :] // 3) == jnp.arange(BATCH)[:, None])
           & (jc[None, :] < _SEL)).astype(f32)
    sb = put(sb, _LAYOUT_B, "attn_bias", attn_bias)
    sb = put(sb, _LAYOUT_B, "timerev", timerev)
    sb = put(sb, _LAYOUT_B, "grp", grp)

    return {"slab_a": sa, "slab_b": sb}


if __name__ == "__main__":
    key = jax.random.PRNGKey(0)
    k_param, k_seq, k_lab = jax.random.split(key, 3)

    params = init_params(k_param)
    prep = prepare_params(params)   # one-time re-layout, outside the forward path

    # token ids in [2, VOCAB_PAD); place exactly 3 "mask" tokens (id == 1) per row
    seq = jax.random.randint(k_seq, (BATCH, SEQ), 2, VOCAB_PAD, dtype=jnp.int32)
    mask_positions = jnp.array([[1, 4, 6], [0, 3, 7]], dtype=jnp.int32)
    rows = jnp.repeat(jnp.arange(BATCH), 3)
    seq = seq.at[rows, mask_positions.reshape(-1)].set(1)
    label = jax.random.randint(k_lab, (BATCH,), 0, 3, dtype=jnp.int32)

    loss = bert_forward(prep, params["emb"], seq, label)
    jax.block_until_ready(loss)
    assert loss.shape == () and jnp.isfinite(loss)
    print("KERNEL_OK")
</pallas_src>

<mosaic_0001>
module attributes {stable_mosaic.version = 11 : i64} {
  func.func private @main(%arg0: i32) attributes {dimension_semantics = [#tpu.dimension_semantics<core_parallel>], iteration_bounds = array<i64: 2>, tpu.core_type = #tpu.core_type<sc_scalar_subcore>, window_params = []} {
    return
  }
}

module attributes {stable_mosaic.version = 11 : i64} {
  func.func private @main(%arg0: i32) attributes {dimension_semantics = [#tpu.dimension_semantics<core_parallel>], iteration_bounds = array<i64: 2>, tpu.core_type = #tpu.core_type<sc_scalar_subcore>, window_params = []} {
    return
  }
}

module attributes {stable_mosaic.version = 11 : i64} {
  func.func @_bert_fused_kernel(%arg0: memref<16x32xf32, #tpu.memory_space<vmem>>, %arg1: memref<9x16xf32, #tpu.memory_space<vmem>>, %arg2: memref<136x128xf32, #tpu.memory_space<vmem>>, %arg3: memref<864x32xf32, #tpu.memory_space<vmem>>, %arg4: memref<1x1xf32, #tpu.memory_space<vmem>>) attributes {dimension_semantics = [], scalar_prefetch = 0 : i64, scratch_operands = 0 : i64, tpu.core_type = #tpu.core_type<tc>} {
    %c0 = arith.constant 0 : index
    %c0_0 = arith.constant 0 : index
    %0 = vector.load %arg0[%c0, %c0_0] : memref<16x32xf32, #tpu.memory_space<vmem>>, vector<16x32xf32>
    %c0_1 = arith.constant 0 : index
    %c0_2 = arith.constant 0 : index
    %1 = vector.load %arg2[%c0_1, %c0_2] : memref<136x128xf32, #tpu.memory_space<vmem>>, vector<32x128xf32>
    %cst = arith.constant dense<0.000000e+00> : vector<16x128xf32>
    %2 = tpu.matmul %0, %1, %cst {dimension_numbers = #tpu.dot_dimension_numbers<[1], [0], [0], [1], [0, 0, 1, 1], [], []>} : vector<16x32xf32>, vector<32x128xf32>, vector<16x128xf32> -> vector<16x128xf32>
    %c64 = arith.constant 64 : index
    %c0_3 = arith.constant 0 : index
    %3 = vector.load %arg2[%c64, %c0_3] : memref<136x128xf32, #tpu.memory_space<vmem>>, vector<1x128xf32>
    %4 = vector.broadcast %3 : vector<1x128xf32> to vector<16x128xf32>
    %5 = arith.addf %2, %4 : vector<16x128xf32>
    %c32 = arith.constant 32 : index
    %c0_4 = arith.constant 0 : index
    %6 = vector.load %arg2[%c32, %c0_4] : memref<136x128xf32, #tpu.memory_space<vmem>>, vector<32x128xf32>
    %cst_5 = arith.constant 0.000000e+00 : f32
    %7 = vector.broadcast %cst_5 : f32 to vector<2x32xf32>
    %cst_6 = arith.constant 0.000000e+00 : f32
    %8 = vector.broadcast %cst_6 : f32 to vector<2x32xf32>
    %9 = vector.extract_strided_slice %5 {offsets = [0, 0], sizes = [2, 128], strides = [1, 1]} : vector<16x128xf32> to vector<2x128xf32>
    %cst_7 = arith.constant dense<0.000000e+00> : vector<2x128xf32>
    %10 = tpu.matmul %7, %6, %cst_7 {dimension_numbers = #tpu.dot_dimension_numbers<[1], [0], [0], [1], [0, 0, 1, 1], [], []>} : vector<2x32xf32>, vector<32x128xf32>, vector<2x128xf32> -> vector<2x128xf32>
    %11 = arith.addf %9, %10 : vector<2x128xf32>
    %12 = vector.extract_strided_slice %11 {offsets = [0, 0], sizes = [2, 32], strides = [1, 1]} : vector<2x128xf32> to vector<2x32xf32>
    %cst_8 = arith.constant 5.000000e-01 : f32
    %13 = vector.broadcast %cst_8 : f32 to vector<2x32xf32>
    %14 = arith.mulf %13, %12 : vector<2x32xf32>
    %15 = math.tanh %14 : vector<2x32xf32>
    %cst_9 = arith.constant 1.000000e+00 : f32
    %16 = vector.broadcast %cst_9 : f32 to vector<2x32xf32>
    %17 = arith.addf %15, %16 : vector<2x32xf32>
    %cst_10 = arith.constant 5.000000e-01 : f32
    %18 = vector.broadcast %cst_10 : f32 to vector<2x32xf32>
    %19 = arith.mulf %18, %17 : vector<2x32xf32>
    %20 = vector.extract_strided_slice %11 {offsets = [0, 32], sizes = [2, 32], strides = [1, 1]} : vector<2x128xf32> to vector<2x32xf32>
    %cst_11 = arith.constant 5.000000e-01 : f32
    %21 = vector.broadcast %cst_11 : f32 to vector<2x32xf32>
    %22 = arith.mulf %21, %20 : vector<2x32xf32>
    %23 = math.tanh %22 : vector<2x32xf32>
    %cst_12 = arith.constant 1.000000e+00 : f32
    %24 = vector.broadcast %cst_12 : f32 to vector<2x32xf32>
    %25 = arith.addf %23, %24 : vector<2x32xf32>
    %cst_13 = arith.constant 5.000000e-01 : f32
    %26 = vector.broadcast %cst_13 : f32 to vector<2x32xf32>
    %27 = arith.mulf %26, %25 : vector<2x32xf32>
    %28 = vector.extract_strided_slice %11 {offsets = [0, 64], sizes = [2, 32], strides = [1, 1]} : vector<2x128xf32> to vector<2x32xf32>
    %29 = math.tanh %28 : vector<2x32xf32>
    %30 = vector.extract_strided_slice %11 {offsets = [0, 96], sizes = [2, 32], strides = [1, 1]} : vector<2x128xf32> to vector<2x32xf32>
    %cst_14 = arith.constant 5.000000e-01 : f32
    %31 = vector.broadcast %cst_14 : f32 to vector<2x32xf32>
    %32 = arith.mulf %31, %30 : vector<2x32xf32>
    %33 = math.tanh %32 : vector<2x32xf32>
    %cst_15 = arith.constant 1.000000e+00 : f32
    %34 = vector.broadcast %cst_15 : f32 to vector<2x32xf32>
    %35 = arith.addf %33, %34 : vector<2x32xf32>
    %cst_16 = arith.constant 5.000000e-01 : f32
    %36 = vector.broadcast %cst_16 : f32 to vector<2x32xf32>
    %37 = arith.mulf %36, %35 : vector<2x32xf32>
    %38 = arith.mulf %27, %8 : vector<2x32xf32>
    %39 = arith.mulf %19, %29 : vector<2x32xf32>
    %40 = arith.addf %38, %39 : vector<2x32xf32>
    %41 = math.tanh %40 : vector<2x32xf32>
    %42 = arith.mulf %37, %41 : vector<2x32xf32>
    %43 = vector.extract_strided_slice %5 {offsets = [2, 0], sizes = [2, 128], strides = [1, 1]} : vector<16x128xf32> to vector<2x128xf32>
    %cst_17 = arith.constant dense<0.000000e+00> : vector<2x128xf32>
    %44 = tpu.matmul %42, %6, %cst_17 {dimension_numbers = #tpu.dot_dimension_numbers<[1], [0], [0], [1], [0, 0, 1, 1], [], []>} : vector<2x32xf32>, vector<32x128xf32>, vector<2x128xf32> -> vector<2x128xf32>
    %45 = arith.addf %43, %44 : vector<2x128xf32>
    %46 = vector.extract_strided_slice %45 {offsets = [0, 0], sizes = [2, 32], strides = [1, 1]} : vector<2x128xf32> to vector<2x32xf32>
    %cst_18 = arith.constant 5.000000e-01 : f32
    %47 = vector.broadcast %cst_18 : f32 to vector<2x32xf32>
    %48 = arith.mulf %47, %46 : vector<2x32xf32>
    %49 = math.tanh %48 : vector<2x32xf32>
    %cst_19 = arith.constant 1.000000e+00 : f32
    %50 = vector.broadcast %cst_19 : f32 to vector<2x32xf32>
    %51 = arith.addf %49, %50 : vector<2x32xf32>
    %cst_20 = arith.constant 5.000000e-01 : f32
    %52 = vector.broadcast %cst_20 : f32 to vector<2x32xf32>
    %53 = arith.mulf %52, %51 : vector<2x32xf32>
    %54 = vector.extract_strided_slice %45 {offsets = [0, 32], sizes = [2, 32], strides = [1, 1]} : vector<2x128xf32> to vector<2x32xf32>
    %cst_21 = arith.constant 5.000000e-01 : f32
    %55 = vector.broadcast %cst_21 : f32 to vector<2x32xf32>
    %56 = arith.mulf %55, %54 : vector<2x32xf32>
    %57 = math.tanh %56 : vector<2x32xf32>
    %cst_22 = arith.constant 1.000000e+00 : f32
    %58 = vector.broadcast %cst_22 : f32 to vector<2x32xf32>
    %59 = arith.addf %57, %58 : vector<2x32xf32>
    %cst_23 = arith.constant 5.000000e-01 : f32
    %60 = vector.broadcast %cst_23 : f32 to vector<2x32xf32>
    %61 = arith.mulf %60, %59 : vector<2x32xf32>
    %62 = vector.extract_strided_slice %45 {offsets = [0, 64], sizes = [2, 32], strides = [1, 1]} : vector<2x128xf32> to vector<2x32xf32>
    %63 = math.tanh %62 : vector<2x32xf32>
    %64 = vector.extract_strided_slice %45 {offsets = [0, 96], sizes = [2, 32], strides = [1, 1]} : vector<2x128xf32> to vector<2x32xf32>
    %cst_24 = arith.constant 5.000000e-01 : f32
    %65 = vector.broadcast %cst_24 : f32 to vector<2x32xf32>
    %66 = arith.mulf %65, %64 : vector<2x32xf32>
    %67 = math.tanh %66 : vector<2x32xf32>
    %cst_25 = arith.constant 1.000000e+00 : f32
    %68 = vector.broadcast %cst_25 : f32 to vector<2x32xf32>
    %69 = arith.addf %67, %68 : vector<2x32xf32>
    %cst_26 = arith.constant 5.000000e-01 : f32
    %70 = vector.broadcast %cst_26 : f32 to vector<2x32xf32>
    %71 = arith.mulf %70, %69 : vector<2x32xf32>
    %72 = arith.mulf %61, %40 : vector<2x32xf32>
    %73 = arith.mulf %53, %63 : vector<2x32xf32>
    %74 = arith.addf %72, %73 : vector<2x32xf32>
    %75 = math.tanh %74 : vector<2x32xf32>
    %76 = arith.mulf %71, %75 : vector<2x32xf32>
    %77 = vector.extract_strided_slice %5 {offsets = [4, 0], sizes = [2, 128], strides = [1, 1]} : vector<16x128xf32> to vector<2x128xf32>
    %cst_27 = arith.constant dense<0.000000e+00> : vector<2x128xf32>
    %78 = tpu.matmul %76, %6, %cst_27 {dimension_numbers = #tpu.dot_dimension_numbers<[1], [0], [0], [1], [0, 0, 1, 1], [], []>} : vector<2x32xf32>, vector<32x128xf32>, vector<2x128xf32> -> vector<2x128xf32>
    %79 = arith.addf %77, %78 : vector<2x128xf32>
    %80 = vector.extract_strided_slice %79 {offsets = [0, 0], sizes = [2, 32], strides = [1, 1]} : vector<2x128xf32> to vector<2x32xf32>
    %cst_28 = arith.constant 5.000000e-01 : f32
    %81 = vector.broadcast %cst_28 : f32 to vector<2x32xf32>
    %82 = arith.mulf %81, %80 : vector<2x32xf32>
    %83 = math.tanh %82 : vector<2x32xf32>
    %cst_29 = arith.constant 1.000000e+00 : f32
    %84 = vector.broadcast %cst_29 : f32 to vector<2x32xf32>
    %85 = arith.addf %83, %84 : vector<2x32xf32>
    %cst_30 = arith.constant 5.000000e-01 : f32
    %86 = vector.broadcast %cst_30 : f32 to vector<2x32xf32>
    %87 = arith.mulf %86, %85 : vector<2x32xf32>
    %88 = vector.extract_strided_slice %79 {offsets = [0, 32], sizes = [2, 32], strides = [1, 1]} : vector<2x128xf32> to vector<2x32xf32>
    %cst_31 = arith.constant 5.000000e-01 : f32
    %89 = vector.broadcast %cst_31 : f32 to vector<2x32xf32>
    %90 = arith.mulf %89, %88 : vector<2x32xf32>
    %91 = math.tanh %90 : vector<2x32xf32>
    %cst_32 = arith.constant 1.000000e+00 : f32
    %92 = vector.broadcast %cst_32 : f32 to vector<2x32xf32>
    %93 = arith.addf %91, %92 : vector<2x32xf32>
    %cst_33 = arith.constant 5.000000e-01 : f32
    %94 = vector.broadcast %cst_33 : f32 to vector<2x32xf32>
    %95 = arith.mulf %94, %93 : vector<2x32xf32>
    %96 = vector.extract_strided_slice %79 {offsets = [0, 64], sizes = [2, 32], strides = [1, 1]} : vector<2x128xf32> to vector<2x32xf32>
    %97 = math.tanh %96 : vector<2x32xf32>
    %98 = vector.extract_strided_slice %79 {offsets = [0, 96], sizes = [2, 32], strides = [1, 1]} : vector<2x128xf32> to vector<2x32xf32>
    %cst_34 = arith.constant 5.000000e-01 : f32
    %99 = vector.broadcast %cst_34 : f32 to vector<2x32xf32>
    %100 = arith.mulf %99, %98 : vector<2x32xf32>
    %101 = math.tanh %100 : vector<2x32xf32>
    %cst_35 = arith.constant 1.000000e+00 : f32
    %102 = vector.broadcast %cst_35 : f32 to vector<2x32xf32>
    %103 = arith.addf %101, %102 : vector<2x32xf32>
    %cst_36 = arith.constant 5.000000e-01 : f32
    %104 = vector.broadcast %cst_36 : f32 to vector<2x32xf32>
    %105 = arith.mulf %104, %103 : vector<2x32xf32>
    %106 = arith.mulf %95, %74 : vector<2x32xf32>
    %107 = arith.mulf %87, %97 : vector<2x32xf32>
    %108 = arith.addf %106, %107 : vector<2x32xf32>
    %109 = math.tanh %108 : vector<2x32xf32>
    %110 = arith.mulf %105, %109 : vector<2x32xf32>
    %111 = vector.extract_strided_slice %5 {offsets = [6, 0], sizes = [2, 128], strides = [1, 1]} : vector<16x128xf32> to vector<2x128xf32>
    %cst_37 = arith.constant dense<0.000000e+00> : vector<2x128xf32>
    %112 = tpu.matmul %110, %6, %cst_37 {dimension_numbers = #tpu.dot_dimension_numbers<[1], [0], [0], [1], [0, 0, 1, 1], [], []>} : vector<2x32xf32>, vector<32x128xf32>, vector<2x128xf32> -> vector<2x128xf32>
    %113 = arith.addf %111, %112 : vector<2x128xf32>
    %114 = vector.extract_strided_slice %113 {offsets = [0, 0], sizes = [2, 32], strides = [1, 1]} : vector<2x128xf32> to vector<2x32xf32>
    %cst_38 = arith.constant 5.000000e-01 : f32
    %115 = vector.broadcast %cst_38 : f32 to vector<2x32xf32>
    %116 = arith.mulf %115, %114 : vector<2x32xf32>
    %117 = math.tanh %116 : vector<2x32xf32>
    %cst_39 = arith.constant 1.000000e+00 : f32
    %118 = vector.broadcast %cst_39 : f32 to vector<2x32xf32>
    %119 = arith.addf %117, %118 : vector<2x32xf32>
    %cst_40 = arith.constant 5.000000e-01 : f32
    %120 = vector.broadcast %cst_40 : f32 to vector<2x32xf32>
    %121 = arith.mulf %120, %119 : vector<2x32xf32>
    %122 = vector.extract_strided_slice %113 {offsets = [0, 32], sizes = [2, 32], strides = [1, 1]} : vector<2x128xf32> to vector<2x32xf32>
    %cst_41 = arith.constant 5.000000e-01 : f32
    %123 = vector.broadcast %cst_41 : f32 to vector<2x32xf32>
    %124 = arith.mulf %123, %122 : vector<2x32xf32>
    %125 = math.tanh %124 : vector<2x32xf32>
    %cst_42 = arith.constant 1.000000e+00 : f32
    %126 = vector.broadcast %cst_42 : f32 to vector<2x32xf32>
    %127 = arith.addf %125, %126 : vector<2x32xf32>
    %cst_43 = arith.constant 5.000000e-01 : f32
    %128 = vector.broadcast %cst_43 : f32 to vector<2x32xf32>
    %129 = arith.mulf %128, %127 : vector<2x32xf32>
    %130 = vector.extract_strided_slice %113 {offsets = [0, 64], sizes = [2, 32], strides = [1, 1]} : vector<2x128xf32> to vector<2x32xf32>
    %131 = math.tanh %130 : vector<2x32xf32>
    %132 = vector.extract_strided_slice %113 {offsets = [0, 96], sizes = [2, 32], strides = [1, 1]} : vector<2x128xf32> to vector<2x32xf32>
    %cst_44 = arith.constant 5.000000e-01 : f32
    %133 = vector.broadcast %cst_44 : f32 to vector<2x32xf32>
    %134 = arith.mulf %133, %132 : vector<2x32xf32>
    %135 = math.tanh %134 : vector<2x32xf32>
    %cst_45 = arith.constant 1.000000e+00 : f32
    %136 = vector.broadcast %cst_45 : f32 to vector<2x32xf32>
    %137 = arith.addf %135, %136 : vector<2x32xf32>
    %cst_46 = arith.constant 5.000000e-01 : f32
    %138 = vector.broadcast %cst_46 : f32 to vector<2x32xf32>
    %139 = arith.mulf %138, %137 : vector<2x32xf32>
    %140 = arith.mulf %129, %108 : vector<2x32xf32>
    %141 = arith.mulf %121, %131 : vector<2x32xf32>
    %142 = arith.addf %140, %141 : vector<2x32xf32>
    %143 = math.tanh %142 : vector<2x32xf32>
    %144 = arith.mulf %139, %143 : vector<2x32xf32>
    %145 = vector.extract_strided_slice %5 {offsets = [8, 0], sizes = [2, 128], strides = [1, 1]} : vector<16x128xf32> to vector<2x128xf32>
    %cst_47 = arith.constant dense<0.000000e+00> : vector<2x128xf32>
    %146 = tpu.matmul %144, %6, %cst_47 {dimension_numbers = #tpu.dot_dimension_numbers<[1], [0], [0], [1], [0, 0, 1, 1], [], []>} : vector<2x32xf32>, vector<32x128xf32>, vector<2x128xf32> -> vector<2x128xf32>
    %147 = arith.addf %145, %146 : vector<2x128xf32>
    %148 = vector.extract_strided_slice %147 {offsets = [0, 0], sizes = [2, 32], strides = [1, 1]} : vector<2x128xf32> to vector<2x32xf32>
    %cst_48 = arith.constant 5.000000e-01 : f32
    %149 = vector.broadcast %cst_48 : f32 to vector<2x32xf32>
    %150 = arith.mulf %149, %148 : vector<2x32xf32>
    %151 = math.tanh %150 : vector<2x32xf32>
    %cst_49 = arith.constant 1.000000e+00 : f32
    %152 = vector.broadcast %cst_49 : f32 to vector<2x32xf32>
    %153 = arith.addf %151, %152 : vector<2x32xf32>
    %cst_50 = arith.constant 5.000000e-01 : f32
    %154 = vector.broadcast %cst_50 : f32 to vector<2x32xf32>
    %155 = arith.mulf %154, %153 : vector<2x32xf32>
    %156 = vector.extract_strided_slice %147 {offsets = [0, 32], sizes = [2, 32], strides = [1, 1]} : vector<2x128xf32> to vector<2x32xf32>
    %cst_51 = arith.constant 5.000000e-01 : f32
    %157 = vector.broadcast %cst_51 : f32 to vector<2x32xf32>
    %158 = arith.mulf %157, %156 : vector<2x32xf32>
    %159 = math.tanh %158 : vector<2x32xf32>
    %cst_52 = arith.constant 1.000000e+00 : f32
    %160 = vector.broadcast %cst_52 : f32 to vector<2x32xf32>
    %161 = arith.addf %159, %160 : vector<2x32xf32>
    %cst_53 = arith.constant 5.000000e-01 : f32
    %162 = vector.broadcast %cst_53 : f32 to vector<2x32xf32>
    %163 = arith.mulf %162, %161 : vector<2x32xf32>
    %164 = vector.extract_strided_slice %147 {offsets = [0, 64], sizes = [2, 32], strides = [1, 1]} : vector<2x128xf32> to vector<2x32xf32>
    %165 = math.tanh %164 : vector<2x32xf32>
    %166 = vector.extract_strided_slice %147 {offsets = [0, 96], sizes = [2, 32], strides = [1, 1]} : vector<2x128xf32> to vector<2x32xf32>
    %cst_54 = arith.constant 5.000000e-01 : f32
    %167 = vector.broadcast %cst_54 : f32 to vector<2x32xf32>
    %168 = arith.mulf %167, %166 : vector<2x32xf32>
    %169 = math.tanh %168 : vector<2x32xf32>
    %cst_55 = arith.constant 1.000000e+00 : f32
    %170 = vector.broadcast %cst_55 : f32 to vector<2x32xf32>
    %171 = arith.addf %169, %170 : vector<2x32xf32>
    %cst_56 = arith.constant 5.000000e-01 : f32
    %172 = vector.broadcast %cst_56 : f32 to vector<2x32xf32>
    %173 = arith.mulf %172, %171 : vector<2x32xf32>
    %174 = arith.mulf %163, %142 : vector<2x32xf32>
    %175 = arith.mulf %155, %165 : vector<2x32xf32>
    %176 = arith.addf %174, %175 : vector<2x32xf32>
    %177 = math.tanh %176 : vector<2x32xf32>
    %178 = arith.mulf %173, %177 : vector<2x32xf32>
    %179 = vector.extract_strided_slice %5 {offsets = [10, 0], sizes = [2, 128], strides = [1, 1]} : vector<16x128xf32> to vector<2x128xf32>
    %cst_57 = arith.constant dense<0.000000e+00> : vector<2x128xf32>
    %180 = tpu.matmul %178, %6, %cst_57 {dimension_numbers = #tpu.dot_dimension_numbers<[1], [0], [0], [1], [0, 0, 1, 1], [], []>} : vector<2x32xf32>, vector<32x128xf32>, vector<2x128xf32> -> vector<2x128xf32>
    %181 = arith.addf %179, %180 : vector<2x128xf32>
    %182 = vector.extract_strided_slice %181 {offsets = [0, 0], sizes = [2, 32], strides = [1, 1]} : vector<2x128xf32> to vector<2x32xf32>
    %cst_58 = arith.constant 5.000000e-01 : f32
    %183 = vector.broadcast %cst_58 : f32 to vector<2x32xf32>
    %184 = arith.mulf %183, %182 : vector<2x32xf32>
    %185 = math.tanh %184 : vector<2x32xf32>
    %cst_59 = arith.constant 1.000000e+00 : f32
    %186 = vector.broadcast %cst_59 : f32 to vector<2x32xf32>
    %187 = arith.addf %185, %186 : vector<2x32xf32>
    %cst_60 = arith.constant 5.000000e-01 : f32
    %188 = vector.broadcast %cst_60 : f32 to vector<2x32xf32>
    %189 = arith.mulf %188, %187 : vector<2x32xf32>
    %190 = vector.extract_strided_slice %181 {offsets = [0, 32], sizes = [2, 32], strides = [1, 1]} : vector<2x128xf32> to vector<2x32xf32>
    %cst_61 = arith.constant 5.000000e-01 : f32
    %191 = vector.broadcast %cst_61 : f32 to vector<2x32xf32>
    %192 = arith.mulf %191, %190 : vector<2x32xf32>
    %193 = math.tanh %192 : vector<2x32xf32>
    %cst_62 = arith.constant 1.000000e+00 : f32
    %194 = vector.broadcast %cst_62 : f32 to vector<2x32xf32>
    %195 = arith.addf %193, %194 : vector<2x32xf32>
    %cst_63 = arith.constant 5.000000e-01 : f32
    %196 = vector.broadcast %cst_63 : f32 to vector<2x32xf32>
    %197 = arith.mulf %196, %195 : vector<2x32xf32>
    %198 = vector.extract_strided_slice %181 {offsets = [0, 64], sizes = [2, 32], strides = [1, 1]} : vector<2x128xf32> to vector<2x32xf32>
    %199 = math.tanh %198 : vector<2x32xf32>
    %200 = vector.extract_strided_slice %181 {offsets = [0, 96], sizes = [2, 32], strides = [1, 1]} : vector<2x128xf32> to vector<2x32xf32>
    %cst_64 = arith.constant 5.000000e-01 : f32
    %201 = vector.broadcast %cst_64 : f32 to vector<2x32xf32>
    %202 = arith.mulf %201, %200 : vector<2x32xf32>
    %203 = math.tanh %202 : vector<2x32xf32>
    %cst_65 = arith.constant 1.000000e+00 : f32
    %204 = vector.broadcast %cst_65 : f32 to vector<2x32xf32>
    %205 = arith.addf %203, %204 : vector<2x32xf32>
    %cst_66 = arith.constant 5.000000e-01 : f32
    %206 = vector.broadcast %cst_66 : f32 to vector<2x32xf32>
    %207 = arith.mulf %206, %205 : vector<2x32xf32>
    %208 = arith.mulf %197, %176 : vector<2x32xf32>
    %209 = arith.mulf %189, %199 : vector<2x32xf32>
    %210 = arith.addf %208, %209 : vector<2x32xf32>
    %211 = math.tanh %210 : vector<2x32xf32>
    %212 = arith.mulf %207, %211 : vector<2x32xf32>
    %213 = vector.extract_strided_slice %5 {offsets = [12, 0], sizes = [2, 128], strides = [1, 1]} : vector<16x128xf32> to vector<2x128xf32>
    %cst_67 = arith.constant dense<0.000000e+00> : vector<2x128xf32>
    %214 = tpu.matmul %212, %6, %cst_67 {dimension_numbers = #tpu.dot_dimension_numbers<[1], [0], [0], [1], [0, 0, 1, 1], [], []>} : vector<2x32xf32>, vector<32x128xf32>, vector<2x128xf32> -> vector<2x128xf32>
    %215 = arith.addf %213, %214 : vector<2x128xf32>
    %216 = vector.extract_strided_slice %215 {offsets = [0, 0], sizes = [2, 32], strides = [1, 1]} : vector<2x128xf32> to vector<2x32xf32>
    %cst_68 = arith.constant 5.000000e-01 : f32
    %217 = vector.broadcast %cst_68 : f32 to vector<2x32xf32>
    %218 = arith.mulf %217, %216 : vector<2x32xf32>
    %219 = math.tanh %218 : vector<2x32xf32>
    %cst_69 = arith.constant 1.000000e+00 : f32
    %220 = vector.broadcast %cst_69 : f32 to vector<2x32xf32>
    %221 = arith.addf %219, %220 : vector<2x32xf32>
    %cst_70 = arith.constant 5.000000e-01 : f32
    %222 = vector.broadcast %cst_70 : f32 to vector<2x32xf32>
    %223 = arith.mulf %222, %221 : vector<2x32xf32>
    %224 = vector.extract_strided_slice %215 {offsets = [0, 32], sizes = [2, 32], strides = [1, 1]} : vector<2x128xf32> to vector<2x32xf32>
    %cst_71 = arith.constant 5.000000e-01 : f32
    %225 = vector.broadcast %cst_71 : f32 to vector<2x32xf32>
    %226 = arith.mulf %225, %224 : vector<2x32xf32>
    %227 = math.tanh %226 : vector<2x32xf32>
    %cst_72 = arith.constant 1.000000e+00 : f32
    %228 = vector.broadcast %cst_72 : f32 to vector<2x32xf32>
    %229 = arith.addf %227, %228 : vector<2x32xf32>
    %cst_73 = arith.constant 5.000000e-01 : f32
    %230 = vector.broadcast %cst_73 : f32 to vector<2x32xf32>
    %231 = arith.mulf %230, %229 : vector<2x32xf32>
    %232 = vector.extract_strided_slice %215 {offsets = [0, 64], sizes = [2, 32], strides = [1, 1]} : vector<2x128xf32> to vector<2x32xf32>
    %233 = math.tanh %232 : vector<2x32xf32>
    %234 = vector.extract_strided_slice %215 {offsets = [0, 96], sizes = [2, 32], strides = [1, 1]} : vector<2x128xf32> to vector<2x32xf32>
    %cst_74 = arith.constant 5.000000e-01 : f32
    %235 = vector.broadcast %cst_74 : f32 to vector<2x32xf32>
    %236 = arith.mulf %235, %234 : vector<2x32xf32>
    %237 = math.tanh %236 : vector<2x32xf32>
    %cst_75 = arith.constant 1.000000e+00 : f32
    %238 = vector.broadcast %cst_75 : f32 to vector<2x32xf32>
    %239 = arith.addf %237, %238 : vector<2x32xf32>
    %cst_76 = arith.constant 5.000000e-01 : f32
    %240 = vector.broadcast %cst_76 : f32 to vector<2x32xf32>
    %241 = arith.mulf %240, %239 : vector<2x32xf32>
    %242 = arith.mulf %231, %210 : vector<2x32xf32>
    %243 = arith.mulf %223, %233 : vector<2x32xf32>
    %244 = arith.addf %242, %243 : vector<2x32xf32>
    %245 = math.tanh %244 : vector<2x32xf32>
    %246 = arith.mulf %241, %245 : vector<2x32xf32>
    %247 = vector.extract_strided_slice %5 {offsets = [14, 0], sizes = [2, 128], strides = [1, 1]} : vector<16x128xf32> to vector<2x128xf32>
    %cst_77 = arith.constant dense<0.000000e+00> : vector<2x128xf32>
    %248 = tpu.matmul %246, %6, %cst_77 {dimension_numbers = #tpu.dot_dimension_numbers<[1], [0], [0], [1], [0, 0, 1, 1], [], []>} : vector<2x32xf32>, vector<32x128xf32>, vector<2x128xf32> -> vector<2x128xf32>
    %249 = arith.addf %247, %248 : vector<2x128xf32>
    %250 = vector.extract_strided_slice %249 {offsets = [0, 0], sizes = [2, 32], strides = [1, 1]} : vector<2x128xf32> to vector<2x32xf32>
    %cst_78 = arith.constant 5.000000e-01 : f32
    %251 = vector.broadcast %cst_78 : f32 to vector<2x32xf32>
    %252 = arith.mulf %251, %250 : vector<2x32xf32>
    %253 = math.tanh %252 : vector<2x32xf32>
    %cst_79 = arith.constant 1.000000e+00 : f32
    %254 = vector.broadcast %cst_79 : f32 to vector<2x32xf32>
    %255 = arith.addf %253, %254 : vector<2x32xf32>
    %cst_80 = arith.constant 5.000000e-01 : f32
    %256 = vector.broadcast %cst_80 : f32 to vector<2x32xf32>
    %257 = arith.mulf %256, %255 : vector<2x32xf32>
    %258 = vector.extract_strided_slice %249 {offsets = [0, 32], sizes = [2, 32], strides = [1, 1]} : vector<2x128xf32> to vector<2x32xf32>
    %cst_81 = arith.constant 5.000000e-01 : f32
    %259 = vector.broadcast %cst_81 : f32 to vector<2x32xf32>
    %260 = arith.mulf %259, %258 : vector<2x32xf32>
    %261 = math.tanh %260 : vector<2x32xf32>
    %cst_82 = arith.constant 1.000000e+00 : f32
    %262 = vector.broadcast %cst_82 : f32 to vector<2x32xf32>
    %263 = arith.addf %261, %262 : vector<2x32xf32>
    %cst_83 = arith.constant 5.000000e-01 : f32
    %264 = vector.broadcast %cst_83 : f32 to vector<2x32xf32>
    %265 = arith.mulf %264, %263 : vector<2x32xf32>
    %266 = vector.extract_strided_slice %249 {offsets = [0, 64], sizes = [2, 32], strides = [1, 1]} : vector<2x128xf32> to vector<2x32xf32>
    %267 = math.tanh %266 : vector<2x32xf32>
    %268 = vector.extract_strided_slice %249 {offsets = [0, 96], sizes = [2, 32], strides = [1, 1]} : vector<2x128xf32> to vector<2x32xf32>
    %cst_84 = arith.constant 5.000000e-01 : f32
    %269 = vector.broadcast %cst_84 : f32 to vector<2x32xf32>
    %270 = arith.mulf %269, %268 : vector<2x32xf32>
    %271 = math.tanh %270 : vector<2x32xf32>
    %cst_85 = arith.constant 1.000000e+00 : f32
    %272 = vector.broadcast %cst_85 : f32 to vector<2x32xf32>
    %273 = arith.addf %271, %272 : vector<2x32xf32>
    %cst_86 = arith.constant 5.000000e-01 : f32
    %274 = vector.broadcast %cst_86 : f32 to vector<2x32xf32>
    %275 = arith.mulf %274, %273 : vector<2x32xf32>
    %276 = arith.mulf %265, %244 : vector<2x32xf32>
    %277 = arith.mulf %257, %267 : vector<2x32xf32>
    %278 = arith.addf %276, %277 : vector<2x32xf32>
    %279 = math.tanh %278 : vector<2x32xf32>
    %280 = arith.mulf %275, %279 : vector<2x32xf32>
    %281 = tpu.concatenate %42, %76, %110, %144, %178, %212, %246, %280 in 0 : vector<2x32xf32>, vector<2x32xf32>, vector<2x32xf32>, vector<2x32xf32>, vector<2x32xf32>, vector<2x32xf32>, vector<2x32xf32>, vector<2x32xf32> -> vector<16x32xf32>
    %c845 = arith.constant 845 : index
    %c0_87 = arith.constant 0 : index
    %282 = vector.load %arg3[%c845, %c0_87] : memref<864x32xf32, #tpu.memory_space<vmem>>, vector<16x16xf32>
    %cst_88 = arith.constant dense<0.000000e+00> : vector<16x32xf32>
    %283 = tpu.matmul %282, %281, %cst_88 {dimension_numbers = #tpu.dot_dimension_numbers<[1], [0], [0], [1], [0, 0, 1, 1], [], []>} : vector<16x16xf32>, vector<16x32xf32>, vector<16x32xf32> -> vector<16x32xf32>
    %284 = tpu.iota {dimensions = array<i32: 1>} : vector<1x32xi32>
    %c16_i32 = arith.constant 16 : i32
    %285 = vector.broadcast %c16_i32 : i32 to vector<1x32xi32>
    %286 = arith.cmpi slt, %284, %285 : vector<1x32xi32>
    %287 = vector.shape_cast %286 : vector<1x32xi1> to vector<1x32xi1>
    %288 = vector.broadcast %287 : vector<1x32xi1> to vector<16x32xi1>
    %289 = arith.select %288, %281, %283 : vector<16x32xi1>, vector<16x32xf32>
    %c829 = arith.constant 829 : index
    %c0_89 = arith.constant 0 : index
    %290 = vector.load %arg3[%c829, %c0_89] : memref<864x32xf32, #tpu.memory_space<vmem>>, vector<16x16xf32>
    %c384 = arith.constant 384 : index
    %c0_90 = arith.constant 0 : index
    %291 = vector.load %arg3[%c384, %c0_90] : memref<864x32xf32, #tpu.memory_space<vmem>>, vector<1x32xf32>
    %c385 = arith.constant 385 : index
    %c0_91 = arith.constant 0 : index
    %292 = vector.load %arg3[%c385, %c0_91] : memref<864x32xf32, #tpu.memory_space<vmem>>, vector<1x32xf32>
    %cst_92 = arith.constant dense<0.000000e+00> : vector<16xf32>
    %293 = vector.multi_reduction <add>, %289, %cst_92 [1] : vector<16x32xf32> to vector<16xf32>
    %294 = vector.shape_cast %293 : vector<16xf32> to vector<16x1xf32>
    %cst_93 = arith.constant 3.200000e+01 : f32
    %295 = vector.broadcast %cst_93 : f32 to vector<16x1xf32>
    %296 = arith.divf %294, %295 : vector<16x1xf32>
    %297 = vector.broadcast %296 : vector<16x1xf32> to vector<16x32xf32>
    %298 = arith.subf %289, %297 : vector<16x32xf32>
    %299 = arith.mulf %298, %298 : vector<16x32xf32>
    %cst_94 = arith.constant dense<0.000000e+00> : vector<16xf32>
    %300 = vector.multi_reduction <add>, %299, %cst_94 [1] : vector<16x32xf32> to vector<16xf32>
    %301 = vector.shape_cast %300 : vector<16xf32> to vector<16x1xf32>
    %cst_95 = arith.constant 3.200000e+01 : f32
    %302 = vector.broadcast %cst_95 : f32 to vector<16x1xf32>
    %303 = arith.divf %301, %302 : vector<16x1xf32>
    %304 = vector.broadcast %296 : vector<16x1xf32> to vector<16x32xf32>
    %305 = arith.subf %289, %304 : vector<16x32xf32>
    %cst_96 = arith.constant 9.99999974E-6 : f32
    %306 = vector.broadcast %cst_96 : f32 to vector<16x1xf32>
    %307 = arith.addf %303, %306 : vector<16x1xf32>
    %308 = math.rsqrt %307 : vector<16x1xf32>
    %309 = vector.broadcast %308 : vector<16x1xf32> to vector<16x32xf32>
    %310 = arith.mulf %305, %309 : vector<16x32xf32>
    %311 = vector.broadcast %291 : vector<1x32xf32> to vector<16x32xf32>
    %312 = arith.mulf %310, %311 : vector<16x32xf32>
    %313 = vector.broadcast %292 : vector<1x32xf32> to vector<16x32xf32>
    %314 = arith.addf %312, %313 : vector<16x32xf32>
    %315 = tpu.transpose %314, [1, 0] : vector<16x32xf32> -> vector<32x16xf32>
    %cst_97 = arith.constant 0.000000e+00 : f32
    %316 = vector.broadcast %cst_97 : f32 to vector<16x32xf32>
    %c0_98 = arith.constant 0 : index
    %c0_99 = arith.constant 0 : index
    %317 = vector.load %arg3[%c0_98, %c0_99] : memref<864x32xf32, #tpu.memory_space<vmem>>, vector<32x32xf32>
    %c128 = arith.constant 128 : index
    %c0_100 = arith.constant 0 : index
    %318 = vector.load %arg3[%c128, %c0_100] : memref<864x32xf32, #tpu.memory_space<vmem>>, vector<32x32xf32>
    %cst_101 = arith.constant dense<0.000000e+00> : vector<16x32xf32>
    %319 = tpu.matmul %314, %317, %cst_101 {dimension_numbers = #tpu.dot_dimension_numbers<[1], [0], [0], [1], [0, 0, 1, 1], [], []>} : vector<16x32xf32>, vector<32x32xf32>, vector<16x32xf32> -> vector<16x32xf32>
    %cst_102 = arith.constant dense<0.000000e+00> : vector<16x16xf32>
    %320 = tpu.matmul %319, %315, %cst_102 {dimension_numbers = #tpu.dot_dimension_numbers<[1], [0], [0], [1], [0, 0, 1, 1], [], []>} : vector<16x32xf32>, vector<32x16xf32>, vector<16x16xf32> -> vector<16x16xf32>
    %321 = arith.addf %320, %290 : vector<16x16xf32>
    %cst_103 = arith.constant dense<0xFF800000> : vector<16xf32>
    %322 = vector.multi_reduction <maximumf>, %321, %cst_103 [1] : vector<16x16xf32> to vector<16xf32>
    %323 = vector.shape_cast %322 : vector<16xf32> to vector<16x1xf32>
    %324 = vector.broadcast %323 : vector<16x1xf32> to vector<16x16xf32>
    %325 = arith.subf %321, %324 : vector<16x16xf32>
    %326 = math.exp %325 : vector<16x16xf32>
    %cst_104 = arith.constant dense<0.000000e+00> : vector<16xf32>
    %327 = vector.multi_reduction <add>, %326, %cst_104 [1] : vector<16x16xf32> to vector<16xf32>
    %328 = vector.shape_cast %327 : vector<16xf32> to vector<16x1xf32>
    %329 = tpu.reciprocal %328 {approx = true} : vector<16x1xf32> -> vector<16x1xf32>
    %330 = vector.broadcast %329 : vector<16x1xf32> to vector<16x16xf32>
    %331 = arith.mulf %326, %330 : vector<16x16xf32>
    %cst_105 = arith.constant dense<0.000000e+00> : vector<16x32xf32>
    %332 = tpu.matmul %314, %318, %cst_105 {dimension_numbers = #tpu.dot_dimension_numbers<[1], [0], [0], [1], [0, 0, 1, 1], [], []>} : vector<16x32xf32>, vector<32x32xf32>, vector<16x32xf32> -> vector<16x32xf32>
    %cst_106 = arith.constant dense<0.000000e+00> : vector<16x32xf32>
    %333 = tpu.matmul %331, %332, %cst_106 {dimension_numbers = #tpu.dot_dimension_numbers<[1], [0], [0], [1], [0, 0, 1, 1], [], []>} : vector<16x16xf32>, vector<16x32xf32>, vector<16x32xf32> -> vector<16x32xf32>
    %334 = arith.addf %316, %333 : vector<16x32xf32>
    %c32_107 = arith.constant 32 : index
    %c0_108 = arith.constant 0 : index
    %335 = vector.load %arg3[%c32_107, %c0_108] : memref<864x32xf32, #tpu.memory_space<vmem>>, vector<32x32xf32>
    %c160 = arith.constant 160 : index
    %c0_109 = arith.constant 0 : index
    %336 = vector.load %arg3[%c160, %c0_109] : memref<864x32xf32, #tpu.memory_space<vmem>>, vector<32x32xf32>
    %cst_110 = arith.constant dense<0.000000e+00> : vector<16x32xf32>
    %337 = tpu.matmul %314, %335, %cst_110 {dimension_numbers = #tpu.dot_dimension_numbers<[1], [0], [0], [1], [0, 0, 1, 1], [], []>} : vector<16x32xf32>, vector<32x32xf32>, vector<16x32xf32> -> vector<16x32xf32>
    %cst_111 = arith.constant dense<0.000000e+00> : vector<16x16xf32>
    %338 = tpu.matmul %337, %315, %cst_111 {dimension_numbers = #tpu.dot_dimension_numbers<[1], [0], [0], [1], [0, 0, 1, 1], [], []>} : vector<16x32xf32>, vector<32x16xf32>, vector<16x16xf32> -> vector<16x16xf32>
    %339 = arith.addf %338, %290 : vector<16x16xf32>
    %cst_112 = arith.constant dense<0xFF800000> : vector<16xf32>
    %340 = vector.multi_reduction <maximumf>, %339, %cst_112 [1] : vector<16x16xf32> to vector<16xf32>
    %341 = vector.shape_cast %340 : vector<16xf32> to vector<16x1xf32>
    %342 = vector.broadcast %341 : vector<16x1xf32> to vector<16x16xf32>
    %343 = arith.subf %339, %342 : vector<16x16xf32>
    %344 = math.exp %343 : vector<16x16xf32>
    %cst_113 = arith.constant dense<0.000000e+00> : vector<16xf32>
    %345 = vector.multi_reduction <add>, %344, %cst_113 [1] : vector<16x16xf32> to vector<16xf32>
    %346 = vector.shape_cast %345 : vector<16xf32> to vector<16x1xf32>
    %347 = tpu.reciprocal %346 {approx = true} : vector<16x1xf32> -> vector<16x1xf32>
    %348 = vector.broadcast %347 : vector<16x1xf32> to vector<16x16xf32>
    %349 = arith.mulf %344, %348 : vector<16x16xf32>
    %cst_114 = arith.constant dense<0.000000e+00> : vector<16x32xf32>
    %350 = tpu.matmul %314, %336, %cst_114 {dimension_numbers = #tpu.dot_dimension_numbers<[1], [0], [0], [1], [0, 0, 1, 1], [], []>} : vector<16x32xf32>, vector<32x32xf32>, vector<16x32xf32> -> vector<16x32xf32>
    %cst_115 = arith.constant dense<0.000000e+00> : vector<16x32xf32>
    %351 = tpu.matmul %349, %350, %cst_115 {dimension_numbers = #tpu.dot_dimension_numbers<[1], [0], [0], [1], [0, 0, 1, 1], [], []>} : vector<16x16xf32>, vector<16x32xf32>, vector<16x32xf32> -> vector<16x32xf32>
    %352 = arith.addf %334, %351 : vector<16x32xf32>
    %c64_116 = arith.constant 64 : index
    %c0_117 = arith.constant 0 : index
    %353 = vector.load %arg3[%c64_116, %c0_117] : memref<864x32xf32, #tpu.memory_space<vmem>>, vector<32x32xf32>
    %c192 = arith.constant 192 : index
    %c0_118 = arith.constant 0 : index
    %354 = vector.load %arg3[%c192, %c0_118] : memref<864x32xf32, #tpu.memory_space<vmem>>, vector<32x32xf32>
    %cst_119 = arith.constant dense<0.000000e+00> : vector<16x32xf32>
    %355 = tpu.matmul %314, %353, %cst_119 {dimension_numbers = #tpu.dot_dimension_numbers<[1], [0], [0], [1], [0, 0, 1, 1], [], []>} : vector<16x32xf32>, vector<32x32xf32>, vector<16x32xf32> -> vector<16x32xf32>
    %cst_120 = arith.constant dense<0.000000e+00> : vector<16x16xf32>
    %356 = tpu.matmul %355, %315, %cst_120 {dimension_numbers = #tpu.dot_dimension_numbers<[1], [0], [0], [1], [0, 0, 1, 1], [], []>} : vector<16x32xf32>, vector<32x16xf32>, vector<16x16xf32> -> vector<16x16xf32>
    %357 = arith.addf %356, %290 : vector<16x16xf32>
    %cst_121 = arith.constant dense<0xFF800000> : vector<16xf32>
    %358 = vector.multi_reduction <maximumf>, %357, %cst_121 [1] : vector<16x16xf32> to vector<16xf32>
    %359 = vector.shape_cast %358 : vector<16xf32> to vector<16x1xf32>
    %360 = vector.broadcast %359 : vector<16x1xf32> to vector<16x16xf32>
    %361 = arith.subf %357, %360 : vector<16x16xf32>
    %362 = math.exp %361 : vector<16x16xf32>
    %cst_122 = arith.constant dense<0.000000e+00> : vector<16xf32>
    %363 = vector.multi_reduction <add>, %362, %cst_122 [1] : vector<16x16xf32> to vector<16xf32>
    %364 = vector.shape_cast %363 : vector<16xf32> to vector<16x1xf32>
    %365 = tpu.reciprocal %364 {approx = true} : vector<16x1xf32> -> vector<16x1xf32>
    %366 = vector.broadcast %365 : vector<16x1xf32> to vector<16x16xf32>
    %367 = arith.mulf %362, %366 : vector<16x16xf32>
    %cst_123 = arith.constant dense<0.000000e+00> : vector<16x32xf32>
    %368 = tpu.matmul %314, %354, %cst_123 {dimension_numbers = #tpu.dot_dimension_numbers<[1], [0], [0], [1], [0, 0, 1, 1], [], []>} : vector<16x32xf32>, vector<32x32xf32>, vector<16x32xf32> -> vector<16x32xf32>
    %cst_124 = arith.constant dense<0.000000e+00> : vector<16x32xf32>
    %369 = tpu.matmul %367, %368, %cst_124 {dimension_numbers = #tpu.dot_dimension_numbers<[1], [0], [0], [1], [0, 0, 1, 1], [], []>} : vector<16x16xf32>, vector<16x32xf32>, vector<16x32xf32> -> vector<16x32xf32>
    %370 = arith.addf %352, %369 : vector<16x32xf32>
    %c96 = arith.constant 96 : index
    %c0_125 = arith.constant 0 : index
    %371 = vector.load %arg3[%c96, %c0_125] : memref<864x32xf32, #tpu.memory_space<vmem>>, vector<32x32xf32>
    %c224 = arith.constant 224 : index
    %c0_126 = arith.constant 0 : index
    %372 = vector.load %arg3[%c224, %c0_126] : memref<864x32xf32, #tpu.memory_space<vmem>>, vector<32x32xf32>
    %cst_127 = arith.constant dense<0.000000e+00> : vector<16x32xf32>
    %373 = tpu.matmul %314, %371, %cst_127 {dimension_numbers = #tpu.dot_dimension_numbers<[1], [0], [0], [1], [0, 0, 1, 1], [], []>} : vector<16x32xf32>, vector<32x32xf32>, vector<16x32xf32> -> vector<16x32xf32>
    %cst_128 = arith.constant dense<0.000000e+00> : vector<16x16xf32>
    %374 = tpu.matmul %373, %315, %cst_128 {dimension_numbers = #tpu.dot_dimension_numbers<[1], [0], [0], [1], [0, 0, 1, 1], [], []>} : vector<16x32xf32>, vector<32x16xf32>, vector<16x16xf32> -> vector<16x16xf32>
    %375 = arith.addf %374, %290 : vector<16x16xf32>
    %cst_129 = arith.constant dense<0xFF800000> : vector<16xf32>
    %376 = vector.multi_reduction <maximumf>, %375, %cst_129 [1] : vector<16x16xf32> to vector<16xf32>
    %377 = vector.shape_cast %376 : vector<16xf32> to vector<16x1xf32>
    %378 = vector.broadcast %377 : vector<16x1xf32> to vector<16x16xf32>
    %379 = arith.subf %375, %378 : vector<16x16xf32>
    %380 = math.exp %379 : vector<16x16xf32>
    %cst_130 = arith.constant dense<0.000000e+00> : vector<16xf32>
    %381 = vector.multi_reduction <add>, %380, %cst_130 [1] : vector<16x16xf32> to vector<16xf32>
    %382 = vector.shape_cast %381 : vector<16xf32> to vector<16x1xf32>
    %383 = tpu.reciprocal %382 {approx = true} : vector<16x1xf32> -> vector<16x1xf32>
    %384 = vector.broadcast %383 : vector<16x1xf32> to vector<16x16xf32>
    %385 = arith.mulf %380, %384 : vector<16x16xf32>
    %cst_131 = arith.constant dense<0.000000e+00> : vector<16x32xf32>
    %386 = tpu.matmul %314, %372, %cst_131 {dimension_numbers = #tpu.dot_dimension_numbers<[1], [0], [0], [1], [0, 0, 1, 1], [], []>} : vector<16x32xf32>, vector<32x32xf32>, vector<16x32xf32> -> vector<16x32xf32>
    %cst_132 = arith.constant dense<0.000000e+00> : vector<16x32xf32>
    %387 = tpu.matmul %385, %386, %cst_132 {dimension_numbers = #tpu.dot_dimension_numbers<[1], [0], [0], [1], [0, 0, 1, 1], [], []>} : vector<16x16xf32>, vector<16x32xf32>, vector<16x32xf32> -> vector<16x32xf32>
    %388 = arith.addf %370, %387 : vector<16x32xf32>
    %389 = arith.addf %314, %388 : vector<16x32xf32>
    %c386 = arith.constant 386 : index
    %c0_133 = arith.constant 0 : index
    %390 = vector.load %arg3[%c386, %c0_133] : memref<864x32xf32, #tpu.memory_space<vmem>>, vector<1x32xf32>
    %c387 = arith.constant 387 : index
    %c0_134 = arith.constant 0 : index
    %391 = vector.load %arg3[%c387, %c0_134] : memref<864x32xf32, #tpu.memory_space<vmem>>, vector<1x32xf32>
    %cst_135 = arith.constant dense<0.000000e+00> : vector<16xf32>
    %392 = vector.multi_reduction <add>, %389, %cst_135 [1] : vector<16x32xf32> to vector<16xf32>
    %393 = vector.shape_cast %392 : vector<16xf32> to vector<16x1xf32>
    %cst_136 = arith.constant 3.200000e+01 : f32
    %394 = vector.broadcast %cst_136 : f32 to vector<16x1xf32>
    %395 = arith.divf %393, %394 : vector<16x1xf32>
    %396 = vector.broadcast %395 : vector<16x1xf32> to vector<16x32xf32>
    %397 = arith.subf %389, %396 : vector<16x32xf32>
    %398 = arith.mulf %397, %397 : vector<16x32xf32>
    %cst_137 = arith.constant dense<0.000000e+00> : vector<16xf32>
    %399 = vector.multi_reduction <add>, %398, %cst_137 [1] : vector<16x32xf32> to vector<16xf32>
    %400 = vector.shape_cast %399 : vector<16xf32> to vector<16x1xf32>
    %cst_138 = arith.constant 3.200000e+01 : f32
    %401 = vector.broadcast %cst_138 : f32 to vector<16x1xf32>
    %402 = arith.divf %400, %401 : vector<16x1xf32>
    %403 = vector.broadcast %395 : vector<16x1xf32> to vector<16x32xf32>
    %404 = arith.subf %389, %403 : vector<16x32xf32>
    %cst_139 = arith.constant 9.99999974E-6 : f32
    %405 = vector.broadcast %cst_139 : f32 to vector<16x1xf32>
    %406 = arith.addf %402, %405 : vector<16x1xf32>
    %407 = math.rsqrt %406 : vector<16x1xf32>
    %408 = vector.broadcast %407 : vector<16x1xf32> to vector<16x32xf32>
    %409 = arith.mulf %404, %408 : vector<16x32xf32>
    %410 = vector.broadcast %390 : vector<1x32xf32> to vector<16x32xf32>
    %411 = arith.mulf %409, %410 : vector<16x32xf32>
    %412 = vector.broadcast %391 : vector<1x32xf32> to vector<16x32xf32>
    %413 = arith.addf %411, %412 : vector<16x32xf32>
    %c65 = arith.constant 65 : index
    %c0_140 = arith.constant 0 : index
    %414 = vector.load %arg2[%c65, %c0_140] : memref<136x128xf32, #tpu.memory_space<vmem>>, vector<32x128xf32>
    %cst_141 = arith.constant dense<0.000000e+00> : vector<16x128xf32>
    %415 = tpu.matmul %413, %414, %cst_141 {dimension_numbers = #tpu.dot_dimension_numbers<[1], [0], [0], [1], [0, 0, 1, 1], [], []>} : vector<16x32xf32>, vector<32x128xf32>, vector<16x128xf32> -> vector<16x128xf32>
    %c97 = arith.constant 97 : index
    %c0_142 = arith.constant 0 : index
    %416 = vector.load %arg2[%c97, %c0_142] : memref<136x128xf32, #tpu.memory_space<vmem>>, vector<1x128xf32>
    %417 = vector.broadcast %416 : vector<1x128xf32> to vector<16x128xf32>
    %418 = arith.addf %415, %417 : vector<16x128xf32>
    %cst_143 = arith.constant 0.000000e+00 : f32
    %419 = vector.broadcast %cst_143 : f32 to vector<16x128xf32>
    %420 = arith.maximumf %418, %419 : vector<16x128xf32>
    %c256 = arith.constant 256 : index
    %c0_144 = arith.constant 0 : index
    %421 = vector.load %arg3[%c256, %c0_144] : memref<864x32xf32, #tpu.memory_space<vmem>>, vector<128x32xf32>
    %cst_145 = arith.constant dense<0.000000e+00> : vector<16x32xf32>
    %422 = tpu.matmul %420, %421, %cst_145 {dimension_numbers = #tpu.dot_dimension_numbers<[1], [0], [0], [1], [0, 0, 1, 1], [], []>} : vector<16x128xf32>, vector<128x32xf32>, vector<16x32xf32> -> vector<16x32xf32>
    %423 = arith.addf %413, %422 : vector<16x32xf32>
    %c388 = arith.constant 388 : index
    %c0_146 = arith.constant 0 : index
    %424 = vector.load %arg3[%c388, %c0_146] : memref<864x32xf32, #tpu.memory_space<vmem>>, vector<1x32xf32>
    %425 = vector.broadcast %424 : vector<1x32xf32> to vector<16x32xf32>
    %426 = arith.addf %423, %425 : vector<16x32xf32>
    %c773 = arith.constant 773 : index
    %c0_147 = arith.constant 0 : index
    %427 = vector.load %arg3[%c773, %c0_147] : memref<864x32xf32, #tpu.memory_space<vmem>>, vector<1x32xf32>
    %c774 = arith.constant 774 : index
    %c0_148 = arith.constant 0 : index
    %428 = vector.load %arg3[%c774, %c0_148] : memref<864x32xf32, #tpu.memory_space<vmem>>, vector<1x32xf32>
    %cst_149 = arith.constant dense<0.000000e+00> : vector<16xf32>
    %429 = vector.multi_reduction <add>, %426, %cst_149 [1] : vector<16x32xf32> to vector<16xf32>
    %430 = vector.shape_cast %429 : vector<16xf32> to vector<16x1xf32>
    %cst_150 = arith.constant 3.200000e+01 : f32
    %431 = vector.broadcast %cst_150 : f32 to vector<16x1xf32>
    %432 = arith.divf %430, %431 : vector<16x1xf32>
    %433 = vector.broadcast %432 : vector<16x1xf32> to vector<16x32xf32>
    %434 = arith.subf %426, %433 : vector<16x32xf32>
    %435 = arith.mulf %434, %434 : vector<16x32xf32>
    %cst_151 = arith.constant dense<0.000000e+00> : vector<16xf32>
    %436 = vector.multi_reduction <add>, %435, %cst_151 [1] : vector<16x32xf32> to vector<16xf32>
    %437 = vector.shape_cast %436 : vector<16xf32> to vector<16x1xf32>
    %cst_152 = arith.constant 3.200000e+01 : f32
    %438 = vector.broadcast %cst_152 : f32 to vector<16x1xf32>
    %439 = arith.divf %437, %438 : vector<16x1xf32>
    %440 = vector.broadcast %432 : vector<16x1xf32> to vector<16x32xf32>
    %441 = arith.subf %426, %440 : vector<16x32xf32>
    %cst_153 = arith.constant 9.99999974E-6 : f32
    %442 = vector.broadcast %cst_153 : f32 to vector<16x1xf32>
    %443 = arith.addf %439, %442 : vector<16x1xf32>
    %444 = math.rsqrt %443 : vector<16x1xf32>
    %445 = vector.broadcast %444 : vector<16x1xf32> to vector<16x32xf32>
    %446 = arith.mulf %441, %445 : vector<16x32xf32>
    %447 = vector.broadcast %427 : vector<1x32xf32> to vector<16x32xf32>
    %448 = arith.mulf %446, %447 : vector<16x32xf32>
    %449 = vector.broadcast %428 : vector<1x32xf32> to vector<16x32xf32>
    %450 = arith.addf %448, %449 : vector<16x32xf32>
    %451 = tpu.transpose %450, [1, 0] : vector<16x32xf32> -> vector<32x16xf32>
    %cst_154 = arith.constant 0.000000e+00 : f32
    %452 = vector.broadcast %cst_154 : f32 to vector<16x32xf32>
    %c389 = arith.constant 389 : index
    %c0_155 = arith.constant 0 : index
    %453 = vector.load %arg3[%c389, %c0_155] : memref<864x32xf32, #tpu.memory_space<vmem>>, vector<32x32xf32>
    %c517 = arith.constant 517 : index
    %c0_156 = arith.constant 0 : index
    %454 = vector.load %arg3[%c517, %c0_156] : memref<864x32xf32, #tpu.memory_space<vmem>>, vector<32x32xf32>
    %cst_157 = arith.constant dense<0.000000e+00> : vector<16x32xf32>
    %455 = tpu.matmul %450, %453, %cst_157 {dimension_numbers = #tpu.dot_dimension_numbers<[1], [0], [0], [1], [0, 0, 1, 1], [], []>} : vector<16x32xf32>, vector<32x32xf32>, vector<16x32xf32> -> vector<16x32xf32>
    %cst_158 = arith.constant dense<0.000000e+00> : vector<16x16xf32>
    %456 = tpu.matmul %455, %451, %cst_158 {dimension_numbers = #tpu.dot_dimension_numbers<[1], [0], [0], [1], [0, 0, 1, 1], [], []>} : vector<16x32xf32>, vector<32x16xf32>, vector<16x16xf32> -> vector<16x16xf32>
    %457 = arith.addf %456, %290 : vector<16x16xf32>
    %cst_159 = arith.constant dense<0xFF800000> : vector<16xf32>
    %458 = vector.multi_reduction <maximumf>, %457, %cst_159 [1] : vector<16x16xf32> to vector<16xf32>
    %459 = vector.shape_cast %458 : vector<16xf32> to vector<16x1xf32>
    %460 = vector.broadcast %459 : vector<16x1xf32> to vector<16x16xf32>
    %461 = arith.subf %457, %460 : vector<16x16xf32>
    %462 = math.exp %461 : vector<16x16xf32>
    %cst_160 = arith.constant dense<0.000000e+00> : vector<16xf32>
    %463 = vector.multi_reduction <add>, %462, %cst_160 [1] : vector<16x16xf32> to vector<16xf32>
    %464 = vector.shape_cast %463 : vector<16xf32> to vector<16x1xf32>
    %465 = tpu.reciprocal %464 {approx = true} : vector<16x1xf32> -> vector<16x1xf32>
    %466 = vector.broadcast %465 : vector<16x1xf32> to vector<16x16xf32>
    %467 = arith.mulf %462, %466 : vector<16x16xf32>
    %cst_161 = arith.constant dense<0.000000e+00> : vector<16x32xf32>
    %468 = tpu.matmul %450, %454, %cst_161 {dimension_numbers = #tpu.dot_dimension_numbers<[1], [0], [0], [1], [0, 0, 1, 1], [], []>} : vector<16x32xf32>, vector<32x32xf32>, vector<16x32xf32> -> vector<16x32xf32>
    %cst_162 = arith.constant dense<0.000000e+00> : vector<16x32xf32>
    %469 = tpu.matmul %467, %468, %cst_162 {dimension_numbers = #tpu.dot_dimension_numbers<[1], [0], [0], [1], [0, 0, 1, 1], [], []>} : vector<16x16xf32>, vector<16x32xf32>, vector<16x32xf32> -> vector<16x32xf32>
    %470 = arith.addf %452, %469 : vector<16x32xf32>
    %c421 = arith.constant 421 : index
    %c0_163 = arith.constant 0 : index
    %471 = vector.load %arg3[%c421, %c0_163] : memref<864x32xf32, #tpu.memory_space<vmem>>, vector<32x32xf32>
    %c549 = arith.constant 549 : index
    %c0_164 = arith.constant 0 : index
    %472 = vector.load %arg3[%c549, %c0_164] : memref<864x32xf32, #tpu.memory_space<vmem>>, vector<32x32xf32>
    %cst_165 = arith.constant dense<0.000000e+00> : vector<16x32xf32>
    %473 = tpu.matmul %450, %471, %cst_165 {dimension_numbers = #tpu.dot_dimension_numbers<[1], [0], [0], [1], [0, 0, 1, 1], [], []>} : vector<16x32xf32>, vector<32x32xf32>, vector<16x32xf32> -> vector<16x32xf32>
    %cst_166 = arith.constant dense<0.000000e+00> : vector<16x16xf32>
    %474 = tpu.matmul %473, %451, %cst_166 {dimension_numbers = #tpu.dot_dimension_numbers<[1], [0], [0], [1], [0, 0, 1, 1], [], []>} : vector<16x32xf32>, vector<32x16xf32>, vector<16x16xf32> -> vector<16x16xf32>
    %475 = arith.addf %474, %290 : vector<16x16xf32>
    %cst_167 = arith.constant dense<0xFF800000> : vector<16xf32>
    %476 = vector.multi_reduction <maximumf>, %475, %cst_167 [1] : vector<16x16xf32> to vector<16xf32>
    %477 = vector.shape_cast %476 : vector<16xf32> to vector<16x1xf32>
    %478 = vector.broadcast %477 : vector<16x1xf32> to vector<16x16xf32>
    %479 = arith.subf %475, %478 : vector<16x16xf32>
    %480 = math.exp %479 : vector<16x16xf32>
    %cst_168 = arith.constant dense<0.000000e+00> : vector<16xf32>
    %481 = vector.multi_reduction <add>, %480, %cst_168 [1] : vector<16x16xf32> to vector<16xf32>
    %482 = vector.shape_cast %481 : vector<16xf32> to vector<16x1xf32>
    %483 = tpu.reciprocal %482 {approx = true} : vector<16x1xf32> -> vector<16x1xf32>
    %484 = vector.broadcast %483 : vector<16x1xf32> to vector<16x16xf32>
    %485 = arith.mulf %480, %484 : vector<16x16xf32>
    %cst_169 = arith.constant dense<0.000000e+00> : vector<16x32xf32>
    %486 = tpu.matmul %450, %472, %cst_169 {dimension_numbers = #tpu.dot_dimension_numbers<[1], [0], [0], [1], [0, 0, 1, 1], [], []>} : vector<16x32xf32>, vector<32x32xf32>, vector<16x32xf32> -> vector<16x32xf32>
    %cst_170 = arith.constant dense<0.000000e+00> : vector<16x32xf32>
    %487 = tpu.matmul %485, %486, %cst_170 {dimension_numbers = #tpu.dot_dimension_numbers<[1], [0], [0], [1], [0, 0, 1, 1], [], []>} : vector<16x16xf32>, vector<16x32xf32>, vector<16x32xf32> -> vector<16x32xf32>
    %488 = arith.addf %470, %487 : vector<16x32xf32>
    %c453 = arith.constant 453 : index
    %c0_171 = arith.constant 0 : index
    %489 = vector.load %arg3[%c453, %c0_171] : memref<864x32xf32, #tpu.memory_space<vmem>>, vector<32x32xf32>
    %c581 = arith.constant 581 : index
    %c0_172 = arith.constant 0 : index
    %490 = vector.load %arg3[%c581, %c0_172] : memref<864x32xf32, #tpu.memory_space<vmem>>, vector<32x32xf32>
    %cst_173 = arith.constant dense<0.000000e+00> : vector<16x32xf32>
    %491 = tpu.matmul %450, %489, %cst_173 {dimension_numbers = #tpu.dot_dimension_numbers<[1], [0], [0], [1], [0, 0, 1, 1], [], []>} : vector<16x32xf32>, vector<32x32xf32>, vector<16x32xf32> -> vector<16x32xf32>
    %cst_174 = arith.constant dense<0.000000e+00> : vector<16x16xf32>
    %492 = tpu.matmul %491, %451, %cst_174 {dimension_numbers = #tpu.dot_dimension_numbers<[1], [0], [0], [1], [0, 0, 1, 1], [], []>} : vector<16x32xf32>, vector<32x16xf32>, vector<16x16xf32> -> vector<16x16xf32>
    %493 = arith.addf %492, %290 : vector<16x16xf32>
    %cst_175 = arith.constant dense<0xFF800000> : vector<16xf32>
    %494 = vector.multi_reduction <maximumf>, %493, %cst_175 [1] : vector<16x16xf32> to vector<16xf32>
    %495 = vector.shape_cast %494 : vector<16xf32> to vector<16x1xf32>
    %496 = vector.broadcast %495 : vector<16x1xf32> to vector<16x16xf32>
    %497 = arith.subf %493, %496 : vector<16x16xf32>
    %498 = math.exp %497 : vector<16x16xf32>
    %cst_176 = arith.constant dense<0.000000e+00> : vector<16xf32>
    %499 = vector.multi_reduction <add>, %498, %cst_176 [1] : vector<16x16xf32> to vector<16xf32>
    %500 = vector.shape_cast %499 : vector<16xf32> to vector<16x1xf32>
    %501 = tpu.reciprocal %500 {approx = true} : vector<16x1xf32> -> vector<16x1xf32>
    %502 = vector.broadcast %501 : vector<16x1xf32> to vector<16x16xf32>
    %503 = arith.mulf %498, %502 : vector<16x16xf32>
    %cst_177 = arith.constant dense<0.000000e+00> : vector<16x32xf32>
    %504 = tpu.matmul %450, %490, %cst_177 {dimension_numbers = #tpu.dot_dimension_numbers<[1], [0], [0], [1], [0, 0, 1, 1], [], []>} : vector<16x32xf32>, vector<32x32xf32>, vector<16x32xf32> -> vector<16x32xf32>
    %cst_178 = arith.constant dense<0.000000e+00> : vector<16x32xf32>
    %505 = tpu.matmul %503, %504, %cst_178 {dimension_numbers = #tpu.dot_dimension_numbers<[1], [0], [0], [1], [0, 0, 1, 1], [], []>} : vector<16x16xf32>, vector<16x32xf32>, vector<16x32xf32> -> vector<16x32xf32>
    %506 = arith.addf %488, %505 : vector<16x32xf32>
    %c485 = arith.constant 485 : index
    %c0_179 = arith.constant 0 : index
    %507 = vector.load %arg3[%c485, %c0_179] : memref<864x32xf32, #tpu.memory_space<vmem>>, vector<32x32xf32>
    %c613 = arith.constant 613 : index
    %c0_180 = arith.constant 0 : index
    %508 = vector.load %arg3[%c613, %c0_180] : memref<864x32xf32, #tpu.memory_space<vmem>>, vector<32x32xf32>
    %cst_181 = arith.constant dense<0.000000e+00> : vector<16x32xf32>
    %509 = tpu.matmul %450, %507, %cst_181 {dimension_numbers = #tpu.dot_dimension_numbers<[1], [0], [0], [1], [0, 0, 1, 1], [], []>} : vector<16x32xf32>, vector<32x32xf32>, vector<16x32xf32> -> vector<16x32xf32>
    %cst_182 = arith.constant dense<0.000000e+00> : vector<16x16xf32>
    %510 = tpu.matmul %509, %451, %cst_182 {dimension_numbers = #tpu.dot_dimension_numbers<[1], [0], [0], [1], [0, 0, 1, 1], [], []>} : vector<16x32xf32>, vector<32x16xf32>, vector<16x16xf32> -> vector<16x16xf32>
    %511 = arith.addf %510, %290 : vector<16x16xf32>
    %cst_183 = arith.constant dense<0xFF800000> : vector<16xf32>
    %512 = vector.multi_reduction <maximumf>, %511, %cst_183 [1] : vector<16x16xf32> to vector<16xf32>
    %513 = vector.shape_cast %512 : vector<16xf32> to vector<16x1xf32>
    %514 = vector.broadcast %513 : vector<16x1xf32> to vector<16x16xf32>
    %515 = arith.subf %511, %514 : vector<16x16xf32>
    %516 = math.exp %515 : vector<16x16xf32>
    %cst_184 = arith.constant dense<0.000000e+00> : vector<16xf32>
    %517 = vector.multi_reduction <add>, %516, %cst_184 [1] : vector<16x16xf32> to vector<16xf32>
    %518 = vector.shape_cast %517 : vector<16xf32> to vector<16x1xf32>
    %519 = tpu.reciprocal %518 {approx = true} : vector<16x1xf32> -> vector<16x1xf32>
    %520 = vector.broadcast %519 : vector<16x1xf32> to vector<16x16xf32>
    %521 = arith.mulf %516, %520 : vector<16x16xf32>
    %cst_185 = arith.constant dense<0.000000e+00> : vector<16x32xf32>
    %522 = tpu.matmul %450, %508, %cst_185 {dimension_numbers = #tpu.dot_dimension_numbers<[1], [0], [0], [1], [0, 0, 1, 1], [], []>} : vector<16x32xf32>, vector<32x32xf32>, vector<16x32xf32> -> vector<16x32xf32>
    %cst_186 = arith.constant dense<0.000000e+00> : vector<16x32xf32>
    %523 = tpu.matmul %521, %522, %cst_186 {dimension_numbers = #tpu.dot_dimension_numbers<[1], [0], [0], [1], [0, 0, 1, 1], [], []>} : vector<16x16xf32>, vector<16x32xf32>, vector<16x32xf32> -> vector<16x32xf32>
    %524 = arith.addf %506, %523 : vector<16x32xf32>
    %525 = arith.addf %450, %524 : vector<16x32xf32>
    %c775 = arith.constant 775 : index
    %c0_187 = arith.constant 0 : index
    %526 = vector.load %arg3[%c775, %c0_187] : memref<864x32xf32, #tpu.memory_space<vmem>>, vector<1x32xf32>
    %c776 = arith.constant 776 : index
    %c0_188 = arith.constant 0 : index
    %527 = vector.load %arg3[%c776, %c0_188] : memref<864x32xf32, #tpu.memory_space<vmem>>, vector<1x32xf32>
    %cst_189 = arith.constant dense<0.000000e+00> : vector<16xf32>
    %528 = vector.multi_reduction <add>, %525, %cst_189 [1] : vector<16x32xf32> to vector<16xf32>
    %529 = vector.shape_cast %528 : vector<16xf32> to vector<16x1xf32>
    %cst_190 = arith.constant 3.200000e+01 : f32
    %530 = vector.broadcast %cst_190 : f32 to vector<16x1xf32>
    %531 = arith.divf %529, %530 : vector<16x1xf32>
    %532 = vector.broadcast %531 : vector<16x1xf32> to vector<16x32xf32>
    %533 = arith.subf %525, %532 : vector<16x32xf32>
    %534 = arith.mulf %533, %533 : vector<16x32xf32>
    %cst_191 = arith.constant dense<0.000000e+00> : vector<16xf32>
    %535 = vector.multi_reduction <add>, %534, %cst_191 [1] : vector<16x32xf32> to vector<16xf32>
    %536 = vector.shape_cast %535 : vector<16xf32> to vector<16x1xf32>
    %cst_192 = arith.constant 3.200000e+01 : f32
    %537 = vector.broadcast %cst_192 : f32 to vector<16x1xf32>
    %538 = arith.divf %536, %537 : vector<16x1xf32>
    %539 = vector.broadcast %531 : vector<16x1xf32> to vector<16x32xf32>
    %540 = arith.subf %525, %539 : vector<16x32xf32>
    %cst_193 = arith.constant 9.99999974E-6 : f32
    %541 = vector.broadcast %cst_193 : f32 to vector<16x1xf32>
    %542 = arith.addf %538, %541 : vector<16x1xf32>
    %543 = math.rsqrt %542 : vector<16x1xf32>
    %544 = vector.broadcast %543 : vector<16x1xf32> to vector<16x32xf32>
    %545 = arith.mulf %540, %544 : vector<16x32xf32>
    %546 = vector.broadcast %526 : vector<1x32xf32> to vector<16x32xf32>
    %547 = arith.mulf %545, %546 : vector<16x32xf32>
    %548 = vector.broadcast %527 : vector<1x32xf32> to vector<16x32xf32>
    %549 = arith.addf %547, %548 : vector<16x32xf32>
    %c98 = arith.constant 98 : index
    %c0_194 = arith.constant 0 : index
    %550 = vector.load %arg2[%c98, %c0_194] : memref<136x128xf32, #tpu.memory_space<vmem>>, vector<32x128xf32>
    %cst_195 = arith.constant dense<0.000000e+00> : vector<16x128xf32>
    %551 = tpu.matmul %549, %550, %cst_195 {dimension_numbers = #tpu.dot_dimension_numbers<[1], [0], [0], [1], [0, 0, 1, 1], [], []>} : vector<16x32xf32>, vector<32x128xf32>, vector<16x128xf32> -> vector<16x128xf32>
    %c130 = arith.constant 130 : index
    %c0_196 = arith.constant 0 : index
    %552 = vector.load %arg2[%c130, %c0_196] : memref<136x128xf32, #tpu.memory_space<vmem>>, vector<1x128xf32>
    %553 = vector.broadcast %552 : vector<1x128xf32> to vector<16x128xf32>
    %554 = arith.addf %551, %553 : vector<16x128xf32>
    %cst_197 = arith.constant 0.000000e+00 : f32
    %555 = vector.broadcast %cst_197 : f32 to vector<16x128xf32>
    %556 = arith.maximumf %554, %555 : vector<16x128xf32>
    %c645 = arith.constant 645 : index
    %c0_198 = arith.constant 0 : index
    %557 = vector.load %arg3[%c645, %c0_198] : memref<864x32xf32, #tpu.memory_space<vmem>>, vector<128x32xf32>
    %cst_199 = arith.constant dense<0.000000e+00> : vector<16x32xf32>
    %558 = tpu.matmul %556, %557, %cst_199 {dimension_numbers = #tpu.dot_dimension_numbers<[1], [0], [0], [1], [0, 0, 1, 1], [], []>} : vector<16x128xf32>, vector<128x32xf32>, vector<16x32xf32> -> vector<16x32xf32>
    %559 = arith.addf %549, %558 : vector<16x32xf32>
    %c777 = arith.constant 777 : index
    %c0_200 = arith.constant 0 : index
    %560 = vector.load %arg3[%c777, %c0_200] : memref<864x32xf32, #tpu.memory_space<vmem>>, vector<1x32xf32>
    %561 = vector.broadcast %560 : vector<1x32xf32> to vector<16x32xf32>
    %562 = arith.addf %559, %561 : vector<16x32xf32>
    %c778 = arith.constant 778 : index
    %c0_201 = arith.constant 0 : index
    %563 = vector.load %arg3[%c778, %c0_201] : memref<864x32xf32, #tpu.memory_space<vmem>>, vector<1x32xf32>
    %c779 = arith.constant 779 : index
    %c0_202 = arith.constant 0 : index
    %564 = vector.load %arg3[%c779, %c0_202] : memref<864x32xf32, #tpu.memory_space<vmem>>, vector<1x32xf32>
    %cst_203 = arith.constant dense<0.000000e+00> : vector<16xf32>
    %565 = vector.multi_reduction <add>, %562, %cst_203 [1] : vector<16x32xf32> to vector<16xf32>
    %566 = vector.shape_cast %565 : vector<16xf32> to vector<16x1xf32>
    %cst_204 = arith.constant 3.200000e+01 : f32
    %567 = vector.broadcast %cst_204 : f32 to vector<16x1xf32>
    %568 = arith.divf %566, %567 : vector<16x1xf32>
    %569 = vector.broadcast %568 : vector<16x1xf32> to vector<16x32xf32>
    %570 = arith.subf %562, %569 : vector<16x32xf32>
    %571 = arith.mulf %570, %570 : vector<16x32xf32>
    %cst_205 = arith.constant dense<0.000000e+00> : vector<16xf32>
    %572 = vector.multi_reduction <add>, %571, %cst_205 [1] : vector<16x32xf32> to vector<16xf32>
    %573 = vector.shape_cast %572 : vector<16xf32> to vector<16x1xf32>
    %cst_206 = arith.constant 3.200000e+01 : f32
    %574 = vector.broadcast %cst_206 : f32 to vector<16x1xf32>
    %575 = arith.divf %573, %574 : vector<16x1xf32>
    %576 = vector.broadcast %568 : vector<16x1xf32> to vector<16x32xf32>
    %577 = arith.subf %562, %576 : vector<16x32xf32>
    %cst_207 = arith.constant 9.99999974E-6 : f32
    %578 = vector.broadcast %cst_207 : f32 to vector<16x1xf32>
    %579 = arith.addf %575, %578 : vector<16x1xf32>
    %580 = math.rsqrt %579 : vector<16x1xf32>
    %581 = vector.broadcast %580 : vector<16x1xf32> to vector<16x32xf32>
    %582 = arith.mulf %577, %581 : vector<16x32xf32>
    %583 = vector.broadcast %563 : vector<1x32xf32> to vector<16x32xf32>
    %584 = arith.mulf %582, %583 : vector<16x32xf32>
    %585 = vector.broadcast %564 : vector<1x32xf32> to vector<16x32xf32>
    %586 = arith.addf %584, %585 : vector<16x32xf32>
    %c0_208 = arith.constant 0 : index
    %c0_209 = arith.constant 0 : index
    %587 = vector.load %arg1[%c0_208, %c0_209] : memref<9x16xf32, #tpu.memory_space<vmem>>, vector<8x16xf32>
    %cst_210 = arith.constant dense<0.000000e+00> : vector<8x32xf32>
    %588 = tpu.matmul %587, %586, %cst_210 {dimension_numbers = #tpu.dot_dimension_numbers<[1], [0], [0], [1], [0, 0, 1, 1], [], []>} : vector<8x16xf32>, vector<16x32xf32>, vector<8x32xf32> -> vector<8x32xf32>
    %c780 = arith.constant 780 : index
    %c0_211 = arith.constant 0 : index
    %589 = vector.load %arg3[%c780, %c0_211] : memref<864x32xf32, #tpu.memory_space<vmem>>, vector<32x16xf32>
    %cst_212 = arith.constant dense<0.000000e+00> : vector<8x16xf32>
    %590 = tpu.matmul %588, %589, %cst_212 {dimension_numbers = #tpu.dot_dimension_numbers<[1], [0], [0], [1], [0, 0, 1, 1], [], []>} : vector<8x32xf32>, vector<32x16xf32>, vector<8x16xf32> -> vector<8x16xf32>
    %c812 = arith.constant 812 : index
    %c0_213 = arith.constant 0 : index
    %591 = vector.load %arg3[%c812, %c0_213] : memref<864x32xf32, #tpu.memory_space<vmem>>, vector<1x16xf32>
    %592 = vector.broadcast %591 : vector<1x16xf32> to vector<8x16xf32>
    %593 = arith.addf %590, %592 : vector<8x16xf32>
    %cst_214 = arith.constant 5.000000e-01 : f32
    %594 = vector.broadcast %cst_214 : f32 to vector<8x16xf32>
    %595 = arith.mulf %594, %593 : vector<8x16xf32>
    %cst_215 = arith.constant 0.707106769 : f32
    %596 = vector.broadcast %cst_215 : f32 to vector<8x16xf32>
    %597 = arith.mulf %593, %596 : vector<8x16xf32>
    %598 = math.erf %597 : vector<8x16xf32>
    %cst_216 = arith.constant 1.000000e+00 : f32
    %599 = vector.broadcast %cst_216 : f32 to vector<8x16xf32>
    %600 = arith.addf %599, %598 : vector<8x16xf32>
    %601 = arith.mulf %595, %600 : vector<8x16xf32>
    %c813 = arith.constant 813 : index
    %c0_217 = arith.constant 0 : index
    %602 = vector.load %arg3[%c813, %c0_217] : memref<864x32xf32, #tpu.memory_space<vmem>>, vector<16x1xf32>
    %cst_218 = arith.constant dense<0.000000e+00> : vector<8x1xf32>
    %603 = tpu.matmul %601, %602, %cst_218 {dimension_numbers = #tpu.dot_dimension_numbers<[1], [0], [0], [1], [0, 0, 1, 1], [], []>} : vector<8x16xf32>, vector<16x1xf32>, vector<8x1xf32> -> vector<8x1xf32>
    %cst_219 = arith.constant dense<0xFF800000> : vector<1xf32>
    %604 = vector.multi_reduction <maximumf>, %603, %cst_219 [0] : vector<8x1xf32> to vector<1xf32>
    %605 = vector.shape_cast %604 : vector<1xf32> to vector<1x1xf32>
    %606 = vector.broadcast %605 : vector<1x1xf32> to vector<8x1xf32>
    %607 = arith.subf %603, %606 : vector<8x1xf32>
    %608 = math.exp %607 : vector<8x1xf32>
    %c861 = arith.constant 861 : index
    %c0_220 = arith.constant 0 : index
    %609 = vector.load %arg3[%c861, %c0_220] : memref<864x32xf32, #tpu.memory_space<vmem>>, vector<2x8xf32>
    %cst_221 = arith.constant dense<0.000000e+00> : vector<2x1xf32>
    %610 = tpu.matmul %609, %608, %cst_221 {dimension_numbers = #tpu.dot_dimension_numbers<[1], [0], [0], [1], [0, 0, 1, 1], [], []>} : vector<2x8xf32>, vector<8x1xf32>, vector<2x1xf32> -> vector<2x1xf32>
    %611 = math.log %610 : vector<2x1xf32>
    %612 = vector.broadcast %605 : vector<1x1xf32> to vector<2x1xf32>
    %613 = arith.addf %612, %611 : vector<2x1xf32>
    %c8 = arith.constant 8 : index
    %c0_222 = arith.constant 0 : index
    %614 = vector.load %arg1[%c8, %c0_222] : memref<9x16xf32, #tpu.memory_space<vmem>>, vector<1x8xf32>
    %cst_223 = arith.constant dense<0.000000e+00> : vector<1x1xf32>
    %615 = tpu.matmul %614, %603, %cst_223 {dimension_numbers = #tpu.dot_dimension_numbers<[1], [0], [0], [1], [0, 0, 1, 1], [], []>} : vector<1x8xf32>, vector<8x1xf32>, vector<1x1xf32> -> vector<1x1xf32>
    %cst_224 = arith.constant dense<0.000000e+00> : vector<1xf32>
    %616 = vector.multi_reduction <add>, %613, %cst_224 [0] : vector<2x1xf32> to vector<1xf32>
    %617 = vector.shape_cast %616 : vector<1xf32> to vector<1x1xf32>
    %618 = arith.subf %617, %615 : vector<1x1xf32>
    %cst_225 = arith.constant 5.000000e-01 : f32
    %619 = vector.broadcast %cst_225 : f32 to vector<1x1xf32>
    %620 = arith.mulf %618, %619 : vector<1x1xf32>
    %c0_226 = arith.constant 0 : index
    %c0_227 = arith.constant 0 : index
    %621 = vector.load %arg4[%c0_226, %c0_227] : memref<1x1xf32, #tpu.memory_space<vmem>>, vector<1x1xf32>
    tpu.vector_store %arg4[%c0_226, %c0_227], %620 {strides = array<i32>} : memref<1x1xf32, #tpu.memory_space<vmem>>, vector<1x1xf32>,
    return
  }
}

</mosaic_0001>

<llo_original>
// kernel: bert_forward.1
$region0: #{bert_forward.1}
  #allocation0 [shape = 'u32[]', space=smem, size = 0x4, offset = 0x4, fixed_abs, tag = 'smem constant byte address 0x4 - core index']
  #allocation1 [shape = 'u32[144,128]{1,0:T(1,128)}', space=vmem, size = 0x12000, scoped, tag = 'internal scratch']
  %s0 = inlined_call_operand.vmem [shape: f32[16,32], index: 0, kind: input, shape index: {}]
  %s1 = inlined_call_operand.vmem [shape: f32[9,16], index: 1, kind: input, shape index: {}]
  %s2 = inlined_call_operand.vmem [shape: f32[136,128], index: 2, kind: input, shape index: {}]
  %s3 = inlined_call_operand.vmem [shape: f32[864,32], index: 3, kind: input, shape index: {}]
  %s4 = inlined_call_operand.hbm [shape: f32[1,1], index: 4, kind: output, shape index: {}]
  %s5 = sld [smem:[#allocation0]]
  $region26: #{bert_forward.1} parent=0
    _
  %s7 = ssub.s32 1, %s5
  %s8 = scalar_select 0, %s7, %s5
  $region1: #{bert_forward.1} parent=0
    #allocation2 [shape = 'u8[512]{0}', space=vmem, size = 0x400, scoped, tag = 'output window, operand 0, single buffered']
    #allocation3 [shape = 's32[1]{0}', space=sflag, size = 0x4, scoped, tag = 'scoped memory for bert_forward.1']
    %9 = vsyncpa [#allocation3], 0
    // Predicated region
    $region2: #{bert_forward.1} parent=1 // pred_check
      _
    $region3: #{bert_forward.1} parent=1 // pred_check_branch
      %11 = sbr.rel (0) target = $region5
    $region4: #{bert_forward.1} parent=1 // pred_region
      _
    $region5: #{bert_forward.1} parent=1 // pred_fallthru
      _
    // Predicated region
    $region6: #{bert_forward.1} parent=1 // pred_check
      _
    $region7: #{bert_forward.1} parent=1 // pred_check_branch
      %13 = sbr.rel (0) target = $region9
    $region8: #{bert_forward.1} parent=1 // pred_region
      _
    $region9: #{bert_forward.1} parent=1 // pred_fallthru
      _
    // Predicated region
    $region10: #{bert_forward.1} parent=1 // pred_check
      _
    $region11: #{bert_forward.1} parent=1 // pred_check_branch
      %15 = sbr.rel (0) target = $region13
    $region12: #{bert_forward.1} parent=1 // pred_region
      _
    $region13: #{bert_forward.1} parent=1 // pred_fallthru
      _
    // Predicated region
    $region14: #{bert_forward.1} parent=1 // pred_check
      _
    $region15: #{bert_forward.1} parent=1 // pred_check_branch
      %17 = sbr.rel (0) target = $region17
    $region16: #{bert_forward.1} parent=1 // pred_region
      _
    $region17: #{bert_forward.1} parent=1 // pred_fallthru
      _
    %v18 = vld [vmem:[%s0] sm:$0xff]
    %v19 = vld [vmem:[%s0 + $0x8] sm:$0xff]
    %v20 = vld [vmem:[%s2] sm:$0xff]
    %v21 = vld [vmem:[%s2 + $0x8] sm:$0xff]
    %v22 = vld [vmem:[%s2 + $0x10] sm:$0xff]
    %v23 = vld [vmem:[%s2 + $0x18] sm:$0xff]
    %v24 = vld [vmem:[%s2 + $0x40] sm:$0x1]
    %v25 = vlaneseq
    %v26 = vshrl.u32 %v25, 7
    %v27 = vsub.s32 0, %v26
    %v28 = vrot.slane %v24, %v27
    %vm29 = vcmask 261120
    %v31 = vsel %vm29, %v18, 0
    %v34 = vsel %vm29, %v19, 0
    %36 = vmatprep.subr.mxu0 0.0
    %37 = vmatpush1.msra.mxu0 %v20
    %38 = vmatprep.subr.mxu0 0.0
    %39 = vmatpush1.msra.mxu0 %v21
    %40 = vmatprep.subr.mxu0 0.0
    %41 = vmatpush1.msra.mxu0 %v22
    %42 = vmatprep.subr.mxu0 0.0
    %43 = vmatpush1.msra.mxu0 %v23
    %44 = vmatprep.subr.mxu0 0.0
    %45 = vmatpush1.msra.mxu0 0.0
    %46 = vmatprep.subr.mxu0 0.0
    %47 = vmatpush1.msra.mxu0 0.0
    %48 = vmatprep.subr.mxu0 0.0
    %49 = vmatpush1.msra.mxu0 0.0
    %50 = vmatprep.subr.mxu0 0.0
    %51 = vmatpush1.msra.mxu0 0.0
    %52 = vmatprep.subr.mxu0 0.0
    %53 = vmatpush1.msra.mxu0 0.0
    %54 = vmatprep.subr.mxu0 0.0
    %55 = vmatpush1.msra.mxu0 0.0
    %56 = vmatprep.subr.mxu0 0.0
    %57 = vmatpush1.msra.mxu0 0.0
    %58 = vmatprep.subr.mxu0 0.0
    %59 = vmatpush1.msra.mxu0 0.0
    %60 = vmatprep.subr.mxu0 0.0
    %61 = vmatpush1.msra.mxu0 0.0
    %62 = vmatprep.subr.mxu0 0.0
    %63 = vmatpush1.msra.mxu0 0.0
    %64 = vmatprep.subr.mxu0 0.0
    %65 = vmatpush1.msra.mxu0 0.0
    %66 = vmatprep.subr.mxu0 0.0
    %67 = vmatpush1.msra.mxu0 0.0
    %68 = vmatprep.subr.mxu0 0.0
    %69 = vmatpush1.msra.mxu0 0.0
    %70 = vmatprep.subr.mxu0 0.0
    %71 = vmatpush1.msra.mxu0 0.0
    %72 = vmatprep.subr.mxu0 0.0
    %73 = vmatpush1.msra.mxu0 0.0
    %74 = vmatprep.subr.mxu0 0.0
    %75 = vmatpush1.msra.mxu0 0.0
    %76 = vmatprep.subr.mxu0 0.0
    %77 = vmatpush1.msra.mxu0 0.0
    %78 = vmatprep.subr.mxu0 0.0
    %79 = vmatpush1.msra.mxu0 0.0
    %80 = vmatprep.subr.mxu0 0.0
    %81 = vmatpush1.msra.mxu0 0.0
    %82 = vmatprep.subr.mxu0 0.0
    %83 = vmatpush1.msra.mxu0 0.0
    %84 = vmatprep.subr.mxu0 0.0
    %85 = vmatpush1.msra.mxu0 0.0
    %86 = vmatprep.subr.mxu0 0.0
    %87 = vmatpush1.msra.mxu0 0.0
    %88 = vmatprep.subr.mxu0 0.0
    %89 = vmatpush1.msra.mxu0 0.0
    %90 = vmatprep.subr.mxu0 0.0
    %91 = vmatpush1.msra.mxu0 0.0
    %92 = vmatprep.subr.mxu0 0.0
    %93 = vmatpush1.msra.mxu0 0.0
    %94 = vmatprep.subr.mxu0 0.0
    %95 = vmatpush1.msra.mxu0 0.0
    %96 = vmatprep.subr.mxu0 0.0
    %97 = vmatpush1.msra.mxu0 0.0
    %98 = vmatprep.subr.mxu0 0.0
    %99 = vmatpush1.msra.mxu0 0.0
    %100 = vmatprep.mubr.f32.mxu0 0.0
    %101 = vmatmul.mubr.f32.gmra.mrb[0].mxu0 %v31
    %v102 = vpop.f32.mrb[0].mxu0
    %v103 = vadd.f32 %v28, %v102
    %v104 = vpop.f32.mrb[0].mxu0
    %105 = vmatprep.mubr.f32.mxu0 0.0
    %106 = vmatmul.mubr.f32.gmra.mrb[0].mxu0 %v34
    %v107 = vpop.f32.mrb[0].mxu0
    %v108 = vadd.f32 %v28, %v107
    %v109 = vpop.f32.mrb[0].mxu0
    %110 = vdwg.mxu0
    %v111 = vld [vmem:[%s2 + $0x20] sm:$0xff]
    %v112 = vld [vmem:[%s2 + $0x28] sm:$0xff]
    %v113 = vld [vmem:[%s2 + $0x30] sm:$0xff]
    %v114 = vld [vmem:[%s2 + $0x38] sm:$0xff]
    %v116 = vsel %vm29, 0.0, 0
    %118 = vmatprep.subr.mxu0 0.0
    %119 = vmatpush1.msra.mxu0 %v111
    %120 = vmatprep.subr.mxu0 0.0
    %121 = vmatpush1.msra.mxu0 %v112
    %122 = vmatprep.subr.mxu0 0.0
    %123 = vmatpush1.msra.mxu0 %v113
    %124 = vmatprep.subr.mxu0 0.0
    %125 = vmatpush1.msra.mxu0 %v114
    %126 = vmatprep.subr.mxu0 0.0
    %127 = vmatpush1.msra.mxu0 0.0
    %128 = vmatprep.subr.mxu0 0.0
    %129 = vmatpush1.msra.mxu0 0.0
    %130 = vmatprep.subr.mxu0 0.0
    %131 = vmatpush1.msra.mxu0 0.0
    %132 = vmatprep.subr.mxu0 0.0
    %133 = vmatpush1.msra.mxu0 0.0
    %134 = vmatprep.subr.mxu0 0.0
    %135 = vmatpush1.msra.mxu0 0.0
    %136 = vmatprep.subr.mxu0 0.0
    %137 = vmatpush1.msra.mxu0 0.0
    %138 = vmatprep.subr.mxu0 0.0
    %139 = vmatpush1.msra.mxu0 0.0
    %140 = vmatprep.subr.mxu0 0.0
    %141 = vmatpush1.msra.mxu0 0.0
    %142 = vmatprep.subr.mxu0 0.0
    %143 = vmatpush1.msra.mxu0 0.0
    %144 = vmatprep.subr.mxu0 0.0
    %145 = vmatpush1.msra.mxu0 0.0
    %146 = vmatprep.subr.mxu0 0.0
    %147 = vmatpush1.msra.mxu0 0.0
    %148 = vmatprep.subr.mxu0 0.0
    %149 = vmatpush1.msra.mxu0 0.0
    %150 = vmatprep.subr.mxu0 0.0
    %151 = vmatpush1.msra.mxu0 0.0
    %152 = vmatprep.subr.mxu0 0.0
    %153 = vmatpush1.msra.mxu0 0.0
    %154 = vmatprep.subr.mxu0 0.0
    %155 = vmatpush1.msra.mxu0 0.0
    %156 = vmatprep.subr.mxu0 0.0
    %157 = vmatpush1.msra.mxu0 0.0
    %158 = vmatprep.subr.mxu0 0.0
    %159 = vmatpush1.msra.mxu0 0.0
    %160 = vmatprep.subr.mxu0 0.0
    %161 = vmatpush1.msra.mxu0 0.0
    %162 = vmatprep.subr.mxu0 0.0
    %163 = vmatpush1.msra.mxu0 0.0
    %164 = vmatprep.subr.mxu0 0.0
    %165 = vmatpush1.msra.mxu0 0.0
    %166 = vmatprep.subr.mxu0 0.0
    %167 = vmatpush1.msra.mxu0 0.0
    %168 = vmatprep.subr.mxu0 0.0
    %169 = vmatpush1.msra.mxu0 0.0
    %170 = vmatprep.subr.mxu0 0.0
    %171 = vmatpush1.msra.mxu0 0.0
    %172 = vmatprep.subr.mxu0 0.0
    %173 = vmatpush1.msra.mxu0 0.0
    %174 = vmatprep.subr.mxu0 0.0
    %175 = vmatpush1.msra.mxu0 0.0
    %176 = vmatprep.subr.mxu0 0.0
    %177 = vmatpush1.msra.mxu0 0.0
    %178 = vmatprep.subr.mxu0 0.0
    %179 = vmatpush1.msra.mxu0 0.0
    %180 = vmatprep.subr.mxu0 0.0
    %181 = vmatpush1.msra.mxu0 0.0
    %182 = vmatprep.mubr.f32.mxu0 0.0
    %183 = vmatmul.mubr.f32.gmra.mrb[0].mxu0 %v116
    %v184 = vpop.f32.mrb[0].mxu0
    %v185 = vadd.f32 0.0, %v184
    %v186 = vpop.f32.mrb[0].mxu0
    %187 = vdwg.mxu0
    %v188 = vadd.f32 %v103, %v185
    %v189 = vmul.f32 %v188, 0.5
    %v190 = vtanh.pop %v189
    %v191 = vadd.f32 %v190, 1.0
    %v192 = vmul.f32 %v191, 0.5
    %v193 = vtanh.pop %v188
    %v194 = vmul.f32 %v192, 0.0
    %196 = vrot.lane.b32.xlu0 %v193, 64
    %v197 = vpop.permute.xlu0 %196
    %v199 = vmul.f32 %v192, %v197
    %201 = vrot.lane.b32.xlu0 %v199, 32
    %v202 = vpop.permute.xlu0 %201
    %v204 = vadd.f32 %v194, %v202
    %v205 = vtanh.pop %v204
    %207 = vrot.lane.b32.xlu0 %v205, 64
    %v208 = vpop.permute.xlu0 %207
    %v210 = vmul.f32 %v192, %v208
    %212 = vrot.lane.b32.xlu0 %v210, 32
    %v213 = vpop.permute.xlu0 %212
    %v214 = vsel %vm29, %v213, 0
    %216 = vmatprep.subr.mxu0 0.0
    %217 = vmatpush1.msra.mxu0 %v111
    %218 = vmatprep.subr.mxu0 0.0
    %219 = vmatpush1.msra.mxu0 %v112
    %220 = vmatprep.subr.mxu0 0.0
    %221 = vmatpush1.msra.mxu0 %v113
    %222 = vmatprep.subr.mxu0 0.0
    %223 = vmatpush1.msra.mxu0 %v114
    %224 = vmatprep.subr.mxu0 0.0
    %225 = vmatpush1.msra.mxu0 0.0
    %226 = vmatprep.subr.mxu0 0.0
    %227 = vmatpush1.msra.mxu0 0.0
    %228 = vmatprep.subr.mxu0 0.0
    %229 = vmatpush1.msra.mxu0 0.0
    %230 = vmatprep.subr.mxu0 0.0
    %231 = vmatpush1.msra.mxu0 0.0
    %232 = vmatprep.subr.mxu0 0.0
    %233 = vmatpush1.msra.mxu0 0.0
    %234 = vmatprep.subr.mxu0 0.0
    %235 = vmatpush1.msra.mxu0 0.0
    %236 = vmatprep.subr.mxu0 0.0
    %237 = vmatpush1.msra.mxu0 0.0
    %238 = vmatprep.subr.mxu0 0.0
    %239 = vmatpush1.msra.mxu0 0.0
    %240 = vmatprep.subr.mxu0 0.0
    %241 = vmatpush1.msra.mxu0 0.0
    %242 = vmatprep.subr.mxu0 0.0
    %243 = vmatpush1.msra.mxu0 0.0
    %244 = vmatprep.subr.mxu0 0.0
    %245 = vmatpush1.msra.mxu0 0.0
    %246 = vmatprep.subr.mxu0 0.0
    %247 = vmatpush1.msra.mxu0 0.0
    %248 = vmatprep.subr.mxu0 0.0
    %249 = vmatpush1.msra.mxu0 0.0
    %250 = vmatprep.subr.mxu0 0.0
    %251 = vmatpush1.msra.mxu0 0.0
    %252 = vmatprep.subr.mxu0 0.0
    %253 = vmatpush1.msra.mxu0 0.0
    %254 = vmatprep.subr.mxu0 0.0
    %255 = vmatpush1.msra.mxu0 0.0
    %256 = vmatprep.subr.mxu0 0.0
    %257 = vmatpush1.msra.mxu0 0.0
    %258 = vmatprep.subr.mxu0 0.0
    %259 = vmatpush1.msra.mxu0 0.0
    %260 = vmatprep.subr.mxu0 0.0
    %261 = vmatpush1.msra.mxu0 0.0
    %262 = vmatprep.subr.mxu0 0.0
    %263 = vmatpush1.msra.mxu0 0.0
    %264 = vmatprep.subr.mxu0 0.0
    %265 = vmatpush1.msra.mxu0 0.0
    %266 = vmatprep.subr.mxu0 0.0
    %267 = vmatpush1.msra.mxu0 0.0
    %268 = vmatprep.subr.mxu0 0.0
    %269 = vmatpush1.msra.mxu0 0.0
    %270 = vmatprep.subr.mxu0 0.0
    %271 = vmatpush1.msra.mxu0 0.0
    %272 = vmatprep.subr.mxu0 0.0
    %273 = vmatpush1.msra.mxu0 0.0
    %274 = vmatprep.subr.mxu0 0.0
    %275 = vmatpush1.msra.mxu0 0.0
    %276 = vmatprep.subr.mxu0 0.0
    %277 = vmatpush1.msra.mxu0 0.0
    %278 = vmatprep.subr.mxu0 0.0
    %279 = vmatpush1.msra.mxu0 0.0
    %280 = vmatprep.mubr.f32.mxu0 0.0
    %281 = vmatmul.mubr.f32.gmra.mrb[0].mxu0 %v214
    %v282 = vpop.f32.mrb[0].mxu0
    %v283 = vadd.f32 0.0, %v282
    %v284 = vpop.f32.mrb[0].mxu0
    %285 = vdwg.mxu0
    %v287 = vrot.slane %v283, 6
    %v289 = vadd.f32 %v103, %v287
    %v290 = vmul.f32 %v289, 0.5
    %v291 = vtanh.pop %v290
    %v292 = vadd.f32 %v291, 1.0
    %v293 = vmul.f32 %v292, 0.5
    %v294 = vtanh.pop %v289
    %v296 = vrot.slane %v204, 6
    %v298 = vmul.f32 %v293, %v296
    %300 = vrot.lane.b32.xlu0 %v294, 64
    %v301 = vpop.permute.xlu0 %300
    %v303 = vmul.f32 %v293, %v301
    %305 = vrot.lane.b32.xlu0 %v303, 32
    %v306 = vpop.permute.xlu0 %305
    %v308 = vadd.f32 %v298, %v306
    %v309 = vtanh.pop %v308
    %311 = vrot.lane.b32.xlu0 %v309, 64
    %v312 = vpop.permute.xlu0 %311
    %v314 = vmul.f32 %v293, %v312
    %v316 = vrot.slane %v314, 2
    %317 = vrot.lane.b32.xlu0 %v316, 32
    %v318 = vpop.permute.xlu0 %317
    %v319 = vsel %vm29, %v318, 0
    %321 = vmatprep.subr.mxu0 0.0
    %322 = vmatpush1.msra.mxu0 %v111
    %323 = vmatprep.subr.mxu0 0.0
    %324 = vmatpush1.msra.mxu0 %v112
    %325 = vmatprep.subr.mxu0 0.0
    %326 = vmatpush1.msra.mxu0 %v113
    %327 = vmatprep.subr.mxu0 0.0
    %328 = vmatpush1.msra.mxu0 %v114
    %329 = vmatprep.subr.mxu0 0.0
    %330 = vmatpush1.msra.mxu0 0.0
    %331 = vmatprep.subr.mxu0 0.0
    %332 = vmatpush1.msra.mxu0 0.0
    %333 = vmatprep.subr.mxu0 0.0
    %334 = vmatpush1.msra.mxu0 0.0
    %335 = vmatprep.subr.mxu0 0.0
    %336 = vmatpush1.msra.mxu0 0.0
    %337 = vmatprep.subr.mxu0 0.0
    %338 = vmatpush1.msra.mxu0 0.0
    %339 = vmatprep.subr.mxu0 0.0
    %340 = vmatpush1.msra.mxu0 0.0
    %341 = vmatprep.subr.mxu0 0.0
    %342 = vmatpush1.msra.mxu0 0.0
    %343 = vmatprep.subr.mxu0 0.0
    %344 = vmatpush1.msra.mxu0 0.0
    %345 = vmatprep.subr.mxu0 0.0
    %346 = vmatpush1.msra.mxu0 0.0
    %347 = vmatprep.subr.mxu0 0.0
    %348 = vmatpush1.msra.mxu0 0.0
    %349 = vmatprep.subr.mxu0 0.0
    %350 = vmatpush1.msra.mxu0 0.0
    %351 = vmatprep.subr.mxu0 0.0
    %352 = vmatpush1.msra.mxu0 0.0
    %353 = vmatprep.subr.mxu0 0.0
    %354 = vmatpush1.msra.mxu0 0.0
    %355 = vmatprep.subr.mxu0 0.0
    %356 = vmatpush1.msra.mxu0 0.0
    %357 = vmatprep.subr.mxu0 0.0
    %358 = vmatpush1.msra.mxu0 0.0
    %359 = vmatprep.subr.mxu0 0.0
    %360 = vmatpush1.msra.mxu0 0.0
    %361 = vmatprep.subr.mxu0 0.0
    %362 = vmatpush1.msra.mxu0 0.0
    %363 = vmatprep.subr.mxu0 0.0
    %364 = vmatpush1.msra.mxu0 0.0
    %365 = vmatprep.subr.mxu0 0.0
    %366 = vmatpush1.msra.mxu0 0.0
    %367 = vmatprep.subr.mxu0 0.0
    %368 = vmatpush1.msra.mxu0 0.0
    %369 = vmatprep.subr.mxu0 0.0
    %370 = vmatpush1.msra.mxu0 0.0
    %371 = vmatprep.subr.mxu0 0.0
    %372 = vmatpush1.msra.mxu0 0.0
    %373 = vmatprep.subr.mxu0 0.0
    %374 = vmatpush1.msra.mxu0 0.0
    %375 = vmatprep.subr.mxu0 0.0
    %376 = vmatpush1.msra.mxu0 0.0
    %377 = vmatprep.subr.mxu0 0.0
    %378 = vmatpush1.msra.mxu0 0.0
    %379 = vmatprep.subr.mxu0 0.0
    %380 = vmatpush1.msra.mxu0 0.0
    %381 = vmatprep.subr.mxu0 0.0
    %382 = vmatpush1.msra.mxu0 0.0
    %383 = vmatprep.subr.mxu0 0.0
    %384 = vmatpush1.msra.mxu0 0.0
    %385 = vmatprep.mubr.f32.mxu0 0.0
    %386 = vmatmul.mubr.f32.gmra.mrb[0].mxu0 %v319
    %v387 = vpop.f32.mrb[0].mxu0
    %v388 = vadd.f32 0.0, %v387
    %v389 = vpop.f32.mrb[0].mxu0
    %390 = vdwg.mxu0
    %v392 = vrot.slane %v388, 4
    %v394 = vadd.f32 %v103, %v392
    %v395 = vmul.f32 %v394, 0.5
    %v396 = vtanh.pop %v395
    %v397 = vadd.f32 %v396, 1.0
    %v398 = vmul.f32 %v397, 0.5
    %v399 = vtanh.pop %v394
    %v401 = vrot.slane %v308, 6
    %v403 = vmul.f32 %v398, %v401
    %405 = vrot.lane.b32.xlu0 %v399, 64
    %v406 = vpop.permute.xlu0 %405
    %v408 = vmul.f32 %v398, %v406
    %410 = vrot.lane.b32.xlu0 %v408, 32
    %v411 = vpop.permute.xlu0 %410
    %v413 = vadd.f32 %v403, %v411
    %v414 = vtanh.pop %v413
    %416 = vrot.lane.b32.xlu0 %v414, 64
    %v417 = vpop.permute.xlu0 %416
    %v419 = vmul.f32 %v398, %v417
    %v421 = vrot.slane %v419, 4
    %422 = vrot.lane.b32.xlu0 %v421, 32
    %v423 = vpop.permute.xlu0 %422
    %v424 = vsel %vm29, %v423, 0
    %426 = vmatprep.subr.mxu0 0.0
    %427 = vmatpush1.msra.mxu0 %v111
    %428 = vmatprep.subr.mxu0 0.0
    %429 = vmatpush1.msra.mxu0 %v112
    %430 = vmatprep.subr.mxu0 0.0
    %431 = vmatpush1.msra.mxu0 %v113
    %432 = vmatprep.subr.mxu0 0.0
    %433 = vmatpush1.msra.mxu0 %v114
    %434 = vmatprep.subr.mxu0 0.0
    %435 = vmatpush1.msra.mxu0 0.0
    %436 = vmatprep.subr.mxu0 0.0
    %437 = vmatpush1.msra.mxu0 0.0
    %438 = vmatprep.subr.mxu0 0.0
    %439 = vmatpush1.msra.mxu0 0.0
    %440 = vmatprep.subr.mxu0 0.0
    %441 = vmatpush1.msra.mxu0 0.0
    %442 = vmatprep.subr.mxu0 0.0
    %443 = vmatpush1.msra.mxu0 0.0
    %444 = vmatprep.subr.mxu0 0.0
    %445 = vmatpush1.msra.mxu0 0.0
    %446 = vmatprep.subr.mxu0 0.0
    %447 = vmatpush1.msra.mxu0 0.0
    %448 = vmatprep.subr.mxu0 0.0
    %449 = vmatpush1.msra.mxu0 0.0
    %450 = vmatprep.subr.mxu0 0.0
    %451 = vmatpush1.msra.mxu0 0.0
    %452 = vmatprep.subr.mxu0 0.0
    %453 = vmatpush1.msra.mxu0 0.0
    %454 = vmatprep.subr.mxu0 0.0
    %455 = vmatpush1.msra.mxu0 0.0
    %456 = vmatprep.subr.mxu0 0.0
    %457 = vmatpush1.msra.mxu0 0.0
    %458 = vmatprep.subr.mxu0 0.0
    %459 = vmatpush1.msra.mxu0 0.0
    %460 = vmatprep.subr.mxu0 0.0
    %461 = vmatpush1.msra.mxu0 0.0
    %462 = vmatprep.subr.mxu0 0.0
    %463 = vmatpush1.msra.mxu0 0.0
    %464 = vmatprep.subr.mxu0 0.0
    %465 = vmatpush1.msra.mxu0 0.0
    %466 = vmatprep.subr.mxu0 0.0
    %467 = vmatpush1.msra.mxu0 0.0
    %468 = vmatprep.subr.mxu0 0.0
    %469 = vmatpush1.msra.mxu0 0.0
    %470 = vmatprep.subr.mxu0 0.0
    %471 = vmatpush1.msra.mxu0 0.0
    %472 = vmatprep.subr.mxu0 0.0
    %473 = vmatpush1.msra.mxu0 0.0
    %474 = vmatprep.subr.mxu0 0.0
    %475 = vmatpush1.msra.mxu0 0.0
    %476 = vmatprep.subr.mxu0 0.0
    %477 = vmatpush1.msra.mxu0 0.0
    %478 = vmatprep.subr.mxu0 0.0
    %479 = vmatpush1.msra.mxu0 0.0
    %480 = vmatprep.subr.mxu0 0.0
    %481 = vmatpush1.msra.mxu0 0.0
    %482 = vmatprep.subr.mxu0 0.0
    %483 = vmatpush1.msra.mxu0 0.0
    %484 = vmatprep.subr.mxu0 0.0
    %485 = vmatpush1.msra.mxu0 0.0
    %486 = vmatprep.subr.mxu0 0.0
    %487 = vmatpush1.msra.mxu0 0.0
    %488 = vmatprep.subr.mxu0 0.0
    %489 = vmatpush1.msra.mxu0 0.0
    %490 = vmatprep.mubr.f32.mxu0 0.0
    %491 = vmatmul.mubr.f32.gmra.mrb[0].mxu0 %v424
    %v492 = vpop.f32.mrb[0].mxu0
    %v493 = vadd.f32 0.0, %v492
    %v494 = vpop.f32.mrb[0].mxu0
    %495 = vdwg.mxu0
    %v497 = vrot.slane %v493, 2
    %v499 = vadd.f32 %v103, %v497
    %v500 = vmul.f32 %v499, 0.5
    %v501 = vtanh.pop %v500
    %v502 = vadd.f32 %v501, 1.0
    %v503 = vmul.f32 %v502, 0.5
    %v504 = vtanh.pop %v499
    %v506 = vrot.slane %v413, 6
    %v508 = vmul.f32 %v503, %v506
    %510 = vrot.lane.b32.xlu0 %v504, 64
    %v511 = vpop.permute.xlu0 %510
    %v513 = vmul.f32 %v503, %v511
    %515 = vrot.lane.b32.xlu0 %v513, 32
    %v516 = vpop.permute.xlu0 %515
    %v518 = vadd.f32 %v508, %v516
    %v519 = vtanh.pop %v518
    %521 = vrot.lane.b32.xlu0 %v519, 64
    %v522 = vpop.permute.xlu0 %521
    %v524 = vmul.f32 %v503, %v522
    %v526 = vrot.slane %v524, 6
    %527 = vrot.lane.b32.xlu0 %v526, 32
    %v528 = vpop.permute.xlu0 %527
    %v529 = vsel %vm29, %v528, 0
    %531 = vmatprep.subr.mxu0 0.0
    %532 = vmatpush1.msra.mxu0 %v111
    %533 = vmatprep.subr.mxu0 0.0
    %534 = vmatpush1.msra.mxu0 %v112
    %535 = vmatprep.subr.mxu0 0.0
    %536 = vmatpush1.msra.mxu0 %v113
    %537 = vmatprep.subr.mxu0 0.0
    %538 = vmatpush1.msra.mxu0 %v114
    %539 = vmatprep.subr.mxu0 0.0
    %540 = vmatpush1.msra.mxu0 0.0
    %541 = vmatprep.subr.mxu0 0.0
    %542 = vmatpush1.msra.mxu0 0.0
    %543 = vmatprep.subr.mxu0 0.0
    %544 = vmatpush1.msra.mxu0 0.0
    %545 = vmatprep.subr.mxu0 0.0
    %546 = vmatpush1.msra.mxu0 0.0
    %547 = vmatprep.subr.mxu0 0.0
    %548 = vmatpush1.msra.mxu0 0.0
    %549 = vmatprep.subr.mxu0 0.0
    %550 = vmatpush1.msra.mxu0 0.0
    %551 = vmatprep.subr.mxu0 0.0
    %552 = vmatpush1.msra.mxu0 0.0
    %553 = vmatprep.subr.mxu0 0.0
    %554 = vmatpush1.msra.mxu0 0.0
    %555 = vmatprep.subr.mxu0 0.0
    %556 = vmatpush1.msra.mxu0 0.0
    %557 = vmatprep.subr.mxu0 0.0
    %558 = vmatpush1.msra.mxu0 0.0
    %559 = vmatprep.subr.mxu0 0.0
    %560 = vmatpush1.msra.mxu0 0.0
    %561 = vmatprep.subr.mxu0 0.0
    %562 = vmatpush1.msra.mxu0 0.0
    %563 = vmatprep.subr.mxu0 0.0
    %564 = vmatpush1.msra.mxu0 0.0
    %565 = vmatprep.subr.mxu0 0.0
    %566 = vmatpush1.msra.mxu0 0.0
    %567 = vmatprep.subr.mxu0 0.0
    %568 = vmatpush1.msra.mxu0 0.0
    %569 = vmatprep.subr.mxu0 0.0
    %570 = vmatpush1.msra.mxu0 0.0
    %571 = vmatprep.subr.mxu0 0.0
    %572 = vmatpush1.msra.mxu0 0.0
    %573 = vmatprep.subr.mxu0 0.0
    %574 = vmatpush1.msra.mxu0 0.0
    %575 = vmatprep.subr.mxu0 0.0
    %576 = vmatpush1.msra.mxu0 0.0
    %577 = vmatprep.subr.mxu0 0.0
    %578 = vmatpush1.msra.mxu0 0.0
    %579 = vmatprep.subr.mxu0 0.0
    %580 = vmatpush1.msra.mxu0 0.0
    %581 = vmatprep.subr.mxu0 0.0
    %582 = vmatpush1.msra.mxu0 0.0
    %583 = vmatprep.subr.mxu0 0.0
    %584 = vmatpush1.msra.mxu0 0.0
    %585 = vmatprep.subr.mxu0 0.0
    %586 = vmatpush1.msra.mxu0 0.0
    %587 = vmatprep.subr.mxu0 0.0
    %588 = vmatpush1.msra.mxu0 0.0
    %589 = vmatprep.subr.mxu0 0.0
    %590 = vmatpush1.msra.mxu0 0.0
    %591 = vmatprep.subr.mxu0 0.0
    %592 = vmatpush1.msra.mxu0 0.0
    %593 = vmatprep.subr.mxu0 0.0
    %594 = vmatpush1.msra.mxu0 0.0
    %595 = vmatprep.mubr.f32.mxu0 0.0
    %596 = vmatmul.mubr.f32.gmra.mrb[0].mxu0 %v529
    %v597 = vpop.f32.mrb[0].mxu0
    %v598 = vadd.f32 0.0, %v597
    %v599 = vpop.f32.mrb[0].mxu0
    %600 = vdwg.mxu0
    %v601 = vadd.f32 %v108, %v598
    %v602 = vmul.f32 %v601, 0.5
    %v603 = vtanh.pop %v602
    %v604 = vadd.f32 %v603, 1.0
    %v605 = vmul.f32 %v604, 0.5
    %v606 = vtanh.pop %v601
    %v608 = vrot.slane %v518, 6
    %v610 = vmul.f32 %v605, %v608
    %612 = vrot.lane.b32.xlu0 %v606, 64
    %v613 = vpop.permute.xlu0 %612
    %v615 = vmul.f32 %v605, %v613
    %617 = vrot.lane.b32.xlu0 %v615, 32
    %v618 = vpop.permute.xlu0 %617
    %v620 = vadd.f32 %v610, %v618
    %v621 = vtanh.pop %v620
    %623 = vrot.lane.b32.xlu0 %v621, 64
    %v624 = vpop.permute.xlu0 %623
    %v626 = vmul.f32 %v605, %v624
    %628 = vrot.lane.b32.xlu0 %v626, 32
    %v629 = vpop.permute.xlu0 %628
    %v630 = vsel %vm29, %v629, 0
    %632 = vmatprep.subr.mxu0 0.0
    %633 = vmatpush1.msra.mxu0 %v111
    %634 = vmatprep.subr.mxu0 0.0
    %635 = vmatpush1.msra.mxu0 %v112
    %636 = vmatprep.subr.mxu0 0.0
    %637 = vmatpush1.msra.mxu0 %v113
    %638 = vmatprep.subr.mxu0 0.0
    %639 = vmatpush1.msra.mxu0 %v114
    %640 = vmatprep.subr.mxu0 0.0
    %641 = vmatpush1.msra.mxu0 0.0
    %642 = vmatprep.subr.mxu0 0.0
    %643 = vmatpush1.msra.mxu0 0.0
    %644 = vmatprep.subr.mxu0 0.0
    %645 = vmatpush1.msra.mxu0 0.0
    %646 = vmatprep.subr.mxu0 0.0
    %647 = vmatpush1.msra.mxu0 0.0
    %648 = vmatprep.subr.mxu0 0.0
    %649 = vmatpush1.msra.mxu0 0.0
    %650 = vmatprep.subr.mxu0 0.0
    %651 = vmatpush1.msra.mxu0 0.0
    %652 = vmatprep.subr.mxu0 0.0
    %653 = vmatpush1.msra.mxu0 0.0
    %654 = vmatprep.subr.mxu0 0.0
    %655 = vmatpush1.msra.mxu0 0.0
    %656 = vmatprep.subr.mxu0 0.0
    %657 = vmatpush1.msra.mxu0 0.0
    %658 = vmatprep.subr.mxu0 0.0
    %659 = vmatpush1.msra.mxu0 0.0
    %660 = vmatprep.subr.mxu0 0.0
    %661 = vmatpush1.msra.mxu0 0.0
    %662 = vmatprep.subr.mxu0 0.0
    %663 = vmatpush1.msra.mxu0 0.0
    %664 = vmatprep.subr.mxu0 0.0
    %665 = vmatpush1.msra.mxu0 0.0
    %666 = vmatprep.subr.mxu0 0.0
    %667 = vmatpush1.msra.mxu0 0.0
    %668 = vmatprep.subr.mxu0 0.0
    %669 = vmatpush1.msra.mxu0 0.0
    %670 = vmatprep.subr.mxu0 0.0
    %671 = vmatpush1.msra.mxu0 0.0
    %672 = vmatprep.subr.mxu0 0.0
    %673 = vmatpush1.msra.mxu0 0.0
    %674 = vmatprep.subr.mxu0 0.0
    %675 = vmatpush1.msra.mxu0 0.0
    %676 = vmatprep.subr.mxu0 0.0
    %677 = vmatpush1.msra.mxu0 0.0
    %678 = vmatprep.subr.mxu0 0.0
    %679 = vmatpush1.msra.mxu0 0.0
    %680 = vmatprep.subr.mxu0 0.0
    %681 = vmatpush1.msra.mxu0 0.0
    %682 = vmatprep.subr.mxu0 0.0
    %683 = vmatpush1.msra.mxu0 0.0
    %684 = vmatprep.subr.mxu0 0.0
    %685 = vmatpush1.msra.mxu0 0.0
    %686 = vmatprep.subr.mxu0 0.0
    %687 = vmatpush1.msra.mxu0 0.0
    %688 = vmatprep.subr.mxu0 0.0
    %689 = vmatpush1.msra.mxu0 0.0
    %690 = vmatprep.subr.mxu0 0.0
    %691 = vmatpush1.msra.mxu0 0.0
    %692 = vmatprep.subr.mxu0 0.0
    %693 = vmatpush1.msra.mxu0 0.0
    %694 = vmatprep.subr.mxu0 0.0
    %695 = vmatpush1.msra.mxu0 0.0
    %696 = vmatprep.mubr.f32.mxu0 0.0
    %697 = vmatmul.mubr.f32.gmra.mrb[0].mxu0 %v630
    %v698 = vpop.f32.mrb[0].mxu0
    %v699 = vadd.f32 0.0, %v698
    %v700 = vpop.f32.mrb[0].mxu0
    %701 = vdwg.mxu0
    %v703 = vrot.slane %v699, 6
    %v705 = vadd.f32 %v108, %v703
    %v706 = vmul.f32 %v705, 0.5
    %v707 = vtanh.pop %v706
    %v708 = vadd.f32 %v707, 1.0
    %v709 = vmul.f32 %v708, 0.5
    %v710 = vtanh.pop %v705
    %v712 = vrot.slane %v620, 6
    %v714 = vmul.f32 %v709, %v712
    %716 = vrot.lane.b32.xlu0 %v710, 64
    %v717 = vpop.permute.xlu0 %716
    %v719 = vmul.f32 %v709, %v717
    %721 = vrot.lane.b32.xlu0 %v719, 32
    %v722 = vpop.permute.xlu0 %721
    %v724 = vadd.f32 %v714, %v722
    %v725 = vtanh.pop %v724
    %727 = vrot.lane.b32.xlu0 %v725, 64
    %v728 = vpop.permute.xlu0 %727
    %v730 = vmul.f32 %v709, %v728
    %v732 = vrot.slane %v730, 2
    %733 = vrot.lane.b32.xlu0 %v732, 32
    %v734 = vpop.permute.xlu0 %733
    %v735 = vsel %vm29, %v734, 0
    %737 = vmatprep.subr.mxu0 0.0
    %738 = vmatpush1.msra.mxu0 %v111
    %739 = vmatprep.subr.mxu0 0.0
    %740 = vmatpush1.msra.mxu0 %v112
    %741 = vmatprep.subr.mxu0 0.0
    %742 = vmatpush1.msra.mxu0 %v113
    %743 = vmatprep.subr.mxu0 0.0
    %744 = vmatpush1.msra.mxu0 %v114
    %745 = vmatprep.subr.mxu0 0.0
    %746 = vmatpush1.msra.mxu0 0.0
    %747 = vmatprep.subr.mxu0 0.0
    %748 = vmatpush1.msra.mxu0 0.0
    %749 = vmatprep.subr.mxu0 0.0
    %750 = vmatpush1.msra.mxu0 0.0
    %751 = vmatprep.subr.mxu0 0.0
    %752 = vmatpush1.msra.mxu0 0.0
    %753 = vmatprep.subr.mxu0 0.0
    %754 = vmatpush1.msra.mxu0 0.0
    %755 = vmatprep.subr.mxu0 0.0
    %756 = vmatpush1.msra.mxu0 0.0
    %757 = vmatprep.subr.mxu0 0.0
    %758 = vmatpush1.msra.mxu0 0.0
    %759 = vmatprep.subr.mxu0 0.0
    %760 = vmatpush1.msra.mxu0 0.0
    %761 = vmatprep.subr.mxu0 0.0
    %762 = vmatpush1.msra.mxu0 0.0
    %763 = vmatprep.subr.mxu0 0.0
    %764 = vmatpush1.msra.mxu0 0.0
    %765 = vmatprep.subr.mxu0 0.0
    %766 = vmatpush1.msra.mxu0 0.0
    %767 = vmatprep.subr.mxu0 0.0
    %768 = vmatpush1.msra.mxu0 0.0
    %769 = vmatprep.subr.mxu0 0.0
    %770 = vmatpush1.msra.mxu0 0.0
    %771 = vmatprep.subr.mxu0 0.0
    %772 = vmatpush1.msra.mxu0 0.0
    %773 = vmatprep.subr.mxu0 0.0
    %774 = vmatpush1.msra.mxu0 0.0
    %775 = vmatprep.subr.mxu0 0.0
    %776 = vmatpush1.msra.mxu0 0.0
    %777 = vmatprep.subr.mxu0 0.0
    %778 = vmatpush1.msra.mxu0 0.0
    %779 = vmatprep.subr.mxu0 0.0
    %780 = vmatpush1.msra.mxu0 0.0
    %781 = vmatprep.subr.mxu0 0.0
    %782 = vmatpush1.msra.mxu0 0.0
    %783 = vmatprep.subr.mxu0 0.0
    %784 = vmatpush1.msra.mxu0 0.0
    %785 = vmatprep.subr.mxu0 0.0
    %786 = vmatpush1.msra.mxu0 0.0
    %787 = vmatprep.subr.mxu0 0.0
    %788 = vmatpush1.msra.mxu0 0.0
    %789 = vmatprep.subr.mxu0 0.0
    %790 = vmatpush1.msra.mxu0 0.0
    %791 = vmatprep.subr.mxu0 0.0
    %792 = vmatpush1.msra.mxu0 0.0
    %793 = vmatprep.subr.mxu0 0.0
    %794 = vmatpush1.msra.mxu0 0.0
    %795 = vmatprep.subr.mxu0 0.0
    %796 = vmatpush1.msra.mxu0 0.0
    %797 = vmatprep.subr.mxu0 0.0
    %798 = vmatpush1.msra.mxu0 0.0
    %799 = vmatprep.subr.mxu0 0.0
    %800 = vmatpush1.msra.mxu0 0.0
    %801 = vmatprep.mubr.f32.mxu0 0.0
    %802 = vmatmul.mubr.f32.gmra.mrb[0].mxu0 %v735
    %v803 = vpop.f32.mrb[0].mxu0
    %v804 = vadd.f32 0.0, %v803
    %v805 = vpop.f32.mrb[0].mxu0
    %806 = vdwg.mxu0
    %v808 = vrot.slane %v804, 4
    %v810 = vadd.f32 %v108, %v808
    %v811 = vmul.f32 %v810, 0.5
    %v812 = vtanh.pop %v811
    %v813 = vadd.f32 %v812, 1.0
    %v814 = vmul.f32 %v813, 0.5
    %v815 = vtanh.pop %v810
    %v817 = vrot.slane %v724, 6
    %v819 = vmul.f32 %v814, %v817
    %821 = vrot.lane.b32.xlu0 %v815, 64
    %v822 = vpop.permute.xlu0 %821
    %v824 = vmul.f32 %v814, %v822
    %826 = vrot.lane.b32.xlu0 %v824, 32
    %v827 = vpop.permute.xlu0 %826
    %v829 = vadd.f32 %v819, %v827
    %v830 = vtanh.pop %v829
    %832 = vrot.lane.b32.xlu0 %v830, 64
    %v833 = vpop.permute.xlu0 %832
    %v835 = vmul.f32 %v814, %v833
    %v837 = vrot.slane %v835, 4
    %838 = vrot.lane.b32.xlu0 %v837, 32
    %v839 = vpop.permute.xlu0 %838
    %v840 = vsel %vm29, %v839, 0
    %842 = vmatprep.subr.mxu0 0.0
    %843 = vmatpush1.msra.mxu0 %v111
    %844 = vmatprep.subr.mxu0 0.0
    %845 = vmatpush1.msra.mxu0 %v112
    %846 = vmatprep.subr.mxu0 0.0
    %847 = vmatpush1.msra.mxu0 %v113
    %848 = vmatprep.subr.mxu0 0.0
    %849 = vmatpush1.msra.mxu0 %v114
    %850 = vmatprep.subr.mxu0 0.0
    %851 = vmatpush1.msra.mxu0 0.0
    %852 = vmatprep.subr.mxu0 0.0
    %853 = vmatpush1.msra.mxu0 0.0
    %854 = vmatprep.subr.mxu0 0.0
    %855 = vmatpush1.msra.mxu0 0.0
    %856 = vmatprep.subr.mxu0 0.0
    %857 = vmatpush1.msra.mxu0 0.0
    %858 = vmatprep.subr.mxu0 0.0
    %859 = vmatpush1.msra.mxu0 0.0
    %860 = vmatprep.subr.mxu0 0.0
    %861 = vmatpush1.msra.mxu0 0.0
    %862 = vmatprep.subr.mxu0 0.0
    %863 = vmatpush1.msra.mxu0 0.0
    %864 = vmatprep.subr.mxu0 0.0
    %865 = vmatpush1.msra.mxu0 0.0
    %866 = vmatprep.subr.mxu0 0.0
    %867 = vmatpush1.msra.mxu0 0.0
    %868 = vmatprep.subr.mxu0 0.0
    %869 = vmatpush1.msra.mxu0 0.0
    %870 = vmatprep.subr.mxu0 0.0
    %871 = vmatpush1.msra.mxu0 0.0
    %872 = vmatprep.subr.mxu0 0.0
    %873 = vmatpush1.msra.mxu0 0.0
    %874 = vmatprep.subr.mxu0 0.0
    %875 = vmatpush1.msra.mxu0 0.0
    %876 = vmatprep.subr.mxu0 0.0
    %877 = vmatpush1.msra.mxu0 0.0
    %878 = vmatprep.subr.mxu0 0.0
    %879 = vmatpush1.msra.mxu0 0.0
    %880 = vmatprep.subr.mxu0 0.0
    %881 = vmatpush1.msra.mxu0 0.0
    %882 = vmatprep.subr.mxu0 0.0
    %883 = vmatpush1.msra.mxu0 0.0
    %884 = vmatprep.subr.mxu0 0.0
    %885 = vmatpush1.msra.mxu0 0.0
    %886 = vmatprep.subr.mxu0 0.0
    %887 = vmatpush1.msra.mxu0 0.0
    %888 = vmatprep.subr.mxu0 0.0
    %889 = vmatpush1.msra.mxu0 0.0
    %890 = vmatprep.subr.mxu0 0.0
    %891 = vmatpush1.msra.mxu0 0.0
    %892 = vmatprep.subr.mxu0 0.0
    %893 = vmatpush1.msra.mxu0 0.0
    %894 = vmatprep.subr.mxu0 0.0
    %895 = vmatpush1.msra.mxu0 0.0
    %896 = vmatprep.subr.mxu0 0.0
    %897 = vmatpush1.msra.mxu0 0.0
    %898 = vmatprep.subr.mxu0 0.0
    %899 = vmatpush1.msra.mxu0 0.0
    %900 = vmatprep.subr.mxu0 0.0
    %901 = vmatpush1.msra.mxu0 0.0
    %902 = vmatprep.subr.mxu0 0.0
    %903 = vmatpush1.msra.mxu0 0.0
    %904 = vmatprep.subr.mxu0 0.0
    %905 = vmatpush1.msra.mxu0 0.0
    %906 = vmatprep.mubr.f32.mxu0 0.0
    %907 = vmatmul.mubr.f32.gmra.mrb[0].mxu0 %v840
    %v908 = vpop.f32.mrb[0].mxu0
    %v909 = vadd.f32 0.0, %v908
    %v910 = vpop.f32.mrb[0].mxu0
    %911 = vdwg.mxu0
    %v913 = vrot.slane %v909, 2
    %v915 = vadd.f32 %v108, %v913
    %v916 = vmul.f32 %v915, 0.5
    %v917 = vtanh.pop %v916
    %v918 = vadd.f32 %v917, 1.0
    %v919 = vmul.f32 %v918, 0.5
    %v920 = vtanh.pop %v915
    %v922 = vrot.slane %v829, 6
    %v924 = vmul.f32 %v919, %v922
    %926 = vrot.lane.b32.xlu0 %v920, 64
    %v927 = vpop.permute.xlu0 %926
    %v929 = vmul.f32 %v919, %v927
    %931 = vrot.lane.b32.xlu0 %v929, 32
    %v932 = vpop.permute.xlu0 %931
    %v934 = vadd.f32 %v924, %v932
    %v935 = vtanh.pop %v934
    %937 = vrot.lane.b32.xlu0 %v935, 64
    %v938 = vpop.permute.xlu0 %937
    %v940 = vmul.f32 %v919, %v938
    %vm941 = vcmask 1041408
    %v942 = vsel %vm941, %v210, %v314
    %vm943 = vcmask 1043456
    %v944 = vsel %vm943, %v942, %v419
    %vm945 = vcmask 1045504
    %v946 = vsel %vm945, %v944, %v524
    %v947 = vsel %vm941, %v626, %v730
    %v948 = vsel %vm943, %v947, %v835
    %v949 = vsel %vm945, %v948, %v940
    %v950 = vld [vmem:[%s3 + $0x34d] sm:$0xff]
    %v951 = vld [vmem:[%s3 + $0x355] sm:$0xff]
    %954 = vrot.lane.b32.xlu0 %v946, 32
    %v955 = vpop.permute.xlu0 %954
    %956 = vrot.lane.b32.xlu0 %v949, 32
    %v957 = vpop.permute.xlu0 %956
    %vm960 = vcmask 130048
    %v962 = vsel %vm960, %v950, 0
    %v965 = vsel %vm960, %v951, 0
    %967 = vmatprep.subr.mxu0 0.0
    %968 = vmatpush1.msra.mxu0 %v955
    %969 = vmatprep.subr.mxu0 0.0
    %970 = vmatpush1.msra.mxu0 %v957
    %971 = vmatprep.subr.mxu0 0.0
    %972 = vmatpush1.msra.mxu0 0.0
    %973 = vmatprep.subr.mxu0 0.0
    %974 = vmatpush1.msra.mxu0 0.0
    %975 = vmatprep.subr.mxu0 0.0
    %976 = vmatpush1.msra.mxu0 0.0
    %977 = vmatprep.subr.mxu0 0.0
    %978 = vmatpush1.msra.mxu0 0.0
    %979 = vmatprep.subr.mxu0 0.0
    %980 = vmatpush1.msra.mxu0 0.0
    %981 = vmatprep.subr.mxu0 0.0
    %982 = vmatpush1.msra.mxu0 0.0
    %983 = vmatprep.subr.mxu0 0.0
    %984 = vmatpush1.msra.mxu0 0.0
    %985 = vmatprep.subr.mxu0 0.0
    %986 = vmatpush1.msra.mxu0 0.0
    %987 = vmatprep.subr.mxu0 0.0
    %988 = vmatpush1.msra.mxu0 0.0
    %989 = vmatprep.subr.mxu0 0.0
    %990 = vmatpush1.msra.mxu0 0.0
    %991 = vmatprep.subr.mxu0 0.0
    %992 = vmatpush1.msra.mxu0 0.0
    %993 = vmatprep.subr.mxu0 0.0
    %994 = vmatpush1.msra.mxu0 0.0
    %995 = vmatprep.subr.mxu0 0.0
    %996 = vmatpush1.msra.mxu0 0.0
    %997 = vmatprep.subr.mxu0 0.0
    %998 = vmatpush1.msra.mxu0 0.0
    %999 = vmatprep.subr.mxu0 0.0
    %1000 = vmatpush1.msra.mxu0 0.0
    %1001 = vmatprep.subr.mxu0 0.0
    %1002 = vmatpush1.msra.mxu0 0.0
    %1003 = vmatprep.subr.mxu0 0.0
    %1004 = vmatpush1.msra.mxu0 0.0
    %1005 = vmatprep.subr.mxu0 0.0
    %1006 = vmatpush1.msra.mxu0 0.0
    %1007 = vmatprep.subr.mxu0 0.0
    %1008 = vmatpush1.msra.mxu0 0.0
    %1009 = vmatprep.subr.mxu0 0.0
    %1010 = vmatpush1.msra.mxu0 0.0
    %1011 = vmatprep.subr.mxu0 0.0
    %1012 = vmatpush1.msra.mxu0 0.0
    %1013 = vmatprep.subr.mxu0 0.0
    %1014 = vmatpush1.msra.mxu0 0.0
    %1015 = vmatprep.subr.mxu0 0.0
    %1016 = vmatpush1.msra.mxu0 0.0
    %1017 = vmatprep.subr.mxu0 0.0
    %1018 = vmatpush1.msra.mxu0 0.0
    %1019 = vmatprep.subr.mxu0 0.0
    %1020 = vmatpush1.msra.mxu0 0.0
    %1021 = vmatprep.subr.mxu0 0.0
    %1022 = vmatpush1.msra.mxu0 0.0
    %1023 = vmatprep.subr.mxu0 0.0
    %1024 = vmatpush1.msra.mxu0 0.0
    %1025 = vmatprep.subr.mxu0 0.0
    %1026 = vmatpush1.msra.mxu0 0.0
    %1027 = vmatprep.subr.mxu0 0.0
    %1028 = vmatpush1.msra.mxu0 0.0
    %1029 = vmatprep.subr.mxu0 0.0
    %1030 = vmatpush1.msra.mxu0 0.0
    %1031 = vmatprep.mubr.f32.mxu0 0.0
    %1032 = vmatmul.mubr.f32.gmra.mrb[0].mxu0 %v962
    %v1033 = vpop.f32.mrb[0].mxu0
    %v1034 = vadd.f32 0.0, %v1033
    %v1035 = vpop.f32.mrb[0].mxu0
    %1036 = vmatprep.mubr.f32.mxu0 0.0
    %1037 = vmatmul.mubr.f32.gmra.mrb[0].mxu0 %v965
    %v1038 = vpop.f32.mrb[0].mxu0
    %v1039 = vadd.f32 0.0, %v1038
    %v1040 = vpop.f32.mrb[0].mxu0
    %1041 = vdwg.mxu0
    %v1042 = vlaneseq
    %v1043 = vand.u32 %v1042, 127
    %vm1044 = vcmp.lt.s32.totalorder %v1043, 16
    %v1045 = vsel %vm1044, 1, 0
    %vm1046 = vcmp.eq.s32.totalorder %v1045, 1
    %v1047 = vsel %vm1046, %v955, %v1034
    %v1048 = vsel %vm1046, %v957, %v1039
    %v1049 = vld [vmem:[%s3 + $0x33d] sm:$0xff]
    %v1050 = vld [vmem:[%s3 + $0x345] sm:$0xff]
    %v1051 = vld [vmem:[%s3 + $0x180] sm:$0x1]
    %v1052 = vld [vmem:[%s3 + $0x181] sm:$0x1]
    %v1053 = vsel %vm29, %v1047, 0.0
    %1054 = vadd.xlane.f32.xlu0 %v1053
    %v1055 = vpop.xlane.xlu0 %1054
    %v1056 = vsel %vm29, %v1048, 0.0
    %1057 = vadd.xlane.f32.xlu0 %v1056
    %v1058 = vpop.xlane.xlu0 %1057
    %v1059 = vrcp.pop 32.0
    %v1060 = vmul.f32 %v1055, %v1059
    %v1061 = vmul.f32 %v1058, %v1059
    %v1062 = vsub.f32 %v1047, %v1060
    %v1063 = vsub.f32 %v1048, %v1061
    %v1064 = vmul.f32 %v1062, %v1062
    %v1065 = vmul.f32 %v1063, %v1063
    %v1066 = vsel %vm29, %v1064, 0.0
    %1067 = vadd.xlane.f32.xlu0 %v1066
    %v1068 = vpop.xlane.xlu0 %1067
    %v1069 = vsel %vm29, %v1065, 0.0
    %1070 = vadd.xlane.f32.xlu0 %v1069
    %v1071 = vpop.xlane.xlu0 %1070
    %v1072 = vmul.f32 %v1068, %v1059
    %v1073 = vmul.f32 %v1071, %v1059
    %v1074 = vadd.f32 %v1072, 1e-05
    %v1075 = vadd.f32 %v1073, 1e-05
    %v1076 = vrsqrt.pop %v1074
    %v1077 = vrsqrt.pop %v1075
    %v1078 = vmul.f32 %v1062, %v1076
    %v1079 = vmul.f32 %v1063, %v1077
    %v1080 = vlaneseq
    %v1081 = vshrl.u32 %v1080, 7
    %v1082 = vsub.s32 0, %v1081
    %v1083 = vrot.slane %v1051, %v1082
    %v1084 = vmul.f32 %v1078, %v1083
    %v1085 = vmul.f32 %v1079, %v1083
    %v1086 = vlaneseq
    %v1087 = vshrl.u32 %v1086, 7
    %v1088 = vsub.s32 0, %v1087
    %v1089 = vrot.slane %v1052, %v1088
    %v1090 = vadd.f32 %v1084, %v1089
    %v1091 = vadd.f32 %v1085, %v1089
    %v1092 = vld [vmem:[%s3] sm:$0xff]
    %v1093 = vld [vmem:[%s3 + $0x8] sm:$0xff]
    %v1094 = vld [vmem:[%s3 + $0x10] sm:$0xff]
    %v1095 = vld [vmem:[%s3 + $0x18] sm:$0xff]
    %v1096 = vld [vmem:[%s3 + $0x80] sm:$0xff]
    %v1097 = vld [vmem:[%s3 + $0x88] sm:$0xff]
    %v1098 = vld [vmem:[%s3 + $0x90] sm:$0xff]
    %v1099 = vld [vmem:[%s3 + $0x98] sm:$0xff]
    %v1101 = vsel %vm29, %v1090, 0
    %v1104 = vsel %vm29, %v1091, 0
    %1106 = vmatprep.subr.mxu0 0.0
    %1107 = vmatpush1.msra.mxu0 %v1092
    %1108 = vmatprep.subr.mxu0 0.0
    %1109 = vmatpush1.msra.mxu0 %v1093
    %1110 = vmatprep.subr.mxu0 0.0
    %1111 = vmatpush1.msra.mxu0 %v1094
    %1112 = vmatprep.subr.mxu0 0.0
    %1113 = vmatpush1.msra.mxu0 %v1095
    %1114 = vmatprep.subr.mxu0 0.0
    %1115 = vmatpush1.msra.mxu0 0.0
    %1116 = vmatprep.subr.mxu0 0.0
    %1117 = vmatpush1.msra.mxu0 0.0
    %1118 = vmatprep.subr.mxu0 0.0
    %1119 = vmatpush1.msra.mxu0 0.0
    %1120 = vmatprep.subr.mxu0 0.0
    %1121 = vmatpush1.msra.mxu0 0.0
    %1122 = vmatprep.subr.mxu0 0.0
    %1123 = vmatpush1.msra.mxu0 0.0
    %1124 = vmatprep.subr.mxu0 0.0
    %1125 = vmatpush1.msra.mxu0 0.0
    %1126 = vmatprep.subr.mxu0 0.0
    %1127 = vmatpush1.msra.mxu0 0.0
    %1128 = vmatprep.subr.mxu0 0.0
    %1129 = vmatpush1.msra.mxu0 0.0
    %1130 = vmatprep.subr.mxu0 0.0
    %1131 = vmatpush1.msra.mxu0 0.0
    %1132 = vmatprep.subr.mxu0 0.0
    %1133 = vmatpush1.msra.mxu0 0.0
    %1134 = vmatprep.subr.mxu0 0.0
    %1135 = vmatpush1.msra.mxu0 0.0
    %1136 = vmatprep.subr.mxu0 0.0
    %1137 = vmatpush1.msra.mxu0 0.0
    %1138 = vmatprep.subr.mxu0 0.0
    %1139 = vmatpush1.msra.mxu0 0.0
    %1140 = vmatprep.subr.mxu0 0.0
    %1141 = vmatpush1.msra.mxu0 0.0
    %1142 = vmatprep.subr.mxu0 0.0
    %1143 = vmatpush1.msra.mxu0 0.0
    %1144 = vmatprep.subr.mxu0 0.0
    %1145 = vmatpush1.msra.mxu0 0.0
    %1146 = vmatprep.subr.mxu0 0.0
    %1147 = vmatpush1.msra.mxu0 0.0
    %1148 = vmatprep.subr.mxu0 0.0
    %1149 = vmatpush1.msra.mxu0 0.0
    %1150 = vmatprep.subr.mxu0 0.0
    %1151 = vmatpush1.msra.mxu0 0.0
    %1152 = vmatprep.subr.mxu0 0.0
    %1153 = vmatpush1.msra.mxu0 0.0
    %1154 = vmatprep.subr.mxu0 0.0
    %1155 = vmatpush1.msra.mxu0 0.0
    %1156 = vmatprep.subr.mxu0 0.0
    %1157 = vmatpush1.msra.mxu0 0.0
    %1158 = vmatprep.subr.mxu0 0.0
    %1159 = vmatpush1.msra.mxu0 0.0
    %1160 = vmatprep.subr.mxu0 0.0
    %1161 = vmatpush1.msra.mxu0 0.0
    %1162 = vmatprep.subr.mxu0 0.0
    %1163 = vmatpush1.msra.mxu0 0.0
    %1164 = vmatprep.subr.mxu0 0.0
    %1165 = vmatpush1.msra.mxu0 0.0
    %1166 = vmatprep.subr.mxu0 0.0
    %1167 = vmatpush1.msra.mxu0 0.0
    %1168 = vmatprep.subr.mxu0 0.0
    %1169 = vmatpush1.msra.mxu0 0.0
    %1170 = vmatprep.mubr.f32.mxu0 0.0
    %1171 = vmatmul.mubr.f32.gmra.mrb[0].mxu0 %v1101
    %v1172 = vpop.f32.mrb[0].mxu0
    %v1173 = vadd.f32 0.0, %v1172
    %v1174 = vpop.f32.mrb[0].mxu0
    %1175 = vmatprep.mubr.f32.mxu0 0.0
    %1176 = vmatmul.mubr.f32.gmra.mrb[0].mxu0 %v1104
    %v1177 = vpop.f32.mrb[0].mxu0
    %v1178 = vadd.f32 0.0, %v1177
    %v1179 = vpop.f32.mrb[0].mxu0
    %1180 = vdwg.mxu0
    %v1182 = vsel %vm29, %v1173, 0
    %v1185 = vsel %vm29, %v1178, 0
    %1187 = vmatprep.subr.mxu0 0.0
    %1188 = vmatpush1.xpose.msra.mxu0 %v1101
    %1189 = vmatprep.subr.mxu0 0.0
    %1190 = vmatpush1.xpose.msra.mxu0 %v1104
    %1191 = vmatprep.subr.mxu0 0.0
    %1192 = vmatpush1.xpose.msra.mxu0 0.0
    %1193 = vmatprep.subr.mxu0 0.0
    %1194 = vmatpush1.xpose.msra.mxu0 0.0
    %1195 = vmatprep.subr.mxu0 0.0
    %1196 = vmatpush1.xpose.msra.mxu0 0.0
    %1197 = vmatprep.subr.mxu0 0.0
    %1198 = vmatpush1.xpose.msra.mxu0 0.0
    %1199 = vmatprep.subr.mxu0 0.0
    %1200 = vmatpush1.xpose.msra.mxu0 0.0
    %1201 = vmatprep.subr.mxu0 0.0
    %1202 = vmatpush1.xpose.msra.mxu0 0.0
    %1203 = vmatprep.subr.mxu0 0.0
    %1204 = vmatpush1.xpose.msra.mxu0 0.0
    %1205 = vmatprep.subr.mxu0 0.0
    %1206 = vmatpush1.xpose.msra.mxu0 0.0
    %1207 = vmatprep.subr.mxu0 0.0
    %1208 = vmatpush1.xpose.msra.mxu0 0.0
    %1209 = vmatprep.subr.mxu0 0.0
    %1210 = vmatpush1.xpose.msra.mxu0 0.0
    %1211 = vmatprep.subr.mxu0 0.0
    %1212 = vmatpush1.xpose.msra.mxu0 0.0
    %1213 = vmatprep.subr.mxu0 0.0
    %1214 = vmatpush1.xpose.msra.mxu0 0.0
    %1215 = vmatprep.subr.mxu0 0.0
    %1216 = vmatpush1.xpose.msra.mxu0 0.0
    %1217 = vmatprep.subr.mxu0 0.0
    %1218 = vmatpush1.xpose.msra.mxu0 0.0
    %1219 = vmatprep.subr.mxu0 0.0
    %1220 = vmatpush1.xpose.msra.mxu0 0.0
    %1221 = vmatprep.subr.mxu0 0.0
    %1222 = vmatpush1.xpose.msra.mxu0 0.0
    %1223 = vmatprep.subr.mxu0 0.0
    %1224 = vmatpush1.xpose.msra.mxu0 0.0
    %1225 = vmatprep.subr.mxu0 0.0
    %1226 = vmatpush1.xpose.msra.mxu0 0.0
    %1227 = vmatprep.subr.mxu0 0.0
    %1228 = vmatpush1.xpose.msra.mxu0 0.0
    %1229 = vmatprep.subr.mxu0 0.0
    %1230 = vmatpush1.xpose.msra.mxu0 0.0
    %1231 = vmatprep.subr.mxu0 0.0
    %1232 = vmatpush1.xpose.msra.mxu0 0.0
    %1233 = vmatprep.subr.mxu0 0.0
    %1234 = vmatpush1.xpose.msra.mxu0 0.0
    %1235 = vmatprep.subr.mxu0 0.0
    %1236 = vmatpush1.xpose.msra.mxu0 0.0
    %1237 = vmatprep.subr.mxu0 0.0
    %1238 = vmatpush1.xpose.msra.mxu0 0.0
    %1239 = vmatprep.subr.mxu0 0.0
    %1240 = vmatpush1.xpose.msra.mxu0 0.0
    %1241 = vmatprep.subr.mxu0 0.0
    %1242 = vmatpush1.xpose.msra.mxu0 0.0
    %1243 = vmatprep.subr.mxu0 0.0
    %1244 = vmatpush1.xpose.msra.mxu0 0.0
    %1245 = vmatprep.subr.mxu0 0.0
    %1246 = vmatpush1.xpose.msra.mxu0 0.0
    %1247 = vmatprep.subr.mxu0 0.0
    %1248 = vmatpush1.xpose.msra.mxu0 0.0
    %1249 = vmatprep.subr.mxu0 0.0
    %1250 = vmatpush1.xpose.msra.mxu0 0.0
    %1251 = vmatprep.mubr.f32.mxu0 0.0
    %1252 = vmatmul.mubr.f32.gmra.mrb[0].mxu0 %v1182
    %v1253 = vpop.f32.mrb[0].mxu0
    %v1254 = vadd.f32 %v1049, %v1253
    %v1255 = vpop.f32.mrb[0].mxu0
    %1256 = vmatprep.mubr.f32.mxu0 0.0
    %1257 = vmatmul.mubr.f32.gmra.mrb[0].mxu0 %v1185
    %v1258 = vpop.f32.mrb[0].mxu0
    %v1259 = vadd.f32 %v1050, %v1258
    %v1260 = vpop.f32.mrb[0].mxu0
    %1261 = vdwg.mxu0
    %v1262 = vsel %vm960, %v1254, -inf
    %1263 = vmax.xlane.f32.xlu0 %v1262
    %v1264 = vpop.xlane.xlu0 %1263
    %v1265 = vsel %vm960, %v1259, -inf
    %1266 = vmax.xlane.f32.xlu0 %v1265
    %v1267 = vpop.xlane.xlu0 %1266
    %v1268 = vsub.f32 %v1254, %v1264
    %v1269 = vsub.f32 %v1259, %v1267
    %v1270 = vmul.f32 %v1268, 1.442695
    %v1271 = vpow.pop %v1270
    %v1272 = vmul.f32 %v1269, 1.442695
    %v1273 = vpow.pop %v1272
    %v1274 = vsel %vm960, %v1271, 0.0
    %1275 = vadd.xlane.f32.xlu0 %v1274
    %v1276 = vpop.xlane.xlu0 %1275
    %v1277 = vsel %vm960, %v1273, 0.0
    %1278 = vadd.xlane.f32.xlu0 %v1277
    %v1279 = vpop.xlane.xlu0 %1278
    %v1280 = vrcp.pop %v1276
    %v1281 = vrcp.pop %v1279
    %v1282 = vmul.f32 %v1271, %v1280
    %v1283 = vmul.f32 %v1273, %v1281
    %1284 = vmatprep.subr.mxu0 0.0
    %1285 = vmatpush1.msra.mxu0 %v1096
    %1286 = vmatprep.subr.mxu0 0.0
    %1287 = vmatpush1.msra.mxu0 %v1097
    %1288 = vmatprep.subr.mxu0 0.0
    %1289 = vmatpush1.msra.mxu0 %v1098
    %1290 = vmatprep.subr.mxu0 0.0
    %1291 = vmatpush1.msra.mxu0 %v1099
    %1292 = vmatprep.subr.mxu0 0.0
    %1293 = vmatpush1.msra.mxu0 0.0
    %1294 = vmatprep.subr.mxu0 0.0
    %1295 = vmatpush1.msra.mxu0 0.0
    %1296 = vmatprep.subr.mxu0 0.0
    %1297 = vmatpush1.msra.mxu0 0.0
    %1298 = vmatprep.subr.mxu0 0.0
    %1299 = vmatpush1.msra.mxu0 0.0
    %1300 = vmatprep.subr.mxu0 0.0
    %1301 = vmatpush1.msra.mxu0 0.0
    %1302 = vmatprep.subr.mxu0 0.0
    %1303 = vmatpush1.msra.mxu0 0.0
    %1304 = vmatprep.subr.mxu0 0.0
    %1305 = vmatpush1.msra.mxu0 0.0
    %1306 = vmatprep.subr.mxu0 0.0
    %1307 = vmatpush1.msra.mxu0 0.0
    %1308 = vmatprep.subr.mxu0 0.0
    %1309 = vmatpush1.msra.mxu0 0.0
    %1310 = vmatprep.subr.mxu0 0.0
    %1311 = vmatpush1.msra.mxu0 0.0
    %1312 = vmatprep.subr.mxu0 0.0
    %1313 = vmatpush1.msra.mxu0 0.0
    %1314 = vmatprep.subr.mxu0 0.0
    %1315 = vmatpush1.msra.mxu0 0.0
    %1316 = vmatprep.subr.mxu0 0.0
    %1317 = vmatpush1.msra.mxu0 0.0
    %1318 = vmatprep.subr.mxu0 0.0
    %1319 = vmatpush1.msra.mxu0 0.0
    %1320 = vmatprep.subr.mxu0 0.0
    %1321 = vmatpush1.msra.mxu0 0.0
    %1322 = vmatprep.subr.mxu0 0.0
    %1323 = vmatpush1.msra.mxu0 0.0
    %1324 = vmatprep.subr.mxu0 0.0
    %1325 = vmatpush1.msra.mxu0 0.0
    %1326 = vmatprep.subr.mxu0 0.0
    %1327 = vmatpush1.msra.mxu0 0.0
    %1328 = vmatprep.subr.mxu0 0.0
    %1329 = vmatpush1.msra.mxu0 0.0
    %1330 = vmatprep.subr.mxu0 0.0
    %1331 = vmatpush1.msra.mxu0 0.0
    %1332 = vmatprep.subr.mxu0 0.0
    %1333 = vmatpush1.msra.mxu0 0.0
    %1334 = vmatprep.subr.mxu0 0.0
    %1335 = vmatpush1.msra.mxu0 0.0
    %1336 = vmatprep.subr.mxu0 0.0
    %1337 = vmatpush1.msra.mxu0 0.0
    %1338 = vmatprep.subr.mxu0 0.0
    %1339 = vmatpush1.msra.mxu0 0.0
    %1340 = vmatprep.subr.mxu0 0.0
    %1341 = vmatpush1.msra.mxu0 0.0
    %1342 = vmatprep.subr.mxu0 0.0
    %1343 = vmatpush1.msra.mxu0 0.0
    %1344 = vmatprep.subr.mxu0 0.0
    %1345 = vmatpush1.msra.mxu0 0.0
    %1346 = vmatprep.subr.mxu0 0.0
    %1347 = vmatpush1.msra.mxu0 0.0
    %1348 = vmatprep.mubr.f32.mxu0 0.0
    %1349 = vmatmul.mubr.f32.gmra.mrb[0].mxu0 %v1101
    %v1350 = vpop.f32.mrb[0].mxu0
    %v1351 = vadd.f32 0.0, %v1350
    %v1352 = vpop.f32.mrb[0].mxu0
    %1353 = vmatprep.mubr.f32.mxu0 0.0
    %1354 = vmatmul.mubr.f32.gmra.mrb[0].mxu0 %v1104
    %v1355 = vpop.f32.mrb[0].mxu0
    %v1356 = vadd.f32 0.0, %v1355
    %v1357 = vpop.f32.mrb[0].mxu0
    %1358 = vdwg.mxu0
    %v1359 = vld [vmem:[%s3 + $0x20] sm:$0xff]
    %v1360 = vld [vmem:[%s3 + $0x28] sm:$0xff]
    %v1361 = vld [vmem:[%s3 + $0x30] sm:$0xff]
    %v1362 = vld [vmem:[%s3 + $0x38] sm:$0xff]
    %v1363 = vld [vmem:[%s3 + $0xa0] sm:$0xff]
    %v1364 = vld [vmem:[%s3 + $0xa8] sm:$0xff]
    %v1365 = vld [vmem:[%s3 + $0xb0] sm:$0xff]
    %v1366 = vld [vmem:[%s3 + $0xb8] sm:$0xff]
    %1367 = vmatprep.subr.mxu0 0.0
    %1368 = vmatpush1.msra.mxu0 %v1359
    %1369 = vmatprep.subr.mxu0 0.0
    %1370 = vmatpush1.msra.mxu0 %v1360
    %1371 = vmatprep.subr.mxu0 0.0
    %1372 = vmatpush1.msra.mxu0 %v1361
    %1373 = vmatprep.subr.mxu0 0.0
    %1374 = vmatpush1.msra.mxu0 %v1362
    %1375 = vmatprep.subr.mxu0 0.0
    %1376 = vmatpush1.msra.mxu0 0.0
    %1377 = vmatprep.subr.mxu0 0.0
    %1378 = vmatpush1.msra.mxu0 0.0
    %1379 = vmatprep.subr.mxu0 0.0
    %1380 = vmatpush1.msra.mxu0 0.0
    %1381 = vmatprep.subr.mxu0 0.0
    %1382 = vmatpush1.msra.mxu0 0.0
    %1383 = vmatprep.subr.mxu0 0.0
    %1384 = vmatpush1.msra.mxu0 0.0
    %1385 = vmatprep.subr.mxu0 0.0
    %1386 = vmatpush1.msra.mxu0 0.0
    %1387 = vmatprep.subr.mxu0 0.0
    %1388 = vmatpush1.msra.mxu0 0.0
    %1389 = vmatprep.subr.mxu0 0.0
    %1390 = vmatpush1.msra.mxu0 0.0
    %1391 = vmatprep.subr.mxu0 0.0
    %1392 = vmatpush1.msra.mxu0 0.0
    %1393 = vmatprep.subr.mxu0 0.0
    %1394 = vmatpush1.msra.mxu0 0.0
    %1395 = vmatprep.subr.mxu0 0.0
    %1396 = vmatpush1.msra.mxu0 0.0
    %1397 = vmatprep.subr.mxu0 0.0
    %1398 = vmatpush1.msra.mxu0 0.0
    %1399 = vmatprep.subr.mxu0 0.0
    %1400 = vmatpush1.msra.mxu0 0.0
    %1401 = vmatprep.subr.mxu0 0.0
    %1402 = vmatpush1.msra.mxu0 0.0
    %1403 = vmatprep.subr.mxu0 0.0
    %1404 = vmatpush1.msra.mxu0 0.0
    %1405 = vmatprep.subr.mxu0 0.0
    %1406 = vmatpush1.msra.mxu0 0.0
    %1407 = vmatprep.subr.mxu0 0.0
    %1408 = vmatpush1.msra.mxu0 0.0
    %1409 = vmatprep.subr.mxu0 0.0
    %1410 = vmatpush1.msra.mxu0 0.0
    %1411 = vmatprep.subr.mxu0 0.0
    %1412 = vmatpush1.msra.mxu0 0.0
    %1413 = vmatprep.subr.mxu0 0.0
    %1414 = vmatpush1.msra.mxu0 0.0
    %1415 = vmatprep.subr.mxu0 0.0
    %1416 = vmatpush1.msra.mxu0 0.0
    %1417 = vmatprep.subr.mxu0 0.0
    %1418 = vmatpush1.msra.mxu0 0.0
    %1419 = vmatprep.subr.mxu0 0.0
    %1420 = vmatpush1.msra.mxu0 0.0
    %1421 = vmatprep.subr.mxu0 0.0
    %1422 = vmatpush1.msra.mxu0 0.0
    %1423 = vmatprep.subr.mxu0 0.0
    %1424 = vmatpush1.msra.mxu0 0.0
    %1425 = vmatprep.subr.mxu0 0.0
    %1426 = vmatpush1.msra.mxu0 0.0
    %1427 = vmatprep.subr.mxu0 0.0
    %1428 = vmatpush1.msra.mxu0 0.0
    %1429 = vmatprep.subr.mxu0 0.0
    %1430 = vmatpush1.msra.mxu0 0.0
    %1431 = vmatprep.mubr.f32.mxu0 0.0
    %1432 = vmatmul.mubr.f32.gmra.mrb[0].mxu0 %v1101
    %v1433 = vpop.f32.mrb[0].mxu0
    %v1434 = vadd.f32 0.0, %v1433
    %v1435 = vpop.f32.mrb[0].mxu0
    %1436 = vmatprep.mubr.f32.mxu0 0.0
    %1437 = vmatmul.mubr.f32.gmra.mrb[0].mxu0 %v1104
    %v1438 = vpop.f32.mrb[0].mxu0
    %v1439 = vadd.f32 0.0, %v1438
    %v1440 = vpop.f32.mrb[0].mxu0
    %1441 = vdwg.mxu0
    %v1443 = vsel %vm29, %v1434, 0
    %v1446 = vsel %vm29, %v1439, 0
    %1448 = vmatprep.subr.mxu0 0.0
    %1449 = vmatpush1.xpose.msra.mxu0 %v1101
    %1450 = vmatprep.subr.mxu0 0.0
    %1451 = vmatpush1.xpose.msra.mxu0 %v1104
    %1452 = vmatprep.subr.mxu0 0.0
    %1453 = vmatpush1.xpose.msra.mxu0 0.0
    %1454 = vmatprep.subr.mxu0 0.0
    %1455 = vmatpush1.xpose.msra.mxu0 0.0
    %1456 = vmatprep.subr.mxu0 0.0
    %1457 = vmatpush1.xpose.msra.mxu0 0.0
    %1458 = vmatprep.subr.mxu0 0.0
    %1459 = vmatpush1.xpose.msra.mxu0 0.0
    %1460 = vmatprep.subr.mxu0 0.0
    %1461 = vmatpush1.xpose.msra.mxu0 0.0
    %1462 = vmatprep.subr.mxu0 0.0
    %1463 = vmatpush1.xpose.msra.mxu0 0.0
    %1464 = vmatprep.subr.mxu0 0.0
    %1465 = vmatpush1.xpose.msra.mxu0 0.0
    %1466 = vmatprep.subr.mxu0 0.0
    %1467 = vmatpush1.xpose.msra.mxu0 0.0
    %1468 = vmatprep.subr.mxu0 0.0
    %1469 = vmatpush1.xpose.msra.mxu0 0.0
    %1470 = vmatprep.subr.mxu0 0.0
    %1471 = vmatpush1.xpose.msra.mxu0 0.0
    %1472 = vmatprep.subr.mxu0 0.0
    %1473 = vmatpush1.xpose.msra.mxu0 0.0
    %1474 = vmatprep.subr.mxu0 0.0
    %1475 = vmatpush1.xpose.msra.mxu0 0.0
    %1476 = vmatprep.subr.mxu0 0.0
    %1477 = vmatpush1.xpose.msra.mxu0 0.0
    %1478 = vmatprep.subr.mxu0 0.0
    %1479 = vmatpush1.xpose.msra.mxu0 0.0
    %1480 = vmatprep.subr.mxu0 0.0
    %1481 = vmatpush1.xpose.msra.mxu0 0.0
    %1482 = vmatprep.subr.mxu0 0.0
    %1483 = vmatpush1.xpose.msra.mxu0 0.0
    %1484 = vmatprep.subr.mxu0 0.0
    %1485 = vmatpush1.xpose.msra.mxu0 0.0
    %1486 = vmatprep.subr.mxu0 0.0
    %1487 = vmatpush1.xpose.msra.mxu0 0.0
    %1488 = vmatprep.subr.mxu0 0.0
    %1489 = vmatpush1.xpose.msra.mxu0 0.0
    %1490 = vmatprep.subr.mxu0 0.0
    %1491 = vmatpush1.xpose.msra.mxu0 0.0
    %1492 = vmatprep.subr.mxu0 0.0
    %1493 = vmatpush1.xpose.msra.mxu0 0.0
    %1494 = vmatprep.subr.mxu0 0.0
    %1495 = vmatpush1.xpose.msra.mxu0 0.0
    %1496 = vmatprep.subr.mxu0 0.0
    %1497 = vmatpush1.xpose.msra.mxu0 0.0
    %1498 = vmatprep.subr.mxu0 0.0
    %1499 = vmatpush1.xpose.msra.mxu0 0.0
    %1500 = vmatprep.subr.mxu0 0.0
    %1501 = vmatpush1.xpose.msra.mxu0 0.0
    %1502 = vmatprep.subr.mxu0 0.0
    %1503 = vmatpush1.xpose.msra.mxu0 0.0
    %1504 = vmatprep.subr.mxu0 0.0
    %1505 = vmatpush1.xpose.msra.mxu0 0.0
    %1506 = vmatprep.subr.mxu0 0.0
    %1507 = vmatpush1.xpose.msra.mxu0 0.0
    %1508 = vmatprep.subr.mxu0 0.0
    %1509 = vmatpush1.xpose.msra.mxu0 0.0
    %1510 = vmatprep.subr.mxu0 0.0
    %1511 = vmatpush1.xpose.msra.mxu0 0.0
    %1512 = vmatprep.mubr.f32.mxu0 0.0
    %1513 = vmatmul.mubr.f32.gmra.mrb[0].mxu0 %v1443
    %v1514 = vpop.f32.mrb[0].mxu0
    %v1515 = vadd.f32 %v1049, %v1514
    %v1516 = vpop.f32.mrb[0].mxu0
    %1517 = vmatprep.mubr.f32.mxu0 0.0
    %1518 = vmatmul.mubr.f32.gmra.mrb[0].mxu0 %v1446
    %v1519 = vpop.f32.mrb[0].mxu0
    %v1520 = vadd.f32 %v1050, %v1519
    %v1521 = vpop.f32.mrb[0].mxu0
    %1522 = vdwg.mxu0
    %v1523 = vsel %vm960, %v1515, -inf
    %1524 = vmax.xlane.f32.xlu0 %v1523
    %v1525 = vpop.xlane.xlu0 %1524
    %v1526 = vsel %vm960, %v1520, -inf
    %1527 = vmax.xlane.f32.xlu0 %v1526
    %v1528 = vpop.xlane.xlu0 %1527
    %v1529 = vsub.f32 %v1515, %v1525
    %v1530 = vsub.f32 %v1520, %v1528
    %v1531 = vmul.f32 %v1529, 1.442695
    %v1532 = vpow.pop %v1531
    %v1533 = vmul.f32 %v1530, 1.442695
    %v1534 = vpow.pop %v1533
    %v1535 = vsel %vm960, %v1532, 0.0
    %1536 = vadd.xlane.f32.xlu0 %v1535
    %v1537 = vpop.xlane.xlu0 %1536
    %v1538 = vsel %vm960, %v1534, 0.0
    %1539 = vadd.xlane.f32.xlu0 %v1538
    %v1540 = vpop.xlane.xlu0 %1539
    %v1541 = vrcp.pop %v1537
    %v1542 = vrcp.pop %v1540
    %v1543 = vmul.f32 %v1532, %v1541
    %v1544 = vmul.f32 %v1534, %v1542
    %1545 = vmatprep.subr.mxu0 0.0
    %1546 = vmatpush1.msra.mxu0 %v1363
    %1547 = vmatprep.subr.mxu0 0.0
    %1548 = vmatpush1.msra.mxu0 %v1364
    %1549 = vmatprep.subr.mxu0 0.0
    %1550 = vmatpush1.msra.mxu0 %v1365
    %1551 = vmatprep.subr.mxu0 0.0
    %1552 = vmatpush1.msra.mxu0 %v1366
    %1553 = vmatprep.subr.mxu0 0.0
    %1554 = vmatpush1.msra.mxu0 0.0
    %1555 = vmatprep.subr.mxu0 0.0
    %1556 = vmatpush1.msra.mxu0 0.0
    %1557 = vmatprep.subr.mxu0 0.0
    %1558 = vmatpush1.msra.mxu0 0.0
    %1559 = vmatprep.subr.mxu0 0.0
    %1560 = vmatpush1.msra.mxu0 0.0
    %1561 = vmatprep.subr.mxu0 0.0
    %1562 = vmatpush1.msra.mxu0 0.0
    %1563 = vmatprep.subr.mxu0 0.0
    %1564 = vmatpush1.msra.mxu0 0.0
    %1565 = vmatprep.subr.mxu0 0.0
    %1566 = vmatpush1.msra.mxu0 0.0
    %1567 = vmatprep.subr.mxu0 0.0
    %1568 = vmatpush1.msra.mxu0 0.0
    %1569 = vmatprep.subr.mxu0 0.0
    %1570 = vmatpush1.msra.mxu0 0.0
    %1571 = vmatprep.subr.mxu0 0.0
    %1572 = vmatpush1.msra.mxu0 0.0
    %1573 = vmatprep.subr.mxu0 0.0
    %1574 = vmatpush1.msra.mxu0 0.0
    %1575 = vmatprep.subr.mxu0 0.0
    %1576 = vmatpush1.msra.mxu0 0.0
    %1577 = vmatprep.subr.mxu0 0.0
    %1578 = vmatpush1.msra.mxu0 0.0
    %1579 = vmatprep.subr.mxu0 0.0
    %1580 = vmatpush1.msra.mxu0 0.0
    %1581 = vmatprep.subr.mxu0 0.0
    %1582 = vmatpush1.msra.mxu0 0.0
    %1583 = vmatprep.subr.mxu0 0.0
    %1584 = vmatpush1.msra.mxu0 0.0
    %1585 = vmatprep.subr.mxu0 0.0
    %1586 = vmatpush1.msra.mxu0 0.0
    %1587 = vmatprep.subr.mxu0 0.0
    %1588 = vmatpush1.msra.mxu0 0.0
    %1589 = vmatprep.subr.mxu0 0.0
    %1590 = vmatpush1.msra.mxu0 0.0
    %1591 = vmatprep.subr.mxu0 0.0
    %1592 = vmatpush1.msra.mxu0 0.0
    %1593 = vmatprep.subr.mxu0 0.0
    %1594 = vmatpush1.msra.mxu0 0.0
    %1595 = vmatprep.subr.mxu0 0.0
    %1596 = vmatpush1.msra.mxu0 0.0
    %1597 = vmatprep.subr.mxu0 0.0
    %1598 = vmatpush1.msra.mxu0 0.0
    %1599 = vmatprep.subr.mxu0 0.0
    %1600 = vmatpush1.msra.mxu0 0.0
    %1601 = vmatprep.subr.mxu0 0.0
    %1602 = vmatpush1.msra.mxu0 0.0
    %1603 = vmatprep.subr.mxu0 0.0
    %1604 = vmatpush1.msra.mxu0 0.0
    %1605 = vmatprep.subr.mxu0 0.0
    %1606 = vmatpush1.msra.mxu0 0.0
    %1607 = vmatprep.subr.mxu0 0.0
    %1608 = vmatpush1.msra.mxu0 0.0
    %1609 = vmatprep.mubr.f32.mxu0 0.0
    %1610 = vmatmul.mubr.f32.gmra.mrb[0].mxu0 %v1101
    %v1611 = vpop.f32.mrb[0].mxu0
    %v1612 = vadd.f32 0.0, %v1611
    %v1613 = vpop.f32.mrb[0].mxu0
    %1614 = vmatprep.mubr.f32.mxu0 0.0
    %1615 = vmatmul.mubr.f32.gmra.mrb[0].mxu0 %v1104
    %v1616 = vpop.f32.mrb[0].mxu0
    %v1617 = vadd.f32 0.0, %v1616
    %v1618 = vpop.f32.mrb[0].mxu0
    %1619 = vdwg.mxu0
    %v1621 = vsel %vm960, %v1543, 0
    %v1624 = vsel %vm960, %v1544, 0
    %1626 = vmatprep.subr.mxu0 0.0
    %1627 = vmatpush1.msra.mxu0 %v1612
    %1628 = vmatprep.subr.mxu0 0.0
    %1629 = vmatpush1.msra.mxu0 %v1617
    %1630 = vmatprep.subr.mxu0 0.0
    %1631 = vmatpush1.msra.mxu0 0.0
    %1632 = vmatprep.subr.mxu0 0.0
    %1633 = vmatpush1.msra.mxu0 0.0
    %1634 = vmatprep.subr.mxu0 0.0
    %1635 = vmatpush1.msra.mxu0 0.0
    %1636 = vmatprep.subr.mxu0 0.0
    %1637 = vmatpush1.msra.mxu0 0.0
    %1638 = vmatprep.subr.mxu0 0.0
    %1639 = vmatpush1.msra.mxu0 0.0
    %1640 = vmatprep.subr.mxu0 0.0
    %1641 = vmatpush1.msra.mxu0 0.0
    %1642 = vmatprep.subr.mxu0 0.0
    %1643 = vmatpush1.msra.mxu0 0.0
    %1644 = vmatprep.subr.mxu0 0.0
    %1645 = vmatpush1.msra.mxu0 0.0
    %1646 = vmatprep.subr.mxu0 0.0
    %1647 = vmatpush1.msra.mxu0 0.0
    %1648 = vmatprep.subr.mxu0 0.0
    %1649 = vmatpush1.msra.mxu0 0.0
    %1650 = vmatprep.subr.mxu0 0.0
    %1651 = vmatpush1.msra.mxu0 0.0
    %1652 = vmatprep.subr.mxu0 0.0
    %1653 = vmatpush1.msra.mxu0 0.0
    %1654 = vmatprep.subr.mxu0 0.0
    %1655 = vmatpush1.msra.mxu0 0.0
    %1656 = vmatprep.subr.mxu0 0.0
    %1657 = vmatpush1.msra.mxu0 0.0
    %1658 = vmatprep.subr.mxu0 0.0
    %1659 = vmatpush1.msra.mxu0 0.0
    %1660 = vmatprep.subr.mxu0 0.0
    %1661 = vmatpush1.msra.mxu0 0.0
    %1662 = vmatprep.subr.mxu0 0.0
    %1663 = vmatpush1.msra.mxu0 0.0
    %1664 = vmatprep.subr.mxu0 0.0
    %1665 = vmatpush1.msra.mxu0 0.0
    %1666 = vmatprep.subr.mxu0 0.0
    %1667 = vmatpush1.msra.mxu0 0.0
    %1668 = vmatprep.subr.mxu0 0.0
    %1669 = vmatpush1.msra.mxu0 0.0
    %1670 = vmatprep.subr.mxu0 0.0
    %1671 = vmatpush1.msra.mxu0 0.0
    %1672 = vmatprep.subr.mxu0 0.0
    %1673 = vmatpush1.msra.mxu0 0.0
    %1674 = vmatprep.subr.mxu0 0.0
    %1675 = vmatpush1.msra.mxu0 0.0
    %1676 = vmatprep.subr.mxu0 0.0
    %1677 = vmatpush1.msra.mxu0 0.0
    %1678 = vmatprep.subr.mxu0 0.0
    %1679 = vmatpush1.msra.mxu0 0.0
    %1680 = vmatprep.subr.mxu0 0.0
    %1681 = vmatpush1.msra.mxu0 0.0
    %1682 = vmatprep.subr.mxu0 0.0
    %1683 = vmatpush1.msra.mxu0 0.0
    %1684 = vmatprep.subr.mxu0 0.0
    %1685 = vmatpush1.msra.mxu0 0.0
    %1686 = vmatprep.subr.mxu0 0.0
    %1687 = vmatpush1.msra.mxu0 0.0
    %1688 = vmatprep.subr.mxu0 0.0
    %1689 = vmatpush1.msra.mxu0 0.0
    %1690 = vmatprep.mubr.f32.mxu0 0.0
    %1691 = vmatmul.mubr.f32.gmra.mrb[0].mxu0 %v1621
    %v1692 = vpop.f32.mrb[0].mxu0
    %v1693 = vadd.f32 0.0, %v1692
    %v1694 = vpop.f32.mrb[0].mxu0
    %1695 = vmatprep.mubr.f32.mxu0 0.0
    %1696 = vmatmul.mubr.f32.gmra.mrb[0].mxu0 %v1624
    %v1697 = vpop.f32.mrb[0].mxu0
    %v1698 = vadd.f32 0.0, %v1697
    %v1699 = vpop.f32.mrb[0].mxu0
    %1700 = vdwg.mxu0
    %v1702 = vsel %vm960, %v1282, 0
    %v1705 = vsel %vm960, %v1283, 0
    %1707 = vmatprep.subr.mxu0 0.0
    %1708 = vmatpush1.msra.mxu0 %v1351
    %1709 = vmatprep.subr.mxu0 0.0
    %1710 = vmatpush1.msra.mxu0 %v1356
    %1711 = vmatprep.subr.mxu0 0.0
    %1712 = vmatpush1.msra.mxu0 0.0
    %1713 = vmatprep.subr.mxu0 0.0
    %1714 = vmatpush1.msra.mxu0 0.0
    %1715 = vmatprep.subr.mxu0 0.0
    %1716 = vmatpush1.msra.mxu0 0.0
    %1717 = vmatprep.subr.mxu0 0.0
    %1718 = vmatpush1.msra.mxu0 0.0
    %1719 = vmatprep.subr.mxu0 0.0
    %1720 = vmatpush1.msra.mxu0 0.0
    %1721 = vmatprep.subr.mxu0 0.0
    %1722 = vmatpush1.msra.mxu0 0.0
    %1723 = vmatprep.subr.mxu0 0.0
    %1724 = vmatpush1.msra.mxu0 0.0
    %1725 = vmatprep.subr.mxu0 0.0
    %1726 = vmatpush1.msra.mxu0 0.0
    %1727 = vmatprep.subr.mxu0 0.0
    %1728 = vmatpush1.msra.mxu0 0.0
    %1729 = vmatprep.subr.mxu0 0.0
    %1730 = vmatpush1.msra.mxu0 0.0
    %1731 = vmatprep.subr.mxu0 0.0
    %1732 = vmatpush1.msra.mxu0 0.0
    %1733 = vmatprep.subr.mxu0 0.0
    %1734 = vmatpush1.msra.mxu0 0.0
    %1735 = vmatprep.subr.mxu0 0.0
    %1736 = vmatpush1.msra.mxu0 0.0
    %1737 = vmatprep.subr.mxu0 0.0
    %1738 = vmatpush1.msra.mxu0 0.0
    %1739 = vmatprep.subr.mxu0 0.0
    %1740 = vmatpush1.msra.mxu0 0.0
    %1741 = vmatprep.subr.mxu0 0.0
    %1742 = vmatpush1.msra.mxu0 0.0
    %1743 = vmatprep.subr.mxu0 0.0
    %1744 = vmatpush1.msra.mxu0 0.0
    %1745 = vmatprep.subr.mxu0 0.0
    %1746 = vmatpush1.msra.mxu0 0.0
    %1747 = vmatprep.subr.mxu0 0.0
    %1748 = vmatpush1.msra.mxu0 0.0
    %1749 = vmatprep.subr.mxu0 0.0
    %1750 = vmatpush1.msra.mxu0 0.0
    %1751 = vmatprep.subr.mxu0 0.0
    %1752 = vmatpush1.msra.mxu0 0.0
    %1753 = vmatprep.subr.mxu0 0.0
    %1754 = vmatpush1.msra.mxu0 0.0
    %1755 = vmatprep.subr.mxu0 0.0
    %1756 = vmatpush1.msra.mxu0 0.0
    %1757 = vmatprep.subr.mxu0 0.0
    %1758 = vmatpush1.msra.mxu0 0.0
    %1759 = vmatprep.subr.mxu0 0.0
    %1760 = vmatpush1.msra.mxu0 0.0
    %1761 = vmatprep.subr.mxu0 0.0
    %1762 = vmatpush1.msra.mxu0 0.0
    %1763 = vmatprep.subr.mxu0 0.0
    %1764 = vmatpush1.msra.mxu0 0.0
    %1765 = vmatprep.subr.mxu0 0.0
    %1766 = vmatpush1.msra.mxu0 0.0
    %1767 = vmatprep.subr.mxu0 0.0
    %1768 = vmatpush1.msra.mxu0 0.0
    %1769 = vmatprep.subr.mxu0 0.0
    %1770 = vmatpush1.msra.mxu0 0.0
    %1771 = vmatprep.mubr.f32.mxu0 0.0
    %1772 = vmatmul.mubr.f32.gmra.mrb[0].mxu0 %v1702
    %v1773 = vpop.f32.mrb[0].mxu0
    %v1774 = vadd.f32 %v1693, %v1773
    %v1775 = vpop.f32.mrb[0].mxu0
    %1776 = vmatprep.mubr.f32.mxu0 0.0
    %1777 = vmatmul.mubr.f32.gmra.mrb[0].mxu0 %v1705
    %v1778 = vpop.f32.mrb[0].mxu0
    %v1779 = vadd.f32 %v1698, %v1778
    %v1780 = vpop.f32.mrb[0].mxu0
    %1781 = vdwg.mxu0
    %v1782 = vld [vmem:[%s3 + $0x40] sm:$0xff]
    %v1783 = vld [vmem:[%s3 + $0x48] sm:$0xff]
    %v1784 = vld [vmem:[%s3 + $0x50] sm:$0xff]
    %v1785 = vld [vmem:[%s3 + $0x58] sm:$0xff]
    %v1786 = vld [vmem:[%s3 + $0xc0] sm:$0xff]
    %v1787 = vld [vmem:[%s3 + $0xc8] sm:$0xff]
    %v1788 = vld [vmem:[%s3 + $0xd0] sm:$0xff]
    %v1789 = vld [vmem:[%s3 + $0xd8] sm:$0xff]
    %1790 = vmatprep.subr.mxu0 0.0
    %1791 = vmatpush1.msra.mxu0 %v1782
    %1792 = vmatprep.subr.mxu0 0.0
    %1793 = vmatpush1.msra.mxu0 %v1783
    %1794 = vmatprep.subr.mxu0 0.0
    %1795 = vmatpush1.msra.mxu0 %v1784
    %1796 = vmatprep.subr.mxu0 0.0
    %1797 = vmatpush1.msra.mxu0 %v1785
    %1798 = vmatprep.subr.mxu0 0.0
    %1799 = vmatpush1.msra.mxu0 0.0
    %1800 = vmatprep.subr.mxu0 0.0
    %1801 = vmatpush1.msra.mxu0 0.0
    %1802 = vmatprep.subr.mxu0 0.0
    %1803 = vmatpush1.msra.mxu0 0.0
    %1804 = vmatprep.subr.mxu0 0.0
    %1805 = vmatpush1.msra.mxu0 0.0
    %1806 = vmatprep.subr.mxu0 0.0
    %1807 = vmatpush1.msra.mxu0 0.0
    %1808 = vmatprep.subr.mxu0 0.0
    %1809 = vmatpush1.msra.mxu0 0.0
    %1810 = vmatprep.subr.mxu0 0.0
    %1811 = vmatpush1.msra.mxu0 0.0
    %1812 = vmatprep.subr.mxu0 0.0
    %1813 = vmatpush1.msra.mxu0 0.0
    %1814 = vmatprep.subr.mxu0 0.0
    %1815 = vmatpush1.msra.mxu0 0.0
    %1816 = vmatprep.subr.mxu0 0.0
    %1817 = vmatpush1.msra.mxu0 0.0
    %1818 = vmatprep.subr.mxu0 0.0
    %1819 = vmatpush1.msra.mxu0 0.0
    %1820 = vmatprep.subr.mxu0 0.0
    %1821 = vmatpush1.msra.mxu0 0.0
    %1822 = vmatprep.subr.mxu0 0.0
    %1823 = vmatpush1.msra.mxu0 0.0
    %1824 = vmatprep.subr.mxu0 0.0
    %1825 = vmatpush1.msra.mxu0 0.0
    %1826 = vmatprep.subr.mxu0 0.0
    %1827 = vmatpush1.msra.mxu0 0.0
    %1828 = vmatprep.subr.mxu0 0.0
    %1829 = vmatpush1.msra.mxu0 0.0
    %1830 = vmatprep.subr.mxu0 0.0
    %1831 = vmatpush1.msra.mxu0 0.0
    %1832 = vmatprep.subr.mxu0 0.0
    %1833 = vmatpush1.msra.mxu0 0.0
    %1834 = vmatprep.subr.mxu0 0.0
    %1835 = vmatpush1.msra.mxu0 0.0
    %1836 = vmatprep.subr.mxu0 0.0
    %1837 = vmatpush1.msra.mxu0 0.0
    %1838 = vmatprep.subr.mxu0 0.0
    %1839 = vmatpush1.msra.mxu0 0.0
    %1840 = vmatprep.subr.mxu0 0.0
    %1841 = vmatpush1.msra.mxu0 0.0
    %1842 = vmatprep.subr.mxu0 0.0
    %1843 = vmatpush1.msra.mxu0 0.0
    %1844 = vmatprep.subr.mxu0 0.0
    %1845 = vmatpush1.msra.mxu0 0.0
    %1846 = vmatprep.subr.mxu0 0.0
    %1847 = vmatpush1.msra.mxu0 0.0
    %1848 = vmatprep.subr.mxu0 0.0
    %1849 = vmatpush1.msra.mxu0 0.0
    %1850 = vmatprep.subr.mxu0 0.0
    %1851 = vmatpush1.msra.mxu0 0.0
    %1852 = vmatprep.subr.mxu0 0.0
    %1853 = vmatpush1.msra.mxu0 0.0
    %1854 = vmatprep.mubr.f32.mxu0 0.0
    %1855 = vmatmul.mubr.f32.gmra.mrb[0].mxu0 %v1101
    %v1856 = vpop.f32.mrb[0].mxu0
    %v1857 = vadd.f32 0.0, %v1856
    %v1858 = vpop.f32.mrb[0].mxu0
    %1859 = vmatprep.mubr.f32.mxu0 0.0
    %1860 = vmatmul.mubr.f32.gmra.mrb[0].mxu0 %v1104
    %v1861 = vpop.f32.mrb[0].mxu0
    %v1862 = vadd.f32 0.0, %v1861
    %v1863 = vpop.f32.mrb[0].mxu0
    %1864 = vdwg.mxu0
    %v1866 = vsel %vm29, %v1857, 0
    %v1869 = vsel %vm29, %v1862, 0
    %1871 = vmatprep.subr.mxu0 0.0
    %1872 = vmatpush1.xpose.msra.mxu0 %v1101
    %1873 = vmatprep.subr.mxu0 0.0
    %1874 = vmatpush1.xpose.msra.mxu0 %v1104
    %1875 = vmatprep.subr.mxu0 0.0
    %1876 = vmatpush1.xpose.msra.mxu0 0.0
    %1877 = vmatprep.subr.mxu0 0.0
    %1878 = vmatpush1.xpose.msra.mxu0 0.0
    %1879 = vmatprep.subr.mxu0 0.0
    %1880 = vmatpush1.xpose.msra.mxu0 0.0
    %1881 = vmatprep.subr.mxu0 0.0
    %1882 = vmatpush1.xpose.msra.mxu0 0.0
    %1883 = vmatprep.subr.mxu0 0.0
    %1884 = vmatpush1.xpose.msra.mxu0 0.0
    %1885 = vmatprep.subr.mxu0 0.0
    %1886 = vmatpush1.xpose.msra.mxu0 0.0
    %1887 = vmatprep.subr.mxu0 0.0
    %1888 = vmatpush1.xpose.msra.mxu0 0.0
    %1889 = vmatprep.subr.mxu0 0.0
    %1890 = vmatpush1.xpose.msra.mxu0 0.0
    %1891 = vmatprep.subr.mxu0 0.0
    %1892 = vmatpush1.xpose.msra.mxu0 0.0
    %1893 = vmatprep.subr.mxu0 0.0
    %1894 = vmatpush1.xpose.msra.mxu0 0.0
    %1895 = vmatprep.subr.mxu0 0.0
    %1896 = vmatpush1.xpose.msra.mxu0 0.0
    %1897 = vmatprep.subr.mxu0 0.0
    %1898 = vmatpush1.xpose.msra.mxu0 0.0
    %1899 = vmatprep.subr.mxu0 0.0
    %1900 = vmatpush1.xpose.msra.mxu0 0.0
    %1901 = vmatprep.subr.mxu0 0.0
    %1902 = vmatpush1.xpose.msra.mxu0 0.0
    %1903 = vmatprep.subr.mxu0 0.0
    %1904 = vmatpush1.xpose.msra.mxu0 0.0
    %1905 = vmatprep.subr.mxu0 0.0
    %1906 = vmatpush1.xpose.msra.mxu0 0.0
    %1907 = vmatprep.subr.mxu0 0.0
    %1908 = vmatpush1.xpose.msra.mxu0 0.0
    %1909 = vmatprep.subr.mxu0 0.0
    %1910 = vmatpush1.xpose.msra.mxu0 0.0
    %1911 = vmatprep.subr.mxu0 0.0
    %1912 = vmatpush1.xpose.msra.mxu0 0.0
    %1913 = vmatprep.subr.mxu0 0.0
    %1914 = vmatpush1.xpose.msra.mxu0 0.0
    %1915 = vmatprep.subr.mxu0 0.0
    %1916 = vmatpush1.xpose.msra.mxu0 0.0
    %1917 = vmatprep.subr.mxu0 0.0
    %1918 = vmatpush1.xpose.msra.mxu0 0.0
    %1919 = vmatprep.subr.mxu0 0.0
    %1920 = vmatpush1.xpose.msra.mxu0 0.0
    %1921 = vmatprep.subr.mxu0 0.0
    %1922 = vmatpush1.xpose.msra.mxu0 0.0
    %1923 = vmatprep.subr.mxu0 0.0
    %1924 = vmatpush1.xpose.msra.mxu0 0.0
    %1925 = vmatprep.subr.mxu0 0.0
    %1926 = vmatpush1.xpose.msra.mxu0 0.0
    %1927 = vmatprep.subr.mxu0 0.0
    %1928 = vmatpush1.xpose.msra.mxu0 0.0
    %1929 = vmatprep.subr.mxu0 0.0
    %1930 = vmatpush1.xpose.msra.mxu0 0.0
    %1931 = vmatprep.subr.mxu0 0.0
    %1932 = vmatpush1.xpose.msra.mxu0 0.0
    %1933 = vmatprep.subr.mxu0 0.0
    %1934 = vmatpush1.xpose.msra.mxu0 0.0
    %1935 = vmatprep.mubr.f32.mxu0 0.0
    %1936 = vmatmul.mubr.f32.gmra.mrb[0].mxu0 %v1866
    %v1937 = vpop.f32.mrb[0].mxu0
    %v1938 = vadd.f32 %v1049, %v1937
    %v1939 = vpop.f32.mrb[0].mxu0
    %1940 = vmatprep.mubr.f32.mxu0 0.0
    %1941 = vmatmul.mubr.f32.gmra.mrb[0].mxu0 %v1869
    %v1942 = vpop.f32.mrb[0].mxu0
    %v1943 = vadd.f32 %v1050, %v1942
    %v1944 = vpop.f32.mrb[0].mxu0
    %1945 = vdwg.mxu0
    %v1946 = vsel %vm960, %v1938, -inf
    %1947 = vmax.xlane.f32.xlu0 %v1946
    %v1948 = vpop.xlane.xlu0 %1947
    %v1949 = vsel %vm960, %v1943, -inf
    %1950 = vmax.xlane.f32.xlu0 %v1949
    %v1951 = vpop.xlane.xlu0 %1950
    %v1952 = vsub.f32 %v1938, %v1948
    %v1953 = vsub.f32 %v1943, %v1951
    %v1954 = vmul.f32 %v1952, 1.442695
    %v1955 = vpow.pop %v1954
    %v1956 = vmul.f32 %v1953, 1.442695
    %v1957 = vpow.pop %v1956
    %v1958 = vsel %vm960, %v1955, 0.0
    %1959 = vadd.xlane.f32.xlu0 %v1958
    %v1960 = vpop.xlane.xlu0 %1959
    %v1961 = vsel %vm960, %v1957, 0.0
    %1962 = vadd.xlane.f32.xlu0 %v1961
    %v1963 = vpop.xlane.xlu0 %1962
    %v1964 = vrcp.pop %v1960
    %v1965 = vrcp.pop %v1963
    %v1966 = vmul.f32 %v1955, %v1964
    %v1967 = vmul.f32 %v1957, %v1965
    %1968 = vmatprep.subr.mxu0 0.0
    %1969 = vmatpush1.msra.mxu0 %v1786
    %1970 = vmatprep.subr.mxu0 0.0
    %1971 = vmatpush1.msra.mxu0 %v1787
    %1972 = vmatprep.subr.mxu0 0.0
    %1973 = vmatpush1.msra.mxu0 %v1788
    %1974 = vmatprep.subr.mxu0 0.0
    %1975 = vmatpush1.msra.mxu0 %v1789
    %1976 = vmatprep.subr.mxu0 0.0
    %1977 = vmatpush1.msra.mxu0 0.0
    %1978 = vmatprep.subr.mxu0 0.0
    %1979 = vmatpush1.msra.mxu0 0.0
    %1980 = vmatprep.subr.mxu0 0.0
    %1981 = vmatpush1.msra.mxu0 0.0
    %1982 = vmatprep.subr.mxu0 0.0
    %1983 = vmatpush1.msra.mxu0 0.0
    %1984 = vmatprep.subr.mxu0 0.0
    %1985 = vmatpush1.msra.mxu0 0.0
    %1986 = vmatprep.subr.mxu0 0.0
    %1987 = vmatpush1.msra.mxu0 0.0
    %1988 = vmatprep.subr.mxu0 0.0
    %1989 = vmatpush1.msra.mxu0 0.0
    %1990 = vmatprep.subr.mxu0 0.0
    %1991 = vmatpush1.msra.mxu0 0.0
    %1992 = vmatprep.subr.mxu0 0.0
    %1993 = vmatpush1.msra.mxu0 0.0
    %1994 = vmatprep.subr.mxu0 0.0
    %1995 = vmatpush1.msra.mxu0 0.0
    %1996 = vmatprep.subr.mxu0 0.0
    %1997 = vmatpush1.msra.mxu0 0.0
    %1998 = vmatprep.subr.mxu0 0.0
    %1999 = vmatpush1.msra.mxu0 0.0
    %2000 = vmatprep.subr.mxu0 0.0
    %2001 = vmatpush1.msra.mxu0 0.0
    %2002 = vmatprep.subr.mxu0 0.0
    %2003 = vmatpush1.msra.mxu0 0.0
    %2004 = vmatprep.subr.mxu0 0.0
    %2005 = vmatpush1.msra.mxu0 0.0
    %2006 = vmatprep.subr.mxu0 0.0
    %2007 = vmatpush1.msra.mxu0 0.0
    %2008 = vmatprep.subr.mxu0 0.0
    %2009 = vmatpush1.msra.mxu0 0.0
    %2010 = vmatprep.subr.mxu0 0.0
    %2011 = vmatpush1.msra.mxu0 0.0
    %2012 = vmatprep.subr.mxu0 0.0
    %2013 = vmatpush1.msra.mxu0 0.0
    %2014 = vmatprep.subr.mxu0 0.0
    %2015 = vmatpush1.msra.mxu0 0.0
    %2016 = vmatprep.subr.mxu0 0.0
    %2017 = vmatpush1.msra.mxu0 0.0
    %2018 = vmatprep.subr.mxu0 0.0
    %2019 = vmatpush1.msra.mxu0 0.0
    %2020 = vmatprep.subr.mxu0 0.0
    %2021 = vmatpush1.msra.mxu0 0.0
    %2022 = vmatprep.subr.mxu0 0.0
    %2023 = vmatpush1.msra.mxu0 0.0
    %2024 = vmatprep.subr.mxu0 0.0
    %2025 = vmatpush1.msra.mxu0 0.0
    %2026 = vmatprep.subr.mxu0 0.0
    %2027 = vmatpush1.msra.mxu0 0.0
    %2028 = vmatprep.subr.mxu0 0.0
    %2029 = vmatpush1.msra.mxu0 0.0
    %2030 = vmatprep.subr.mxu0 0.0
    %2031 = vmatpush1.msra.mxu0 0.0
    %2032 = vmatprep.mubr.f32.mxu0 0.0
    %2033 = vmatmul.mubr.f32.gmra.mrb[0].mxu0 %v1101
    %v2034 = vpop.f32.mrb[0].mxu0
    %v2035 = vadd.f32 0.0, %v2034
    %v2036 = vpop.f32.mrb[0].mxu0
    %2037 = vmatprep.mubr.f32.mxu0 0.0
    %2038 = vmatmul.mubr.f32.gmra.mrb[0].mxu0 %v1104
    %v2039 = vpop.f32.mrb[0].mxu0
    %v2040 = vadd.f32 0.0, %v2039
    %v2041 = vpop.f32.mrb[0].mxu0
    %2042 = vdwg.mxu0
    %v2044 = vsel %vm960, %v1966, 0
    %v2047 = vsel %vm960, %v1967, 0
    %2049 = vmatprep.subr.mxu0 0.0
    %2050 = vmatpush1.msra.mxu0 %v2035
    %2051 = vmatprep.subr.mxu0 0.0
    %2052 = vmatpush1.msra.mxu0 %v2040
    %2053 = vmatprep.subr.mxu0 0.0
    %2054 = vmatpush1.msra.mxu0 0.0
    %2055 = vmatprep.subr.mxu0 0.0
    %2056 = vmatpush1.msra.mxu0 0.0
    %2057 = vmatprep.subr.mxu0 0.0
    %2058 = vmatpush1.msra.mxu0 0.0
    %2059 = vmatprep.subr.mxu0 0.0
    %2060 = vmatpush1.msra.mxu0 0.0
    %2061 = vmatprep.subr.mxu0 0.0
    %2062 = vmatpush1.msra.mxu0 0.0
    %2063 = vmatprep.subr.mxu0 0.0
    %2064 = vmatpush1.msra.mxu0 0.0
    %2065 = vmatprep.subr.mxu0 0.0
    %2066 = vmatpush1.msra.mxu0 0.0
    %2067 = vmatprep.subr.mxu0 0.0
    %2068 = vmatpush1.msra.mxu0 0.0
    %2069 = vmatprep.subr.mxu0 0.0
    %2070 = vmatpush1.msra.mxu0 0.0
    %2071 = vmatprep.subr.mxu0 0.0
    %2072 = vmatpush1.msra.mxu0 0.0
    %2073 = vmatprep.subr.mxu0 0.0
    %2074 = vmatpush1.msra.mxu0 0.0
    %2075 = vmatprep.subr.mxu0 0.0
    %2076 = vmatpush1.msra.mxu0 0.0
    %2077 = vmatprep.subr.mxu0 0.0
    %2078 = vmatpush1.msra.mxu0 0.0
    %2079 = vmatprep.subr.mxu0 0.0
    %2080 = vmatpush1.msra.mxu0 0.0
    %2081 = vmatprep.subr.mxu0 0.0
    %2082 = vmatpush1.msra.mxu0 0.0
    %2083 = vmatprep.subr.mxu0 0.0
    %2084 = vmatpush1.msra.mxu0 0.0
    %2085 = vmatprep.subr.mxu0 0.0
    %2086 = vmatpush1.msra.mxu0 0.0
    %2087 = vmatprep.subr.mxu0 0.0
    %2088 = vmatpush1.msra.mxu0 0.0
    %2089 = vmatprep.subr.mxu0 0.0
    %2090 = vmatpush1.msra.mxu0 0.0
    %2091 = vmatprep.subr.mxu0 0.0
    %2092 = vmatpush1.msra.mxu0 0.0
    %2093 = vmatprep.subr.mxu0 0.0
    %2094 = vmatpush1.msra.mxu0 0.0
    %2095 = vmatprep.subr.mxu0 0.0
    %2096 = vmatpush1.msra.mxu0 0.0
    %2097 = vmatprep.subr.mxu0 0.0
    %2098 = vmatpush1.msra.mxu0 0.0
    %2099 = vmatprep.subr.mxu0 0.0
    %2100 = vmatpush1.msra.mxu0 0.0
    %2101 = vmatprep.subr.mxu0 0.0
    %2102 = vmatpush1.msra.mxu0 0.0
    %2103 = vmatprep.subr.mxu0 0.0
    %2104 = vmatpush1.msra.mxu0 0.0
    %2105 = vmatprep.subr.mxu0 0.0
    %2106 = vmatpush1.msra.mxu0 0.0
    %2107 = vmatprep.subr.mxu0 0.0
    %2108 = vmatpush1.msra.mxu0 0.0
    %2109 = vmatprep.subr.mxu0 0.0
    %2110 = vmatpush1.msra.mxu0 0.0
    %2111 = vmatprep.subr.mxu0 0.0
    %2112 = vmatpush1.msra.mxu0 0.0
    %2113 = vmatprep.mubr.f32.mxu0 0.0
    %2114 = vmatmul.mubr.f32.gmra.mrb[0].mxu0 %v2044
    %v2115 = vpop.f32.mrb[0].mxu0
    %v2116 = vadd.f32 0.0, %v2115
    %v2117 = vpop.f32.mrb[0].mxu0
    %2118 = vmatprep.mubr.f32.mxu0 0.0
    %2119 = vmatmul.mubr.f32.gmra.mrb[0].mxu0 %v2047
    %v2120 = vpop.f32.mrb[0].mxu0
    %v2121 = vadd.f32 0.0, %v2120
    %v2122 = vpop.f32.mrb[0].mxu0
    %2123 = vdwg.mxu0
    %v2124 = vadd.f32 %v1774, %v2116
    %v2125 = vadd.f32 %v1779, %v2121
    %v2126 = vld [vmem:[%s3 + $0x60] sm:$0xff]
    %v2127 = vld [vmem:[%s3 + $0x68] sm:$0xff]
    %v2128 = vld [vmem:[%s3 + $0x70] sm:$0xff]
    %v2129 = vld [vmem:[%s3 + $0x78] sm:$0xff]
    %v2130 = vld [vmem:[%s3 + $0xe0] sm:$0xff]
    %v2131 = vld [vmem:[%s3 + $0xe8] sm:$0xff]
    %v2132 = vld [vmem:[%s3 + $0xf0] sm:$0xff]
    %v2133 = vld [vmem:[%s3 + $0xf8] sm:$0xff]
    %2134 = vmatprep.subr.mxu0 0.0
    %2135 = vmatpush1.msra.mxu0 %v2126
    %2136 = vmatprep.subr.mxu0 0.0
    %2137 = vmatpush1.msra.mxu0 %v2127
    %2138 = vmatprep.subr.mxu0 0.0
    %2139 = vmatpush1.msra.mxu0 %v2128
    %2140 = vmatprep.subr.mxu0 0.0
    %2141 = vmatpush1.msra.mxu0 %v2129
    %2142 = vmatprep.subr.mxu0 0.0
    %2143 = vmatpush1.msra.mxu0 0.0
    %2144 = vmatprep.subr.mxu0 0.0
    %2145 = vmatpush1.msra.mxu0 0.0
    %2146 = vmatprep.subr.mxu0 0.0
    %2147 = vmatpush1.msra.mxu0 0.0
    %2148 = vmatprep.subr.mxu0 0.0
    %2149 = vmatpush1.msra.mxu0 0.0
    %2150 = vmatprep.subr.mxu0 0.0
    %2151 = vmatpush1.msra.mxu0 0.0
    %2152 = vmatprep.subr.mxu0 0.0
    %2153 = vmatpush1.msra.mxu0 0.0
    %2154 = vmatprep.subr.mxu0 0.0
    %2155 = vmatpush1.msra.mxu0 0.0
    %2156 = vmatprep.subr.mxu0 0.0
    %2157 = vmatpush1.msra.mxu0 0.0
    %2158 = vmatprep.subr.mxu0 0.0
    %2159 = vmatpush1.msra.mxu0 0.0
    %2160 = vmatprep.subr.mxu0 0.0
    %2161 = vmatpush1.msra.mxu0 0.0
    %2162 = vmatprep.subr.mxu0 0.0
    %2163 = vmatpush1.msra.mxu0 0.0
    %2164 = vmatprep.subr.mxu0 0.0
    %2165 = vmatpush1.msra.mxu0 0.0
    %2166 = vmatprep.subr.mxu0 0.0
    %2167 = vmatpush1.msra.mxu0 0.0
    %2168 = vmatprep.subr.mxu0 0.0
    %2169 = vmatpush1.msra.mxu0 0.0
    %2170 = vmatprep.subr.mxu0 0.0
    %2171 = vmatpush1.msra.mxu0 0.0
    %2172 = vmatprep.subr.mxu0 0.0
    %2173 = vmatpush1.msra.mxu0 0.0
    %2174 = vmatprep.subr.mxu0 0.0
    %2175 = vmatpush1.msra.mxu0 0.0
    %2176 = vmatprep.subr.mxu0 0.0
    %2177 = vmatpush1.msra.mxu0 0.0
    %2178 = vmatprep.subr.mxu0 0.0
    %2179 = vmatpush1.msra.mxu0 0.0
    %2180 = vmatprep.subr.mxu0 0.0
    %2181 = vmatpush1.msra.mxu0 0.0
    %2182 = vmatprep.subr.mxu0 0.0
    %2183 = vmatpush1.msra.mxu0 0.0
    %2184 = vmatprep.subr.mxu0 0.0
    %2185 = vmatpush1.msra.mxu0 0.0
    %2186 = vmatprep.subr.mxu0 0.0
    %2187 = vmatpush1.msra.mxu0 0.0
    %2188 = vmatprep.subr.mxu0 0.0
    %2189 = vmatpush1.msra.mxu0 0.0
    %2190 = vmatprep.subr.mxu0 0.0
    %2191 = vmatpush1.msra.mxu0 0.0
    %2192 = vmatprep.subr.mxu0 0.0
    %2193 = vmatpush1.msra.mxu0 0.0
    %2194 = vmatprep.subr.mxu0 0.0
    %2195 = vmatpush1.msra.mxu0 0.0
    %2196 = vmatprep.subr.mxu0 0.0
    %2197 = vmatpush1.msra.mxu0 0.0
    %2198 = vmatprep.mubr.f32.mxu0 0.0
    %2199 = vmatmul.mubr.f32.gmra.mrb[0].mxu0 %v1101
    %v2200 = vpop.f32.mrb[0].mxu0
    %v2201 = vadd.f32 0.0, %v2200
    %v2202 = vpop.f32.mrb[0].mxu0
    %2203 = vmatprep.mubr.f32.mxu0 0.0
    %2204 = vmatmul.mubr.f32.gmra.mrb[0].mxu0 %v1104
    %v2205 = vpop.f32.mrb[0].mxu0
    %v2206 = vadd.f32 0.0, %v2205
    %v2207 = vpop.f32.mrb[0].mxu0
    %2208 = vdwg.mxu0
    %v2210 = vsel %vm29, %v2201, 0
    %v2213 = vsel %vm29, %v2206, 0
    %2215 = vmatprep.subr.mxu0 0.0
    %2216 = vmatpush1.xpose.msra.mxu0 %v1101
    %2217 = vmatprep.subr.mxu0 0.0
    %2218 = vmatpush1.xpose.msra.mxu0 %v1104
    %2219 = vmatprep.subr.mxu0 0.0
    %2220 = vmatpush1.xpose.msra.mxu0 0.0
    %2221 = vmatprep.subr.mxu0 0.0
    %2222 = vmatpush1.xpose.msra.mxu0 0.0
    %2223 = vmatprep.subr.mxu0 0.0
    %2224 = vmatpush1.xpose.msra.mxu0 0.0
    %2225 = vmatprep.subr.mxu0 0.0
    %2226 = vmatpush1.xpose.msra.mxu0 0.0
    %2227 = vmatprep.subr.mxu0 0.0
    %2228 = vmatpush1.xpose.msra.mxu0 0.0
    %2229 = vmatprep.subr.mxu0 0.0
    %2230 = vmatpush1.xpose.msra.mxu0 0.0
    %2231 = vmatprep.subr.mxu0 0.0
    %2232 = vmatpush1.xpose.msra.mxu0 0.0
    %2233 = vmatprep.subr.mxu0 0.0
    %2234 = vmatpush1.xpose.msra.mxu0 0.0
    %2235 = vmatprep.subr.mxu0 0.0
    %2236 = vmatpush1.xpose.msra.mxu0 0.0
    %2237 = vmatprep.subr.mxu0 0.0
    %2238 = vmatpush1.xpose.msra.mxu0 0.0
    %2239 = vmatprep.subr.mxu0 0.0
    %2240 = vmatpush1.xpose.msra.mxu0 0.0
    %2241 = vmatprep.subr.mxu0 0.0
    %2242 = vmatpush1.xpose.msra.mxu0 0.0
    %2243 = vmatprep.subr.mxu0 0.0
    %2244 = vmatpush1.xpose.msra.mxu0 0.0
    %2245 = vmatprep.subr.mxu0 0.0
    %2246 = vmatpush1.xpose.msra.mxu0 0.0
    %2247 = vmatprep.subr.mxu0 0.0
    %2248 = vmatpush1.xpose.msra.mxu0 0.0
    %2249 = vmatprep.subr.mxu0 0.0
    %2250 = vmatpush1.xpose.msra.mxu0 0.0
    %2251 = vmatprep.subr.mxu0 0.0
    %2252 = vmatpush1.xpose.msra.mxu0 0.0
    %2253 = vmatprep.subr.mxu0 0.0
    %2254 = vmatpush1.xpose.msra.mxu0 0.0
    %2255 = vmatprep.subr.mxu0 0.0
    %2256 = vmatpush1.xpose.msra.mxu0 0.0
    %2257 = vmatprep.subr.mxu0 0.0
    %2258 = vmatpush1.xpose.msra.mxu0 0.0
    %2259 = vmatprep.subr.mxu0 0.0
    %2260 = vmatpush1.xpose.msra.mxu0 0.0
    %2261 = vmatprep.subr.mxu0 0.0
    %2262 = vmatpush1.xpose.msra.mxu0 0.0
    %2263 = vmatprep.subr.mxu0 0.0
    %2264 = vmatpush1.xpose.msra.mxu0 0.0
    %2265 = vmatprep.subr.mxu0 0.0
    %2266 = vmatpush1.xpose.msra.mxu0 0.0
    %2267 = vmatprep.subr.mxu0 0.0
    %2268 = vmatpush1.xpose.msra.mxu0 0.0
    %2269 = vmatprep.subr.mxu0 0.0
    %2270 = vmatpush1.xpose.msra.mxu0 0.0
    %2271 = vmatprep.subr.mxu0 0.0
    %2272 = vmatpush1.xpose.msra.mxu0 0.0
    %2273 = vmatprep.subr.mxu0 0.0
    %2274 = vmatpush1.xpose.msra.mxu0 0.0
    %2275 = vmatprep.subr.mxu0 0.0
    %2276 = vmatpush1.xpose.msra.mxu0 0.0
    %2277 = vmatprep.subr.mxu0 0.0
    %2278 = vmatpush1.xpose.msra.mxu0 0.0
    %2279 = vmatprep.mubr.f32.mxu0 0.0
    %2280 = vmatmul.mubr.f32.gmra.mrb[0].mxu0 %v2210
    %v2281 = vpop.f32.mrb[0].mxu0
    %v2282 = vadd.f32 %v1049, %v2281
    %v2283 = vpop.f32.mrb[0].mxu0
    %2284 = vmatprep.mubr.f32.mxu0 0.0
    %2285 = vmatmul.mubr.f32.gmra.mrb[0].mxu0 %v2213
    %v2286 = vpop.f32.mrb[0].mxu0
    %v2287 = vadd.f32 %v1050, %v2286
    %v2288 = vpop.f32.mrb[0].mxu0
    %2289 = vdwg.mxu0
    %v2290 = vsel %vm960, %v2282, -inf
    %2291 = vmax.xlane.f32.xlu0 %v2290
    %v2292 = vpop.xlane.xlu0 %2291
    %v2293 = vsel %vm960, %v2287, -inf
    %2294 = vmax.xlane.f32.xlu0 %v2293
    %v2295 = vpop.xlane.xlu0 %2294
    %v2296 = vsub.f32 %v2282, %v2292
    %v2297 = vsub.f32 %v2287, %v2295
    %v2298 = vmul.f32 %v2296, 1.442695
    %v2299 = vpow.pop %v2298
    %v2300 = vmul.f32 %v2297, 1.442695
    %v2301 = vpow.pop %v2300
    %v2302 = vsel %vm960, %v2299, 0.0
    %2303 = vadd.xlane.f32.xlu0 %v2302
    %v2304 = vpop.xlane.xlu0 %2303
    %v2305 = vsel %vm960, %v2301, 0.0
    %2306 = vadd.xlane.f32.xlu0 %v2305
    %v2307 = vpop.xlane.xlu0 %2306
    %v2308 = vrcp.pop %v2304
    %v2309 = vrcp.pop %v2307
    %v2310 = vmul.f32 %v2299, %v2308
    %v2311 = vmul.f32 %v2301, %v2309
    %2312 = vmatprep.subr.mxu0 0.0
    %2313 = vmatpush1.msra.mxu0 %v2130
    %2314 = vmatprep.subr.mxu0 0.0
    %2315 = vmatpush1.msra.mxu0 %v2131
    %2316 = vmatprep.subr.mxu0 0.0
    %2317 = vmatpush1.msra.mxu0 %v2132
    %2318 = vmatprep.subr.mxu0 0.0
    %2319 = vmatpush1.msra.mxu0 %v2133
    %2320 = vmatprep.subr.mxu0 0.0
    %2321 = vmatpush1.msra.mxu0 0.0
    %2322 = vmatprep.subr.mxu0 0.0
    %2323 = vmatpush1.msra.mxu0 0.0
    %2324 = vmatprep.subr.mxu0 0.0
    %2325 = vmatpush1.msra.mxu0 0.0
    %2326 = vmatprep.subr.mxu0 0.0
    %2327 = vmatpush1.msra.mxu0 0.0
    %2328 = vmatprep.subr.mxu0 0.0
    %2329 = vmatpush1.msra.mxu0 0.0
    %2330 = vmatprep.subr.mxu0 0.0
    %2331 = vmatpush1.msra.mxu0 0.0
    %2332 = vmatprep.subr.mxu0 0.0
    %2333 = vmatpush1.msra.mxu0 0.0
    %2334 = vmatprep.subr.mxu0 0.0
    %2335 = vmatpush1.msra.mxu0 0.0
    %2336 = vmatprep.subr.mxu0 0.0
    %2337 = vmatpush1.msra.mxu0 0.0
    %2338 = vmatprep.subr.mxu0 0.0
    %2339 = vmatpush1.msra.mxu0 0.0
    %2340 = vmatprep.subr.mxu0 0.0
    %2341 = vmatpush1.msra.mxu0 0.0
    %2342 = vmatprep.subr.mxu0 0.0
    %2343 = vmatpush1.msra.mxu0 0.0
    %2344 = vmatprep.subr.mxu0 0.0
    %2345 = vmatpush1.msra.mxu0 0.0
    %2346 = vmatprep.subr.mxu0 0.0
    %2347 = vmatpush1.msra.mxu0 0.0
    %2348 = vmatprep.subr.mxu0 0.0
    %2349 = vmatpush1.msra.mxu0 0.0
    %2350 = vmatprep.subr.mxu0 0.0
    %2351 = vmatpush1.msra.mxu0 0.0
    %2352 = vmatprep.subr.mxu0 0.0
    %2353 = vmatpush1.msra.mxu0 0.0
    %2354 = vmatprep.subr.mxu0 0.0
    %2355 = vmatpush1.msra.mxu0 0.0
    %2356 = vmatprep.subr.mxu0 0.0
    %2357 = vmatpush1.msra.mxu0 0.0
    %2358 = vmatprep.subr.mxu0 0.0
    %2359 = vmatpush1.msra.mxu0 0.0
    %2360 = vmatprep.subr.mxu0 0.0
    %2361 = vmatpush1.msra.mxu0 0.0
    %2362 = vmatprep.subr.mxu0 0.0
    %2363 = vmatpush1.msra.mxu0 0.0
    %2364 = vmatprep.subr.mxu0 0.0
    %2365 = vmatpush1.msra.mxu0 0.0
    %2366 = vmatprep.subr.mxu0 0.0
    %2367 = vmatpush1.msra.mxu0 0.0
    %2368 = vmatprep.subr.mxu0 0.0
    %2369 = vmatpush1.msra.mxu0 0.0
    %2370 = vmatprep.subr.mxu0 0.0
    %2371 = vmatpush1.msra.mxu0 0.0
    %2372 = vmatprep.subr.mxu0 0.0
    %2373 = vmatpush1.msra.mxu0 0.0
    %2374 = vmatprep.subr.mxu0 0.0
    %2375 = vmatpush1.msra.mxu0 0.0
    %2376 = vmatprep.mubr.f32.mxu0 0.0
    %2377 = vmatmul.mubr.f32.gmra.mrb[0].mxu0 %v1101
    %v2378 = vpop.f32.mrb[0].mxu0
    %v2379 = vadd.f32 0.0, %v2378
    %v2380 = vpop.f32.mrb[0].mxu0
    %2381 = vmatprep.mubr.f32.mxu0 0.0
    %2382 = vmatmul.mubr.f32.gmra.mrb[0].mxu0 %v1104
    %v2383 = vpop.f32.mrb[0].mxu0
    %v2384 = vadd.f32 0.0, %v2383
    %v2385 = vpop.f32.mrb[0].mxu0
    %2386 = vdwg.mxu0
    %v2388 = vsel %vm960, %v2310, 0
    %v2391 = vsel %vm960, %v2311, 0
    %2393 = vmatprep.subr.mxu0 0.0
    %2394 = vmatpush1.msra.mxu0 %v2379
    %2395 = vmatprep.subr.mxu0 0.0
    %2396 = vmatpush1.msra.mxu0 %v2384
    %2397 = vmatprep.subr.mxu0 0.0
    %2398 = vmatpush1.msra.mxu0 0.0
    %2399 = vmatprep.subr.mxu0 0.0
    %2400 = vmatpush1.msra.mxu0 0.0
    %2401 = vmatprep.subr.mxu0 0.0
    %2402 = vmatpush1.msra.mxu0 0.0
    %2403 = vmatprep.subr.mxu0 0.0
    %2404 = vmatpush1.msra.mxu0 0.0
    %2405 = vmatprep.subr.mxu0 0.0
    %2406 = vmatpush1.msra.mxu0 0.0
    %2407 = vmatprep.subr.mxu0 0.0
    %2408 = vmatpush1.msra.mxu0 0.0
    %2409 = vmatprep.subr.mxu0 0.0
    %2410 = vmatpush1.msra.mxu0 0.0
    %2411 = vmatprep.subr.mxu0 0.0
    %2412 = vmatpush1.msra.mxu0 0.0
    %2413 = vmatprep.subr.mxu0 0.0
    %2414 = vmatpush1.msra.mxu0 0.0
    %2415 = vmatprep.subr.mxu0 0.0
    %2416 = vmatpush1.msra.mxu0 0.0
    %2417 = vmatprep.subr.mxu0 0.0
    %2418 = vmatpush1.msra.mxu0 0.0
    %2419 = vmatprep.subr.mxu0 0.0
    %2420 = vmatpush1.msra.mxu0 0.0
    %2421 = vmatprep.subr.mxu0 0.0
    %2422 = vmatpush1.msra.mxu0 0.0
    %2423 = vmatprep.subr.mxu0 0.0
    %2424 = vmatpush1.msra.mxu0 0.0
    %2425 = vmatprep.subr.mxu0 0.0
    %2426 = vmatpush1.msra.mxu0 0.0
    %2427 = vmatprep.subr.mxu0 0.0
    %2428 = vmatpush1.msra.mxu0 0.0
    %2429 = vmatprep.subr.mxu0 0.0
    %2430 = vmatpush1.msra.mxu0 0.0
    %2431 = vmatprep.subr.mxu0 0.0
    %2432 = vmatpush1.msra.mxu0 0.0
    %2433 = vmatprep.subr.mxu0 0.0
    %2434 = vmatpush1.msra.mxu0 0.0
    %2435 = vmatprep.subr.mxu0 0.0
    %2436 = vmatpush1.msra.mxu0 0.0
    %2437 = vmatprep.subr.mxu0 0.0
    %2438 = vmatpush1.msra.mxu0 0.0
    %2439 = vmatprep.subr.mxu0 0.0
    %2440 = vmatpush1.msra.mxu0 0.0
    %2441 = vmatprep.subr.mxu0 0.0
    %2442 = vmatpush1.msra.mxu0 0.0
    %2443 = vmatprep.subr.mxu0 0.0
    %2444 = vmatpush1.msra.mxu0 0.0
    %2445 = vmatprep.subr.mxu0 0.0
    %2446 = vmatpush1.msra.mxu0 0.0
    %2447 = vmatprep.subr.mxu0 0.0
    %2448 = vmatpush1.msra.mxu0 0.0
    %2449 = vmatprep.subr.mxu0 0.0
    %2450 = vmatpush1.msra.mxu0 0.0
    %2451 = vmatprep.subr.mxu0 0.0
    %2452 = vmatpush1.msra.mxu0 0.0
    %2453 = vmatprep.subr.mxu0 0.0
    %2454 = vmatpush1.msra.mxu0 0.0
    %2455 = vmatprep.subr.mxu0 0.0
    %2456 = vmatpush1.msra.mxu0 0.0
    %2457 = vmatprep.mubr.f32.mxu0 0.0
    %2458 = vmatmul.mubr.f32.gmra.mrb[0].mxu0 %v2388
    %v2459 = vpop.f32.mrb[0].mxu0
    %v2460 = vadd.f32 0.0, %v2459
    %v2461 = vpop.f32.mrb[0].mxu0
    %2462 = vmatprep.mubr.f32.mxu0 0.0
    %2463 = vmatmul.mubr.f32.gmra.mrb[0].mxu0 %v2391
    %v2464 = vpop.f32.mrb[0].mxu0
    %v2465 = vadd.f32 0.0, %v2464
    %v2466 = vpop.f32.mrb[0].mxu0
    %2467 = vdwg.mxu0
    %v2468 = vadd.f32 %v2124, %v2460
    %v2469 = vadd.f32 %v2125, %v2465
    %v2470 = vadd.f32 %v1090, %v2468
    %v2471 = vadd.f32 %v1091, %v2469
    %v2472 = vld [vmem:[%s3 + $0x182] sm:$0x1]
    %v2473 = vld [vmem:[%s3 + $0x183] sm:$0x1]
    %v2474 = vsel %vm29, %v2470, 0.0
    %2475 = vadd.xlane.f32.xlu0 %v2474
    %v2476 = vpop.xlane.xlu0 %2475
    %v2477 = vsel %vm29, %v2471, 0.0
    %2478 = vadd.xlane.f32.xlu0 %v2477
    %v2479 = vpop.xlane.xlu0 %2478
    %v2480 = vmul.f32 %v2476, %v1059
    %v2481 = vmul.f32 %v2479, %v1059
    %v2482 = vsub.f32 %v2470, %v2480
    %v2483 = vsub.f32 %v2471, %v2481
    %v2484 = vmul.f32 %v2482, %v2482
    %v2485 = vmul.f32 %v2483, %v2483
    %v2486 = vsel %vm29, %v2484, 0.0
    %2487 = vadd.xlane.f32.xlu0 %v2486
    %v2488 = vpop.xlane.xlu0 %2487
    %v2489 = vsel %vm29, %v2485, 0.0
    %2490 = vadd.xlane.f32.xlu0 %v2489
    %v2491 = vpop.xlane.xlu0 %2490
    %v2492 = vmul.f32 %v2488, %v1059
    %v2493 = vmul.f32 %v2491, %v1059
    %v2494 = vadd.f32 %v2492, 1e-05
    %v2495 = vadd.f32 %v2493, 1e-05
    %v2496 = vrsqrt.pop %v2494
    %v2497 = vrsqrt.pop %v2495
    %v2498 = vmul.f32 %v2482, %v2496
    %v2499 = vmul.f32 %v2483, %v2497
    %v2500 = vlaneseq
    %v2501 = vshrl.u32 %v2500, 7
    %v2502 = vsub.s32 0, %v2501
    %v2503 = vrot.slane %v2472, %v2502
    %v2504 = vmul.f32 %v2498, %v2503
    %v2505 = vmul.f32 %v2499, %v2503
    %v2506 = vlaneseq
    %v2507 = vshrl.u32 %v2506, 7
    %v2508 = vsub.s32 0, %v2507
    %v2509 = vrot.slane %v2473, %v2508
    %v2510 = vadd.f32 %v2504, %v2509
    %v2511 = vadd.f32 %v2505, %v2509
    %v2512 = vld [vmem:[%s2 + $0x41] sm:$0xff]
    %v2513 = vld [vmem:[%s2 + $0x49] sm:$0xff]
    %v2514 = vld [vmem:[%s2 + $0x51] sm:$0xff]
    %v2515 = vld [vmem:[%s2 + $0x59] sm:$0xff]
    %v2516 = vld [vmem:[%s2 + $0x61] sm:$0x1]
    %v2517 = vlaneseq
    %v2518 = vshrl.u32 %v2517, 7
    %v2519 = vsub.s32 0, %v2518
    %v2520 = vrot.slane %v2516, %v2519
    %v2522 = vsel %vm29, %v2510, 0
    %v2525 = vsel %vm29, %v2511, 0
    %2527 = vmatprep.subr.mxu0 0.0
    %2528 = vmatpush1.msra.mxu0 %v2512
    %2529 = vmatprep.subr.mxu0 0.0
    %2530 = vmatpush1.msra.mxu0 %v2513
    %2531 = vmatprep.subr.mxu0 0.0
    %2532 = vmatpush1.msra.mxu0 %v2514
    %2533 = vmatprep.subr.mxu0 0.0
    %2534 = vmatpush1.msra.mxu0 %v2515
    %2535 = vmatprep.subr.mxu0 0.0
    %2536 = vmatpush1.msra.mxu0 0.0
    %2537 = vmatprep.subr.mxu0 0.0
    %2538 = vmatpush1.msra.mxu0 0.0
    %2539 = vmatprep.subr.mxu0 0.0
    %2540 = vmatpush1.msra.mxu0 0.0
    %2541 = vmatprep.subr.mxu0 0.0
    %2542 = vmatpush1.msra.mxu0 0.0
    %2543 = vmatprep.subr.mxu0 0.0
    %2544 = vmatpush1.msra.mxu0 0.0
    %2545 = vmatprep.subr.mxu0 0.0
    %2546 = vmatpush1.msra.mxu0 0.0
    %2547 = vmatprep.subr.mxu0 0.0
    %2548 = vmatpush1.msra.mxu0 0.0
    %2549 = vmatprep.subr.mxu0 0.0
    %2550 = vmatpush1.msra.mxu0 0.0
    %2551 = vmatprep.subr.mxu0 0.0
    %2552 = vmatpush1.msra.mxu0 0.0
    %2553 = vmatprep.subr.mxu0 0.0
    %2554 = vmatpush1.msra.mxu0 0.0
    %2555 = vmatprep.subr.mxu0 0.0
    %2556 = vmatpush1.msra.mxu0 0.0
    %2557 = vmatprep.subr.mxu0 0.0
    %2558 = vmatpush1.msra.mxu0 0.0
    %2559 = vmatprep.subr.mxu0 0.0
    %2560 = vmatpush1.msra.mxu0 0.0
    %2561 = vmatprep.subr.mxu0 0.0
    %2562 = vmatpush1.msra.mxu0 0.0
    %2563 = vmatprep.subr.mxu0 0.0
    %2564 = vmatpush1.msra.mxu0 0.0
    %2565 = vmatprep.subr.mxu0 0.0
    %2566 = vmatpush1.msra.mxu0 0.0
    %2567 = vmatprep.subr.mxu0 0.0
    %2568 = vmatpush1.msra.mxu0 0.0
    %2569 = vmatprep.subr.mxu0 0.0
    %2570 = vmatpush1.msra.mxu0 0.0
    %2571 = vmatprep.subr.mxu0 0.0
    %2572 = vmatpush1.msra.mxu0 0.0
    %2573 = vmatprep.subr.mxu0 0.0
    %2574 = vmatpush1.msra.mxu0 0.0
    %2575 = vmatprep.subr.mxu0 0.0
    %2576 = vmatpush1.msra.mxu0 0.0
    %2577 = vmatprep.subr.mxu0 0.0
    %2578 = vmatpush1.msra.mxu0 0.0
    %2579 = vmatprep.subr.mxu0 0.0
    %2580 = vmatpush1.msra.mxu0 0.0
    %2581 = vmatprep.subr.mxu0 0.0
    %2582 = vmatpush1.msra.mxu0 0.0
    %2583 = vmatprep.subr.mxu0 0.0
    %2584 = vmatpush1.msra.mxu0 0.0
    %2585 = vmatprep.subr.mxu0 0.0
    %2586 = vmatpush1.msra.mxu0 0.0
    %2587 = vmatprep.subr.mxu0 0.0
    %2588 = vmatpush1.msra.mxu0 0.0
    %2589 = vmatprep.subr.mxu0 0.0
    %2590 = vmatpush1.msra.mxu0 0.0
    %2591 = vmatprep.mubr.f32.mxu0 0.0
    %2592 = vmatmul.mubr.f32.gmra.mrb[0].mxu0 %v2522
    %v2593 = vpop.f32.mrb[0].mxu0
    %v2594 = vadd.f32 %v2520, %v2593
    %v2595 = vpop.f32.mrb[0].mxu0
    %2596 = vmatprep.mubr.f32.mxu0 0.0
    %2597 = vmatmul.mubr.f32.gmra.mrb[0].mxu0 %v2525
    %v2598 = vpop.f32.mrb[0].mxu0
    %v2599 = vadd.f32 %v2520, %v2598
    %v2600 = vpop.f32.mrb[0].mxu0
    %2601 = vdwg.mxu0
    %v2602 = vmax.f32 %v2594, 0.0
    %v2603 = vmax.f32 %v2599, 0.0
    %v2604 = vld [vmem:[%s3 + $0x100] sm:$0xff]
    %v2605 = vld [vmem:[%s3 + $0x108] sm:$0xff]
    %v2606 = vld [vmem:[%s3 + $0x110] sm:$0xff]
    %v2607 = vld [vmem:[%s3 + $0x118] sm:$0xff]
    %v2608 = vld [vmem:[%s3 + $0x120] sm:$0xff]
    %v2609 = vld [vmem:[%s3 + $0x128] sm:$0xff]
    %v2610 = vld [vmem:[%s3 + $0x130] sm:$0xff]
    %v2611 = vld [vmem:[%s3 + $0x138] sm:$0xff]
    %v2612 = vld [vmem:[%s3 + $0x140] sm:$0xff]
    %v2613 = vld [vmem:[%s3 + $0x148] sm:$0xff]
    %v2614 = vld [vmem:[%s3 + $0x150] sm:$0xff]
    %v2615 = vld [vmem:[%s3 + $0x158] sm:$0xff]
    %v2616 = vld [vmem:[%s3 + $0x160] sm:$0xff]
    %v2617 = vld [vmem:[%s3 + $0x168] sm:$0xff]
    %v2618 = vld [vmem:[%s3 + $0x170] sm:$0xff]
    %v2619 = vld [vmem:[%s3 + $0x178] sm:$0xff]
    %2620 = vmatprep.subr.mxu0 0.0
    %2621 = vmatpush1.msra.mxu0 %v2604
    %2622 = vmatprep.subr.mxu0 0.0
    %2623 = vmatpush1.msra.mxu0 %v2605
    %2624 = vmatprep.subr.mxu0 0.0
    %2625 = vmatpush1.msra.mxu0 %v2606
    %2626 = vmatprep.subr.mxu0 0.0
    %2627 = vmatpush1.msra.mxu0 %v2607
    %2628 = vmatprep.subr.mxu0 0.0
    %2629 = vmatpush1.msra.mxu0 %v2608
    %2630 = vmatprep.subr.mxu0 0.0
    %2631 = vmatpush1.msra.mxu0 %v2609
    %2632 = vmatprep.subr.mxu0 0.0
    %2633 = vmatpush1.msra.mxu0 %v2610
    %2634 = vmatprep.subr.mxu0 0.0
    %2635 = vmatpush1.msra.mxu0 %v2611
    %2636 = vmatprep.subr.mxu0 0.0
    %2637 = vmatpush1.msra.mxu0 %v2612
    %2638 = vmatprep.subr.mxu0 0.0
    %2639 = vmatpush1.msra.mxu0 %v2613
    %2640 = vmatprep.subr.mxu0 0.0
    %2641 = vmatpush1.msra.mxu0 %v2614
    %2642 = vmatprep.subr.mxu0 0.0
    %2643 = vmatpush1.msra.mxu0 %v2615
    %2644 = vmatprep.subr.mxu0 0.0
    %2645 = vmatpush1.msra.mxu0 %v2616
    %2646 = vmatprep.subr.mxu0 0.0
    %2647 = vmatpush1.msra.mxu0 %v2617
    %2648 = vmatprep.subr.mxu0 0.0
    %2649 = vmatpush1.msra.mxu0 %v2618
    %2650 = vmatprep.subr.mxu0 0.0
    %2651 = vmatpush1.msra.mxu0 %v2619
    %2652 = vmatprep.subr.mxu0 0.0
    %2653 = vmatpush1.msra.mxu0 0.0
    %2654 = vmatprep.subr.mxu0 0.0
    %2655 = vmatpush1.msra.mxu0 0.0
    %2656 = vmatprep.subr.mxu0 0.0
    %2657 = vmatpush1.msra.mxu0 0.0
    %2658 = vmatprep.subr.mxu0 0.0
    %2659 = vmatpush1.msra.mxu0 0.0
    %2660 = vmatprep.subr.mxu0 0.0
    %2661 = vmatpush1.msra.mxu0 0.0
    %2662 = vmatprep.subr.mxu0 0.0
    %2663 = vmatpush1.msra.mxu0 0.0
    %2664 = vmatprep.subr.mxu0 0.0
    %2665 = vmatpush1.msra.mxu0 0.0
    %2666 = vmatprep.subr.mxu0 0.0
    %2667 = vmatpush1.msra.mxu0 0.0
    %2668 = vmatprep.subr.mxu0 0.0
    %2669 = vmatpush1.msra.mxu0 0.0
    %2670 = vmatprep.subr.mxu0 0.0
    %2671 = vmatpush1.msra.mxu0 0.0
    %2672 = vmatprep.subr.mxu0 0.0
    %2673 = vmatpush1.msra.mxu0 0.0
    %2674 = vmatprep.subr.mxu0 0.0
    %2675 = vmatpush1.msra.mxu0 0.0
    %2676 = vmatprep.subr.mxu0 0.0
    %2677 = vmatpush1.msra.mxu0 0.0
    %2678 = vmatprep.subr.mxu0 0.0
    %2679 = vmatpush1.msra.mxu0 0.0
    %2680 = vmatprep.subr.mxu0 0.0
    %2681 = vmatpush1.msra.mxu0 0.0
    %2682 = vmatprep.subr.mxu0 0.0
    %2683 = vmatpush1.msra.mxu0 0.0
    %2684 = vmatprep.mubr.f32.mxu0 0.0
    %2685 = vmatmul.mubr.f32.gmra.mrb[0].mxu0 %v2602
    %v2686 = vpop.f32.mrb[0].mxu0
    %v2687 = vadd.f32 0.0, %v2686
    %v2688 = vpop.f32.mrb[0].mxu0
    %2689 = vmatprep.mubr.f32.mxu0 0.0
    %2690 = vmatmul.mubr.f32.gmra.mrb[0].mxu0 %v2603
    %v2691 = vpop.f32.mrb[0].mxu0
    %v2692 = vadd.f32 0.0, %v2691
    %v2693 = vpop.f32.mrb[0].mxu0
    %2694 = vdwg.mxu0
    %v2695 = vadd.f32 %v2510, %v2687
    %v2696 = vadd.f32 %v2511, %v2692
    %v2697 = vld [vmem:[%s3 + $0x184] sm:$0x1]
    %v2698 = vlaneseq
    %v2699 = vshrl.u32 %v2698, 7
    %v2700 = vsub.s32 0, %v2699
    %v2701 = vrot.slane %v2697, %v2700
    %v2702 = vadd.f32 %v2695, %v2701
    %v2703 = vadd.f32 %v2696, %v2701
    %v2704 = vld [vmem:[%s3 + $0x305] sm:$0x1]
    %v2705 = vld [vmem:[%s3 + $0x306] sm:$0x1]
    %v2706 = vsel %vm29, %v2702, 0.0
    %2707 = vadd.xlane.f32.xlu0 %v2706
    %v2708 = vpop.xlane.xlu0 %2707
    %v2709 = vsel %vm29, %v2703, 0.0
    %2710 = vadd.xlane.f32.xlu0 %v2709
    %v2711 = vpop.xlane.xlu0 %2710
    %v2712 = vmul.f32 %v2708, %v1059
    %v2713 = vmul.f32 %v2711, %v1059
    %v2714 = vsub.f32 %v2702, %v2712
    %v2715 = vsub.f32 %v2703, %v2713
    %v2716 = vmul.f32 %v2714, %v2714
    %v2717 = vmul.f32 %v2715, %v2715
    %v2718 = vsel %vm29, %v2716, 0.0
    %2719 = vadd.xlane.f32.xlu0 %v2718
    %v2720 = vpop.xlane.xlu0 %2719
    %v2721 = vsel %vm29, %v2717, 0.0
    %2722 = vadd.xlane.f32.xlu0 %v2721
    %v2723 = vpop.xlane.xlu0 %2722
    %v2724 = vmul.f32 %v2720, %v1059
    %v2725 = vmul.f32 %v2723, %v1059
    %v2726 = vadd.f32 %v2724, 1e-05
    %v2727 = vadd.f32 %v2725, 1e-05
    %v2728 = vrsqrt.pop %v2726
    %v2729 = vrsqrt.pop %v2727
    %v2730 = vmul.f32 %v2714, %v2728
    %v2731 = vmul.f32 %v2715, %v2729
    %v2732 = vlaneseq
    %v2733 = vshrl.u32 %v2732, 7
    %v2734 = vsub.s32 0, %v2733
    %v2735 = vrot.slane %v2704, %v2734
    %v2736 = vmul.f32 %v2730, %v2735
    %v2737 = vmul.f32 %v2731, %v2735
    %v2738 = vlaneseq
    %v2739 = vshrl.u32 %v2738, 7
    %v2740 = vsub.s32 0, %v2739
    %v2741 = vrot.slane %v2705, %v2740
    %v2742 = vadd.f32 %v2736, %v2741
    %v2743 = vadd.f32 %v2737, %v2741
    %v2744 = vld [vmem:[%s3 + $0x185] sm:$0xff]
    %v2745 = vld [vmem:[%s3 + $0x18d] sm:$0xff]
    %v2746 = vld [vmem:[%s3 + $0x195] sm:$0xff]
    %v2747 = vld [vmem:[%s3 + $0x19d] sm:$0xff]
    %v2748 = vld [vmem:[%s3 + $0x205] sm:$0xff]
    %v2749 = vld [vmem:[%s3 + $0x20d] sm:$0xff]
    %v2750 = vld [vmem:[%s3 + $0x215] sm:$0xff]
    %v2751 = vld [vmem:[%s3 + $0x21d] sm:$0xff]
    %v2753 = vsel %vm29, %v2742, 0
    %v2756 = vsel %vm29, %v2743, 0
    %2758 = vmatprep.subr.mxu0 0.0
    %2759 = vmatpush1.msra.mxu0 %v2744
    %2760 = vmatprep.subr.mxu0 0.0
    %2761 = vmatpush1.msra.mxu0 %v2745
    %2762 = vmatprep.subr.mxu0 0.0
    %2763 = vmatpush1.msra.mxu0 %v2746
    %2764 = vmatprep.subr.mxu0 0.0
    %2765 = vmatpush1.msra.mxu0 %v2747
    %2766 = vmatprep.subr.mxu0 0.0
    %2767 = vmatpush1.msra.mxu0 0.0
    %2768 = vmatprep.subr.mxu0 0.0
    %2769 = vmatpush1.msra.mxu0 0.0
    %2770 = vmatprep.subr.mxu0 0.0
    %2771 = vmatpush1.msra.mxu0 0.0
    %2772 = vmatprep.subr.mxu0 0.0
    %2773 = vmatpush1.msra.mxu0 0.0
    %2774 = vmatprep.subr.mxu0 0.0
    %2775 = vmatpush1.msra.mxu0 0.0
    %2776 = vmatprep.subr.mxu0 0.0
    %2777 = vmatpush1.msra.mxu0 0.0
    %2778 = vmatprep.subr.mxu0 0.0
    %2779 = vmatpush1.msra.mxu0 0.0
    %2780 = vmatprep.subr.mxu0 0.0
    %2781 = vmatpush1.msra.mxu0 0.0
    %2782 = vmatprep.subr.mxu0 0.0
    %2783 = vmatpush1.msra.mxu0 0.0
    %2784 = vmatprep.subr.mxu0 0.0
    %2785 = vmatpush1.msra.mxu0 0.0
    %2786 = vmatprep.subr.mxu0 0.0
    %2787 = vmatpush1.msra.mxu0 0.0
    %2788 = vmatprep.subr.mxu0 0.0
    %2789 = vmatpush1.msra.mxu0 0.0
    %2790 = vmatprep.subr.mxu0 0.0
    %2791 = vmatpush1.msra.mxu0 0.0
    %2792 = vmatprep.subr.mxu0 0.0
    %2793 = vmatpush1.msra.mxu0 0.0
    %2794 = vmatprep.subr.mxu0 0.0
    %2795 = vmatpush1.msra.mxu0 0.0
    %2796 = vmatprep.subr.mxu0 0.0
    %2797 = vmatpush1.msra.mxu0 0.0
    %2798 = vmatprep.subr.mxu0 0.0
    %2799 = vmatpush1.msra.mxu0 0.0
    %2800 = vmatprep.subr.mxu0 0.0
    %2801 = vmatpush1.msra.mxu0 0.0
    %2802 = vmatprep.subr.mxu0 0.0
    %2803 = vmatpush1.msra.mxu0 0.0
    %2804 = vmatprep.subr.mxu0 0.0
    %2805 = vmatpush1.msra.mxu0 0.0
    %2806 = vmatprep.subr.mxu0 0.0
    %2807 = vmatpush1.msra.mxu0 0.0
    %2808 = vmatprep.subr.mxu0 0.0
    %2809 = vmatpush1.msra.mxu0 0.0
    %2810 = vmatprep.subr.mxu0 0.0
    %2811 = vmatpush1.msra.mxu0 0.0
    %2812 = vmatprep.subr.mxu0 0.0
    %2813 = vmatpush1.msra.mxu0 0.0
    %2814 = vmatprep.subr.mxu0 0.0
    %2815 = vmatpush1.msra.mxu0 0.0
    %2816 = vmatprep.subr.mxu0 0.0
    %2817 = vmatpush1.msra.mxu0 0.0
    %2818 = vmatprep.subr.mxu0 0.0
    %2819 = vmatpush1.msra.mxu0 0.0
    %2820 = vmatprep.subr.mxu0 0.0
    %2821 = vmatpush1.msra.mxu0 0.0
    %2822 = vmatprep.mubr.f32.mxu0 0.0
    %2823 = vmatmul.mubr.f32.gmra.mrb[0].mxu0 %v2753
    %v2824 = vpop.f32.mrb[0].mxu0
    %v2825 = vadd.f32 0.0, %v2824
    %v2826 = vpop.f32.mrb[0].mxu0
    %2827 = vmatprep.mubr.f32.mxu0 0.0
    %2828 = vmatmul.mubr.f32.gmra.mrb[0].mxu0 %v2756
    %v2829 = vpop.f32.mrb[0].mxu0
    %v2830 = vadd.f32 0.0, %v2829
    %v2831 = vpop.f32.mrb[0].mxu0
    %2832 = vdwg.mxu0
    %v2834 = vsel %vm29, %v2825, 0
    %v2837 = vsel %vm29, %v2830, 0
    %2839 = vmatprep.subr.mxu0 0.0
    %2840 = vmatpush1.xpose.msra.mxu0 %v2753
    %2841 = vmatprep.subr.mxu0 0.0
    %2842 = vmatpush1.xpose.msra.mxu0 %v2756
    %2843 = vmatprep.subr.mxu0 0.0
    %2844 = vmatpush1.xpose.msra.mxu0 0.0
    %2845 = vmatprep.subr.mxu0 0.0
    %2846 = vmatpush1.xpose.msra.mxu0 0.0
    %2847 = vmatprep.subr.mxu0 0.0
    %2848 = vmatpush1.xpose.msra.mxu0 0.0
    %2849 = vmatprep.subr.mxu0 0.0
    %2850 = vmatpush1.xpose.msra.mxu0 0.0
    %2851 = vmatprep.subr.mxu0 0.0
    %2852 = vmatpush1.xpose.msra.mxu0 0.0
    %2853 = vmatprep.subr.mxu0 0.0
    %2854 = vmatpush1.xpose.msra.mxu0 0.0
    %2855 = vmatprep.subr.mxu0 0.0
    %2856 = vmatpush1.xpose.msra.mxu0 0.0
    %2857 = vmatprep.subr.mxu0 0.0
    %2858 = vmatpush1.xpose.msra.mxu0 0.0
    %2859 = vmatprep.subr.mxu0 0.0
    %2860 = vmatpush1.xpose.msra.mxu0 0.0
    %2861 = vmatprep.subr.mxu0 0.0
    %2862 = vmatpush1.xpose.msra.mxu0 0.0
    %2863 = vmatprep.subr.mxu0 0.0
    %2864 = vmatpush1.xpose.msra.mxu0 0.0
    %2865 = vmatprep.subr.mxu0 0.0
    %2866 = vmatpush1.xpose.msra.mxu0 0.0
    %2867 = vmatprep.subr.mxu0 0.0
    %2868 = vmatpush1.xpose.msra.mxu0 0.0
    %2869 = vmatprep.subr.mxu0 0.0
    %2870 = vmatpush1.xpose.msra.mxu0 0.0
    %2871 = vmatprep.subr.mxu0 0.0
    %2872 = vmatpush1.xpose.msra.mxu0 0.0
    %2873 = vmatprep.subr.mxu0 0.0
    %2874 = vmatpush1.xpose.msra.mxu0 0.0
    %2875 = vmatprep.subr.mxu0 0.0
    %2876 = vmatpush1.xpose.msra.mxu0 0.0
    %2877 = vmatprep.subr.mxu0 0.0
    %2878 = vmatpush1.xpose.msra.mxu0 0.0
    %2879 = vmatprep.subr.mxu0 0.0
    %2880 = vmatpush1.xpose.msra.mxu0 0.0
    %2881 = vmatprep.subr.mxu0 0.0
    %2882 = vmatpush1.xpose.msra.mxu0 0.0
    %2883 = vmatprep.subr.mxu0 0.0
    %2884 = vmatpush1.xpose.msra.mxu0 0.0
    %2885 = vmatprep.subr.mxu0 0.0
    %2886 = vmatpush1.xpose.msra.mxu0 0.0
    %2887 = vmatprep.subr.mxu0 0.0
    %2888 = vmatpush1.xpose.msra.mxu0 0.0
    %2889 = vmatprep.subr.mxu0 0.0
    %2890 = vmatpush1.xpose.msra.mxu0 0.0
    %2891 = vmatprep.subr.mxu0 0.0
    %2892 = vmatpush1.xpose.msra.mxu0 0.0
    %2893 = vmatprep.subr.mxu0 0.0
    %2894 = vmatpush1.xpose.msra.mxu0 0.0
    %2895 = vmatprep.subr.mxu0 0.0
    %2896 = vmatpush1.xpose.msra.mxu0 0.0
    %2897 = vmatprep.subr.mxu0 0.0
    %2898 = vmatpush1.xpose.msra.mxu0 0.0
    %2899 = vmatprep.subr.mxu0 0.0
    %2900 = vmatpush1.xpose.msra.mxu0 0.0
    %2901 = vmatprep.subr.mxu0 0.0
    %2902 = vmatpush1.xpose.msra.mxu0 0.0
    %2903 = vmatprep.mubr.f32.mxu0 0.0
    %2904 = vmatmul.mubr.f32.gmra.mrb[0].mxu0 %v2834
    %v2905 = vpop.f32.mrb[0].mxu0
    %v2906 = vadd.f32 %v1049, %v2905
    %v2907 = vpop.f32.mrb[0].mxu0
    %2908 = vmatprep.mubr.f32.mxu0 0.0
    %2909 = vmatmul.mubr.f32.gmra.mrb[0].mxu0 %v2837
    %v2910 = vpop.f32.mrb[0].mxu0
    %v2911 = vadd.f32 %v1050, %v2910
    %v2912 = vpop.f32.mrb[0].mxu0
    %2913 = vdwg.mxu0
    %v2914 = vsel %vm960, %v2906, -inf
    %2915 = vmax.xlane.f32.xlu0 %v2914
    %v2916 = vpop.xlane.xlu0 %2915
    %v2917 = vsel %vm960, %v2911, -inf
    %2918 = vmax.xlane.f32.xlu0 %v2917
    %v2919 = vpop.xlane.xlu0 %2918
    %v2920 = vsub.f32 %v2906, %v2916
    %v2921 = vsub.f32 %v2911, %v2919
    %v2922 = vmul.f32 %v2920, 1.442695
    %v2923 = vpow.pop %v2922
    %v2924 = vmul.f32 %v2921, 1.442695
    %v2925 = vpow.pop %v2924
    %v2926 = vsel %vm960, %v2923, 0.0
    %2927 = vadd.xlane.f32.xlu0 %v2926
    %v2928 = vpop.xlane.xlu0 %2927
    %v2929 = vsel %vm960, %v2925, 0.0
    %2930 = vadd.xlane.f32.xlu0 %v2929
    %v2931 = vpop.xlane.xlu0 %2930
    %v2932 = vrcp.pop %v2928
    %v2933 = vrcp.pop %v2931
    %v2934 = vmul.f32 %v2923, %v2932
    %v2935 = vmul.f32 %v2925, %v2933
    %2936 = vmatprep.subr.mxu0 0.0
    %2937 = vmatpush1.msra.mxu0 %v2748
    %2938 = vmatprep.subr.mxu0 0.0
    %2939 = vmatpush1.msra.mxu0 %v2749
    %2940 = vmatprep.subr.mxu0 0.0
    %2941 = vmatpush1.msra.mxu0 %v2750
    %2942 = vmatprep.subr.mxu0 0.0
    %2943 = vmatpush1.msra.mxu0 %v2751
    %2944 = vmatprep.subr.mxu0 0.0
    %2945 = vmatpush1.msra.mxu0 0.0
    %2946 = vmatprep.subr.mxu0 0.0
    %2947 = vmatpush1.msra.mxu0 0.0
    %2948 = vmatprep.subr.mxu0 0.0
    %2949 = vmatpush1.msra.mxu0 0.0
    %2950 = vmatprep.subr.mxu0 0.0
    %2951 = vmatpush1.msra.mxu0 0.0
    %2952 = vmatprep.subr.mxu0 0.0
    %2953 = vmatpush1.msra.mxu0 0.0
    %2954 = vmatprep.subr.mxu0 0.0
    %2955 = vmatpush1.msra.mxu0 0.0
    %2956 = vmatprep.subr.mxu0 0.0
    %2957 = vmatpush1.msra.mxu0 0.0
    %2958 = vmatprep.subr.mxu0 0.0
    %2959 = vmatpush1.msra.mxu0 0.0
    %2960 = vmatprep.subr.mxu0 0.0
    %2961 = vmatpush1.msra.mxu0 0.0
    %2962 = vmatprep.subr.mxu0 0.0
    %2963 = vmatpush1.msra.mxu0 0.0
    %2964 = vmatprep.subr.mxu0 0.0
    %2965 = vmatpush1.msra.mxu0 0.0
    %2966 = vmatprep.subr.mxu0 0.0
    %2967 = vmatpush1.msra.mxu0 0.0
    %2968 = vmatprep.subr.mxu0 0.0
    %2969 = vmatpush1.msra.mxu0 0.0
    %2970 = vmatprep.subr.mxu0 0.0
    %2971 = vmatpush1.msra.mxu0 0.0
    %2972 = vmatprep.subr.mxu0 0.0
    %2973 = vmatpush1.msra.mxu0 0.0
    %2974 = vmatprep.subr.mxu0 0.0
    %2975 = vmatpush1.msra.mxu0 0.0
    %2976 = vmatprep.subr.mxu0 0.0
    %2977 = vmatpush1.msra.mxu0 0.0
    %2978 = vmatprep.subr.mxu0 0.0
    %2979 = vmatpush1.msra.mxu0 0.0
    %2980 = vmatprep.subr.mxu0 0.0
    %2981 = vmatpush1.msra.mxu0 0.0
    %2982 = vmatprep.subr.mxu0 0.0
    %2983 = vmatpush1.msra.mxu0 0.0
    %2984 = vmatprep.subr.mxu0 0.0
    %2985 = vmatpush1.msra.mxu0 0.0
    %2986 = vmatprep.subr.mxu0 0.0
    %2987 = vmatpush1.msra.mxu0 0.0
    %2988 = vmatprep.subr.mxu0 0.0
    %2989 = vmatpush1.msra.mxu0 0.0
    %2990 = vmatprep.subr.mxu0 0.0
    %2991 = vmatpush1.msra.mxu0 0.0
    %2992 = vmatprep.subr.mxu0 0.0
    %2993 = vmatpush1.msra.mxu0 0.0
    %2994 = vmatprep.subr.mxu0 0.0
    %2995 = vmatpush1.msra.mxu0 0.0
    %2996 = vmatprep.subr.mxu0 0.0
    %2997 = vmatpush1.msra.mxu0 0.0
    %2998 = vmatprep.subr.mxu0 0.0
    %2999 = vmatpush1.msra.mxu0 0.0
    %3000 = vmatprep.mubr.f32.mxu0 0.0
    %3001 = vmatmul.mubr.f32.gmra.mrb[0].mxu0 %v2753
    %v3002 = vpop.f32.mrb[0].mxu0
    %v3003 = vadd.f32 0.0, %v3002
    %v3004 = vpop.f32.mrb[0].mxu0
    %3005 = vmatprep.mubr.f32.mxu0 0.0
    %3006 = vmatmul.mubr.f32.gmra.mrb[0].mxu0 %v2756
    %v3007 = vpop.f32.mrb[0].mxu0
    %v3008 = vadd.f32 0.0, %v3007
    %v3009 = vpop.f32.mrb[0].mxu0
    %3010 = vdwg.mxu0
    %v3011 = vld [vmem:[%s3 + $0x1a5] sm:$0xff]
    %v3012 = vld [vmem:[%s3 + $0x1ad] sm:$0xff]
    %v3013 = vld [vmem:[%s3 + $0x1b5] sm:$0xff]
    %v3014 = vld [vmem:[%s3 + $0x1bd] sm:$0xff]
    %v3015 = vld [vmem:[%s3 + $0x225] sm:$0xff]
    %v3016 = vld [vmem:[%s3 + $0x22d] sm:$0xff]
    %v3017 = vld [vmem:[%s3 + $0x235] sm:$0xff]
    %v3018 = vld [vmem:[%s3 + $0x23d] sm:$0xff]
    %3019 = vmatprep.subr.mxu0 0.0
    %3020 = vmatpush1.msra.mxu0 %v3011
    %3021 = vmatprep.subr.mxu0 0.0
    %3022 = vmatpush1.msra.mxu0 %v3012
    %3023 = vmatprep.subr.mxu0 0.0
    %3024 = vmatpush1.msra.mxu0 %v3013
    %3025 = vmatprep.subr.mxu0 0.0
    %3026 = vmatpush1.msra.mxu0 %v3014
    %3027 = vmatprep.subr.mxu0 0.0
    %3028 = vmatpush1.msra.mxu0 0.0
    %3029 = vmatprep.subr.mxu0 0.0
    %3030 = vmatpush1.msra.mxu0 0.0
    %3031 = vmatprep.subr.mxu0 0.0
    %3032 = vmatpush1.msra.mxu0 0.0
    %3033 = vmatprep.subr.mxu0 0.0
    %3034 = vmatpush1.msra.mxu0 0.0
    %3035 = vmatprep.subr.mxu0 0.0
    %3036 = vmatpush1.msra.mxu0 0.0
    %3037 = vmatprep.subr.mxu0 0.0
    %3038 = vmatpush1.msra.mxu0 0.0
    %3039 = vmatprep.subr.mxu0 0.0
    %3040 = vmatpush1.msra.mxu0 0.0
    %3041 = vmatprep.subr.mxu0 0.0
    %3042 = vmatpush1.msra.mxu0 0.0
    %3043 = vmatprep.subr.mxu0 0.0
    %3044 = vmatpush1.msra.mxu0 0.0
    %3045 = vmatprep.subr.mxu0 0.0
    %3046 = vmatpush1.msra.mxu0 0.0
    %3047 = vmatprep.subr.mxu0 0.0
    %3048 = vmatpush1.msra.mxu0 0.0
    %3049 = vmatprep.subr.mxu0 0.0
    %3050 = vmatpush1.msra.mxu0 0.0
    %3051 = vmatprep.subr.mxu0 0.0
    %3052 = vmatpush1.msra.mxu0 0.0
    %3053 = vmatprep.subr.mxu0 0.0
    %3054 = vmatpush1.msra.mxu0 0.0
    %3055 = vmatprep.subr.mxu0 0.0
    %3056 = vmatpush1.msra.mxu0 0.0
    %3057 = vmatprep.subr.mxu0 0.0
    %3058 = vmatpush1.msra.mxu0 0.0
    %3059 = vmatprep.subr.mxu0 0.0
    %3060 = vmatpush1.msra.mxu0 0.0
    %3061 = vmatprep.subr.mxu0 0.0
    %3062 = vmatpush1.msra.mxu0 0.0
    %3063 = vmatprep.subr.mxu0 0.0
    %3064 = vmatpush1.msra.mxu0 0.0
    %3065 = vmatprep.subr.mxu0 0.0
    %3066 = vmatpush1.msra.mxu0 0.0
    %3067 = vmatprep.subr.mxu0 0.0
    %3068 = vmatpush1.msra.mxu0 0.0
    %3069 = vmatprep.subr.mxu0 0.0
    %3070 = vmatpush1.msra.mxu0 0.0
    %3071 = vmatprep.subr.mxu0 0.0
    %3072 = vmatpush1.msra.mxu0 0.0
    %3073 = vmatprep.subr.mxu0 0.0
    %3074 = vmatpush1.msra.mxu0 0.0
    %3075 = vmatprep.subr.mxu0 0.0
    %3076 = vmatpush1.msra.mxu0 0.0
    %3077 = vmatprep.subr.mxu0 0.0
    %3078 = vmatpush1.msra.mxu0 0.0
    %3079 = vmatprep.subr.mxu0 0.0
    %3080 = vmatpush1.msra.mxu0 0.0
    %3081 = vmatprep.subr.mxu0 0.0
    %3082 = vmatpush1.msra.mxu0 0.0
    %3083 = vmatprep.mubr.f32.mxu0 0.0
    %3084 = vmatmul.mubr.f32.gmra.mrb[0].mxu0 %v2753
    %v3085 = vpop.f32.mrb[0].mxu0
    %v3086 = vadd.f32 0.0, %v3085
    %v3087 = vpop.f32.mrb[0].mxu0
    %3088 = vmatprep.mubr.f32.mxu0 0.0
    %3089 = vmatmul.mubr.f32.gmra.mrb[0].mxu0 %v2756
    %v3090 = vpop.f32.mrb[0].mxu0
    %v3091 = vadd.f32 0.0, %v3090
    %v3092 = vpop.f32.mrb[0].mxu0
    %3093 = vdwg.mxu0
    %v3095 = vsel %vm29, %v3086, 0
    %v3098 = vsel %vm29, %v3091, 0
    %3100 = vmatprep.subr.mxu0 0.0
    %3101 = vmatpush1.xpose.msra.mxu0 %v2753
    %3102 = vmatprep.subr.mxu0 0.0
    %3103 = vmatpush1.xpose.msra.mxu0 %v2756
    %3104 = vmatprep.subr.mxu0 0.0
    %3105 = vmatpush1.xpose.msra.mxu0 0.0
    %3106 = vmatprep.subr.mxu0 0.0
    %3107 = vmatpush1.xpose.msra.mxu0 0.0
    %3108 = vmatprep.subr.mxu0 0.0
    %3109 = vmatpush1.xpose.msra.mxu0 0.0
    %3110 = vmatprep.subr.mxu0 0.0
    %3111 = vmatpush1.xpose.msra.mxu0 0.0
    %3112 = vmatprep.subr.mxu0 0.0
    %3113 = vmatpush1.xpose.msra.mxu0 0.0
    %3114 = vmatprep.subr.mxu0 0.0
    %3115 = vmatpush1.xpose.msra.mxu0 0.0
    %3116 = vmatprep.subr.mxu0 0.0
    %3117 = vmatpush1.xpose.msra.mxu0 0.0
    %3118 = vmatprep.subr.mxu0 0.0
    %3119 = vmatpush1.xpose.msra.mxu0 0.0
    %3120 = vmatprep.subr.mxu0 0.0
    %3121 = vmatpush1.xpose.msra.mxu0 0.0
    %3122 = vmatprep.subr.mxu0 0.0
    %3123 = vmatpush1.xpose.msra.mxu0 0.0
    %3124 = vmatprep.subr.mxu0 0.0
    %3125 = vmatpush1.xpose.msra.mxu0 0.0
    %3126 = vmatprep.subr.mxu0 0.0
    %3127 = vmatpush1.xpose.msra.mxu0 0.0
    %3128 = vmatprep.subr.mxu0 0.0
    %3129 = vmatpush1.xpose.msra.mxu0 0.0
    %3130 = vmatprep.subr.mxu0 0.0
    %3131 = vmatpush1.xpose.msra.mxu0 0.0
    %3132 = vmatprep.subr.mxu0 0.0
    %3133 = vmatpush1.xpose.msra.mxu0 0.0
    %3134 = vmatprep.subr.mxu0 0.0
    %3135 = vmatpush1.xpose.msra.mxu0 0.0
    %3136 = vmatprep.subr.mxu0 0.0
    %3137 = vmatpush1.xpose.msra.mxu0 0.0
    %3138 = vmatprep.subr.mxu0 0.0
    %3139 = vmatpush1.xpose.msra.mxu0 0.0
    %3140 = vmatprep.subr.mxu0 0.0
    %3141 = vmatpush1.xpose.msra.mxu0 0.0
    %3142 = vmatprep.subr.mxu0 0.0
    %3143 = vmatpush1.xpose.msra.mxu0 0.0
    %3144 = vmatprep.subr.mxu0 0.0
    %3145 = vmatpush1.xpose.msra.mxu0 0.0
    %3146 = vmatprep.subr.mxu0 0.0
    %3147 = vmatpush1.xpose.msra.mxu0 0.0
    %3148 = vmatprep.subr.mxu0 0.0
    %3149 = vmatpush1.xpose.msra.mxu0 0.0
    %3150 = vmatprep.subr.mxu0 0.0
    %3151 = vmatpush1.xpose.msra.mxu0 0.0
    %3152 = vmatprep.subr.mxu0 0.0
    %3153 = vmatpush1.xpose.msra.mxu0 0.0
    %3154 = vmatprep.subr.mxu0 0.0
    %3155 = vmatpush1.xpose.msra.mxu0 0.0
    %3156 = vmatprep.subr.mxu0 0.0
    %3157 = vmatpush1.xpose.msra.mxu0 0.0
    %3158 = vmatprep.subr.mxu0 0.0
    %3159 = vmatpush1.xpose.msra.mxu0 0.0
    %3160 = vmatprep.subr.mxu0 0.0
    %3161 = vmatpush1.xpose.msra.mxu0 0.0
    %3162 = vmatprep.subr.mxu0 0.0
    %3163 = vmatpush1.xpose.msra.mxu0 0.0
    %3164 = vmatprep.mubr.f32.mxu0 0.0
    %3165 = vmatmul.mubr.f32.gmra.mrb[0].mxu0 %v3095
    %v3166 = vpop.f32.mrb[0].mxu0
    %v3167 = vadd.f32 %v1049, %v3166
    %v3168 = vpop.f32.mrb[0].mxu0
    %3169 = vmatprep.mubr.f32.mxu0 0.0
    %3170 = vmatmul.mubr.f32.gmra.mrb[0].mxu0 %v3098
    %v3171 = vpop.f32.mrb[0].mxu0
    %v3172 = vadd.f32 %v1050, %v3171
    %v3173 = vpop.f32.mrb[0].mxu0
    %3174 = vdwg.mxu0
    %v3175 = vsel %vm960, %v3167, -inf
    %3176 = vmax.xlane.f32.xlu0 %v3175
    %v3177 = vpop.xlane.xlu0 %3176
    %v3178 = vsel %vm960, %v3172, -inf
    %3179 = vmax.xlane.f32.xlu0 %v3178
    %v3180 = vpop.xlane.xlu0 %3179
    %v3181 = vsub.f32 %v3167, %v3177
    %v3182 = vsub.f32 %v3172, %v3180
    %v3183 = vmul.f32 %v3181, 1.442695
    %v3184 = vpow.pop %v3183
    %v3185 = vmul.f32 %v3182, 1.442695
    %v3186 = vpow.pop %v3185
    %v3187 = vsel %vm960, %v3184, 0.0
    %3188 = vadd.xlane.f32.xlu0 %v3187
    %v3189 = vpop.xlane.xlu0 %3188
    %v3190 = vsel %vm960, %v3186, 0.0
    %3191 = vadd.xlane.f32.xlu0 %v3190
    %v3192 = vpop.xlane.xlu0 %3191
    %v3193 = vrcp.pop %v3189
    %v3194 = vrcp.pop %v3192
    %v3195 = vmul.f32 %v3184, %v3193
    %v3196 = vmul.f32 %v3186, %v3194
    %3197 = vmatprep.subr.mxu0 0.0
    %3198 = vmatpush1.msra.mxu0 %v3015
    %3199 = vmatprep.subr.mxu0 0.0
    %3200 = vmatpush1.msra.mxu0 %v3016
    %3201 = vmatprep.subr.mxu0 0.0
    %3202 = vmatpush1.msra.mxu0 %v3017
    %3203 = vmatprep.subr.mxu0 0.0
    %3204 = vmatpush1.msra.mxu0 %v3018
    %3205 = vmatprep.subr.mxu0 0.0
    %3206 = vmatpush1.msra.mxu0 0.0
    %3207 = vmatprep.subr.mxu0 0.0
    %3208 = vmatpush1.msra.mxu0 0.0
    %3209 = vmatprep.subr.mxu0 0.0
    %3210 = vmatpush1.msra.mxu0 0.0
    %3211 = vmatprep.subr.mxu0 0.0
    %3212 = vmatpush1.msra.mxu0 0.0
    %3213 = vmatprep.subr.mxu0 0.0
    %3214 = vmatpush1.msra.mxu0 0.0
    %3215 = vmatprep.subr.mxu0 0.0
    %3216 = vmatpush1.msra.mxu0 0.0
    %3217 = vmatprep.subr.mxu0 0.0
    %3218 = vmatpush1.msra.mxu0 0.0
    %3219 = vmatprep.subr.mxu0 0.0
    %3220 = vmatpush1.msra.mxu0 0.0
    %3221 = vmatprep.subr.mxu0 0.0
    %3222 = vmatpush1.msra.mxu0 0.0
    %3223 = vmatprep.subr.mxu0 0.0
    %3224 = vmatpush1.msra.mxu0 0.0
    %3225 = vmatprep.subr.mxu0 0.0
    %3226 = vmatpush1.msra.mxu0 0.0
    %3227 = vmatprep.subr.mxu0 0.0
    %3228 = vmatpush1.msra.mxu0 0.0
    %3229 = vmatprep.subr.mxu0 0.0
    %3230 = vmatpush1.msra.mxu0 0.0
    %3231 = vmatprep.subr.mxu0 0.0
    %3232 = vmatpush1.msra.mxu0 0.0
    %3233 = vmatprep.subr.mxu0 0.0
    %3234 = vmatpush1.msra.mxu0 0.0
    %3235 = vmatprep.subr.mxu0 0.0
    %3236 = vmatpush1.msra.mxu0 0.0
    %3237 = vmatprep.subr.mxu0 0.0
    %3238 = vmatpush1.msra.mxu0 0.0
    %3239 = vmatprep.subr.mxu0 0.0
    %3240 = vmatpush1.msra.mxu0 0.0
    %3241 = vmatprep.subr.mxu0 0.0
    %3242 = vmatpush1.msra.mxu0 0.0
    %3243 = vmatprep.subr.mxu0 0.0
    %3244 = vmatpush1.msra.mxu0 0.0
    %3245 = vmatprep.subr.mxu0 0.0
    %3246 = vmatpush1.msra.mxu0 0.0
    %3247 = vmatprep.subr.mxu0 0.0
    %3248 = vmatpush1.msra.mxu0 0.0
    %3249 = vmatprep.subr.mxu0 0.0
    %3250 = vmatpush1.msra.mxu0 0.0
    %3251 = vmatprep.subr.mxu0 0.0
    %3252 = vmatpush1.msra.mxu0 0.0
    %3253 = vmatprep.subr.mxu0 0.0
    %3254 = vmatpush1.msra.mxu0 0.0
    %3255 = vmatprep.subr.mxu0 0.0
    %3256 = vmatpush1.msra.mxu0 0.0
    %3257 = vmatprep.subr.mxu0 0.0
    %3258 = vmatpush1.msra.mxu0 0.0
    %3259 = vmatprep.subr.mxu0 0.0
    %3260 = vmatpush1.msra.mxu0 0.0
    %3261 = vmatprep.mubr.f32.mxu0 0.0
    %3262 = vmatmul.mubr.f32.gmra.mrb[0].mxu0 %v2753
    %v3263 = vpop.f32.mrb[0].mxu0
    %v3264 = vadd.f32 0.0, %v3263
    %v3265 = vpop.f32.mrb[0].mxu0
    %3266 = vmatprep.mubr.f32.mxu0 0.0
    %3267 = vmatmul.mubr.f32.gmra.mrb[0].mxu0 %v2756
    %v3268 = vpop.f32.mrb[0].mxu0
    %v3269 = vadd.f32 0.0, %v3268
    %v3270 = vpop.f32.mrb[0].mxu0
    %3271 = vdwg.mxu0
    %v3273 = vsel %vm960, %v3195, 0
    %v3276 = vsel %vm960, %v3196, 0
    %3278 = vmatprep.subr.mxu0 0.0
    %3279 = vmatpush1.msra.mxu0 %v3264
    %3280 = vmatprep.subr.mxu0 0.0
    %3281 = vmatpush1.msra.mxu0 %v3269
    %3282 = vmatprep.subr.mxu0 0.0
    %3283 = vmatpush1.msra.mxu0 0.0
    %3284 = vmatprep.subr.mxu0 0.0
    %3285 = vmatpush1.msra.mxu0 0.0
    %3286 = vmatprep.subr.mxu0 0.0
    %3287 = vmatpush1.msra.mxu0 0.0
    %3288 = vmatprep.subr.mxu0 0.0
    %3289 = vmatpush1.msra.mxu0 0.0
    %3290 = vmatprep.subr.mxu0 0.0
    %3291 = vmatpush1.msra.mxu0 0.0
    %3292 = vmatprep.subr.mxu0 0.0
    %3293 = vmatpush1.msra.mxu0 0.0
    %3294 = vmatprep.subr.mxu0 0.0
    %3295 = vmatpush1.msra.mxu0 0.0
    %3296 = vmatprep.subr.mxu0 0.0
    %3297 = vmatpush1.msra.mxu0 0.0
    %3298 = vmatprep.subr.mxu0 0.0
    %3299 = vmatpush1.msra.mxu0 0.0
    %3300 = vmatprep.subr.mxu0 0.0
    %3301 = vmatpush1.msra.mxu0 0.0
    %3302 = vmatprep.subr.mxu0 0.0
    %3303 = vmatpush1.msra.mxu0 0.0
    %3304 = vmatprep.subr.mxu0 0.0
    %3305 = vmatpush1.msra.mxu0 0.0
    %3306 = vmatprep.subr.mxu0 0.0
    %3307 = vmatpush1.msra.mxu0 0.0
    %3308 = vmatprep.subr.mxu0 0.0
    %3309 = vmatpush1.msra.mxu0 0.0
    %3310 = vmatprep.subr.mxu0 0.0
    %3311 = vmatpush1.msra.mxu0 0.0
    %3312 = vmatprep.subr.mxu0 0.0
    %3313 = vmatpush1.msra.mxu0 0.0
    %3314 = vmatprep.subr.mxu0 0.0
    %3315 = vmatpush1.msra.mxu0 0.0
    %3316 = vmatprep.subr.mxu0 0.0
    %3317 = vmatpush1.msra.mxu0 0.0
    %3318 = vmatprep.subr.mxu0 0.0
    %3319 = vmatpush1.msra.mxu0 0.0
    %3320 = vmatprep.subr.mxu0 0.0
    %3321 = vmatpush1.msra.mxu0 0.0
    %3322 = vmatprep.subr.mxu0 0.0
    %3323 = vmatpush1.msra.mxu0 0.0
    %3324 = vmatprep.subr.mxu0 0.0
    %3325 = vmatpush1.msra.mxu0 0.0
    %3326 = vmatprep.subr.mxu0 0.0
    %3327 = vmatpush1.msra.mxu0 0.0
    %3328 = vmatprep.subr.mxu0 0.0
    %3329 = vmatpush1.msra.mxu0 0.0
    %3330 = vmatprep.subr.mxu0 0.0
    %3331 = vmatpush1.msra.mxu0 0.0
    %3332 = vmatprep.subr.mxu0 0.0
    %3333 = vmatpush1.msra.mxu0 0.0
    %3334 = vmatprep.subr.mxu0 0.0
    %3335 = vmatpush1.msra.mxu0 0.0
    %3336 = vmatprep.subr.mxu0 0.0
    %3337 = vmatpush1.msra.mxu0 0.0
    %3338 = vmatprep.subr.mxu0 0.0
    %3339 = vmatpush1.msra.mxu0 0.0
    %3340 = vmatprep.subr.mxu0 0.0
    %3341 = vmatpush1.msra.mxu0 0.0
    %3342 = vmatprep.mubr.f32.mxu0 0.0
    %3343 = vmatmul.mubr.f32.gmra.mrb[0].mxu0 %v3273
    %v3344 = vpop.f32.mrb[0].mxu0
    %v3345 = vadd.f32 0.0, %v3344
    %v3346 = vpop.f32.mrb[0].mxu0
    %3347 = vmatprep.mubr.f32.mxu0 0.0
    %3348 = vmatmul.mubr.f32.gmra.mrb[0].mxu0 %v3276
    %v3349 = vpop.f32.mrb[0].mxu0
    %v3350 = vadd.f32 0.0, %v3349
    %v3351 = vpop.f32.mrb[0].mxu0
    %3352 = vdwg.mxu0
    %v3354 = vsel %vm960, %v2934, 0
    %v3357 = vsel %vm960, %v2935, 0
    %3359 = vmatprep.subr.mxu0 0.0
    %3360 = vmatpush1.msra.mxu0 %v3003
    %3361 = vmatprep.subr.mxu0 0.0
    %3362 = vmatpush1.msra.mxu0 %v3008
    %3363 = vmatprep.subr.mxu0 0.0
    %3364 = vmatpush1.msra.mxu0 0.0
    %3365 = vmatprep.subr.mxu0 0.0
    %3366 = vmatpush1.msra.mxu0 0.0
    %3367 = vmatprep.subr.mxu0 0.0
    %3368 = vmatpush1.msra.mxu0 0.0
    %3369 = vmatprep.subr.mxu0 0.0
    %3370 = vmatpush1.msra.mxu0 0.0
    %3371 = vmatprep.subr.mxu0 0.0
    %3372 = vmatpush1.msra.mxu0 0.0
    %3373 = vmatprep.subr.mxu0 0.0
    %3374 = vmatpush1.msra.mxu0 0.0
    %3375 = vmatprep.subr.mxu0 0.0
    %3376 = vmatpush1.msra.mxu0 0.0
    %3377 = vmatprep.subr.mxu0 0.0
    %3378 = vmatpush1.msra.mxu0 0.0
    %3379 = vmatprep.subr.mxu0 0.0
    %3380 = vmatpush1.msra.mxu0 0.0
    %3381 = vmatprep.subr.mxu0 0.0
    %3382 = vmatpush1.msra.mxu0 0.0
    %3383 = vmatprep.subr.mxu0 0.0
    %3384 = vmatpush1.msra.mxu0 0.0
    %3385 = vmatprep.subr.mxu0 0.0
    %3386 = vmatpush1.msra.mxu0 0.0
    %3387 = vmatprep.subr.mxu0 0.0
    %3388 = vmatpush1.msra.mxu0 0.0
    %3389 = vmatprep.subr.mxu0 0.0
    %3390 = vmatpush1.msra.mxu0 0.0
    %3391 = vmatprep.subr.mxu0 0.0
    %3392 = vmatpush1.msra.mxu0 0.0
    %3393 = vmatprep.subr.mxu0 0.0
    %3394 = vmatpush1.msra.mxu0 0.0
    %3395 = vmatprep.subr.mxu0 0.0
    %3396 = vmatpush1.msra.mxu0 0.0
    %3397 = vmatprep.subr.mxu0 0.0
    %3398 = vmatpush1.msra.mxu0 0.0
    %3399 = vmatprep.subr.mxu0 0.0
    %3400 = vmatpush1.msra.mxu0 0.0
    %3401 = vmatprep.subr.mxu0 0.0
    %3402 = vmatpush1.msra.mxu0 0.0
    %3403 = vmatprep.subr.mxu0 0.0
    %3404 = vmatpush1.msra.mxu0 0.0
    %3405 = vmatprep.subr.mxu0 0.0
    %3406 = vmatpush1.msra.mxu0 0.0
    %3407 = vmatprep.subr.mxu0 0.0
    %3408 = vmatpush1.msra.mxu0 0.0
    %3409 = vmatprep.subr.mxu0 0.0
    %3410 = vmatpush1.msra.mxu0 0.0
    %3411 = vmatprep.subr.mxu0 0.0
    %3412 = vmatpush1.msra.mxu0 0.0
    %3413 = vmatprep.subr.mxu0 0.0
    %3414 = vmatpush1.msra.mxu0 0.0
    %3415 = vmatprep.subr.mxu0 0.0
    %3416 = vmatpush1.msra.mxu0 0.0
    %3417 = vmatprep.subr.mxu0 0.0
    %3418 = vmatpush1.msra.mxu0 0.0
    %3419 = vmatprep.subr.mxu0 0.0
    %3420 = vmatpush1.msra.mxu0 0.0
    %3421 = vmatprep.subr.mxu0 0.0
    %3422 = vmatpush1.msra.mxu0 0.0
    %3423 = vmatprep.mubr.f32.mxu0 0.0
    %3424 = vmatmul.mubr.f32.gmra.mrb[0].mxu0 %v3354
    %v3425 = vpop.f32.mrb[0].mxu0
    %v3426 = vadd.f32 %v3345, %v3425
    %v3427 = vpop.f32.mrb[0].mxu0
    %3428 = vmatprep.mubr.f32.mxu0 0.0
    %3429 = vmatmul.mubr.f32.gmra.mrb[0].mxu0 %v3357
    %v3430 = vpop.f32.mrb[0].mxu0
    %v3431 = vadd.f32 %v3350, %v3430
    %v3432 = vpop.f32.mrb[0].mxu0
    %3433 = vdwg.mxu0
    %v3434 = vld [vmem:[%s3 + $0x1c5] sm:$0xff]
    %v3435 = vld [vmem:[%s3 + $0x1cd] sm:$0xff]
    %v3436 = vld [vmem:[%s3 + $0x1d5] sm:$0xff]
    %v3437 = vld [vmem:[%s3 + $0x1dd] sm:$0xff]
    %v3438 = vld [vmem:[%s3 + $0x245] sm:$0xff]
    %v3439 = vld [vmem:[%s3 + $0x24d] sm:$0xff]
    %v3440 = vld [vmem:[%s3 + $0x255] sm:$0xff]
    %v3441 = vld [vmem:[%s3 + $0x25d] sm:$0xff]
    %3442 = vmatprep.subr.mxu0 0.0
    %3443 = vmatpush1.msra.mxu0 %v3434
    %3444 = vmatprep.subr.mxu0 0.0
    %3445 = vmatpush1.msra.mxu0 %v3435
    %3446 = vmatprep.subr.mxu0 0.0
    %3447 = vmatpush1.msra.mxu0 %v3436
    %3448 = vmatprep.subr.mxu0 0.0
    %3449 = vmatpush1.msra.mxu0 %v3437
    %3450 = vmatprep.subr.mxu0 0.0
    %3451 = vmatpush1.msra.mxu0 0.0
    %3452 = vmatprep.subr.mxu0 0.0
    %3453 = vmatpush1.msra.mxu0 0.0
    %3454 = vmatprep.subr.mxu0 0.0
    %3455 = vmatpush1.msra.mxu0 0.0
    %3456 = vmatprep.subr.mxu0 0.0
    %3457 = vmatpush1.msra.mxu0 0.0
    %3458 = vmatprep.subr.mxu0 0.0
    %3459 = vmatpush1.msra.mxu0 0.0
    %3460 = vmatprep.subr.mxu0 0.0
    %3461 = vmatpush1.msra.mxu0 0.0
    %3462 = vmatprep.subr.mxu0 0.0
    %3463 = vmatpush1.msra.mxu0 0.0
    %3464 = vmatprep.subr.mxu0 0.0
    %3465 = vmatpush1.msra.mxu0 0.0
    %3466 = vmatprep.subr.mxu0 0.0
    %3467 = vmatpush1.msra.mxu0 0.0
    %3468 = vmatprep.subr.mxu0 0.0
    %3469 = vmatpush1.msra.mxu0 0.0
    %3470 = vmatprep.subr.mxu0 0.0
    %3471 = vmatpush1.msra.mxu0 0.0
    %3472 = vmatprep.subr.mxu0 0.0
    %3473 = vmatpush1.msra.mxu0 0.0
    %3474 = vmatprep.subr.mxu0 0.0
    %3475 = vmatpush1.msra.mxu0 0.0
    %3476 = vmatprep.subr.mxu0 0.0
    %3477 = vmatpush1.msra.mxu0 0.0
    %3478 = vmatprep.subr.mxu0 0.0
    %3479 = vmatpush1.msra.mxu0 0.0
    %3480 = vmatprep.subr.mxu0 0.0
    %3481 = vmatpush1.msra.mxu0 0.0
    %3482 = vmatprep.subr.mxu0 0.0
    %3483 = vmatpush1.msra.mxu0 0.0
    %3484 = vmatprep.subr.mxu0 0.0
    %3485 = vmatpush1.msra.mxu0 0.0
    %3486 = vmatprep.subr.mxu0 0.0
    %3487 = vmatpush1.msra.mxu0 0.0
    %3488 = vmatprep.subr.mxu0 0.0
    %3489 = vmatpush1.msra.mxu0 0.0
    %3490 = vmatprep.subr.mxu0 0.0
    %3491 = vmatpush1.msra.mxu0 0.0
    %3492 = vmatprep.subr.mxu0 0.0
    %3493 = vmatpush1.msra.mxu0 0.0
    %3494 = vmatprep.subr.mxu0 0.0
    %3495 = vmatpush1.msra.mxu0 0.0
    %3496 = vmatprep.subr.mxu0 0.0
    %3497 = vmatpush1.msra.mxu0 0.0
    %3498 = vmatprep.subr.mxu0 0.0
    %3499 = vmatpush1.msra.mxu0 0.0
    %3500 = vmatprep.subr.mxu0 0.0
    %3501 = vmatpush1.msra.mxu0 0.0
    %3502 = vmatprep.subr.mxu0 0.0
    %3503 = vmatpush1.msra.mxu0 0.0
    %3504 = vmatprep.subr.mxu0 0.0
    %3505 = vmatpush1.msra.mxu0 0.0
    %3506 = vmatprep.mubr.f32.mxu0 0.0
    %3507 = vmatmul.mubr.f32.gmra.mrb[0].mxu0 %v2753
    %v3508 = vpop.f32.mrb[0].mxu0
    %v3509 = vadd.f32 0.0, %v3508
    %v3510 = vpop.f32.mrb[0].mxu0
    %3511 = vmatprep.mubr.f32.mxu0 0.0
    %3512 = vmatmul.mubr.f32.gmra.mrb[0].mxu0 %v2756
    %v3513 = vpop.f32.mrb[0].mxu0
    %v3514 = vadd.f32 0.0, %v3513
    %v3515 = vpop.f32.mrb[0].mxu0
    %3516 = vdwg.mxu0
    %v3518 = vsel %vm29, %v3509, 0
    %v3521 = vsel %vm29, %v3514, 0
    %3523 = vmatprep.subr.mxu0 0.0
    %3524 = vmatpush1.xpose.msra.mxu0 %v2753
    %3525 = vmatprep.subr.mxu0 0.0
    %3526 = vmatpush1.xpose.msra.mxu0 %v2756
    %3527 = vmatprep.subr.mxu0 0.0
    %3528 = vmatpush1.xpose.msra.mxu0 0.0
    %3529 = vmatprep.subr.mxu0 0.0
    %3530 = vmatpush1.xpose.msra.mxu0 0.0
    %3531 = vmatprep.subr.mxu0 0.0
    %3532 = vmatpush1.xpose.msra.mxu0 0.0
    %3533 = vmatprep.subr.mxu0 0.0
    %3534 = vmatpush1.xpose.msra.mxu0 0.0
    %3535 = vmatprep.subr.mxu0 0.0
    %3536 = vmatpush1.xpose.msra.mxu0 0.0
    %3537 = vmatprep.subr.mxu0 0.0
    %3538 = vmatpush1.xpose.msra.mxu0 0.0
    %3539 = vmatprep.subr.mxu0 0.0
    %3540 = vmatpush1.xpose.msra.mxu0 0.0
    %3541 = vmatprep.subr.mxu0 0.0
    %3542 = vmatpush1.xpose.msra.mxu0 0.0
    %3543 = vmatprep.subr.mxu0 0.0
    %3544 = vmatpush1.xpose.msra.mxu0 0.0
    %3545 = vmatprep.subr.mxu0 0.0
    %3546 = vmatpush1.xpose.msra.mxu0 0.0
    %3547 = vmatprep.subr.mxu0 0.0
    %3548 = vmatpush1.xpose.msra.mxu0 0.0
    %3549 = vmatprep.subr.mxu0 0.0
    %3550 = vmatpush1.xpose.msra.mxu0 0.0
    %3551 = vmatprep.subr.mxu0 0.0
    %3552 = vmatpush1.xpose.msra.mxu0 0.0
    %3553 = vmatprep.subr.mxu0 0.0
    %3554 = vmatpush1.xpose.msra.mxu0 0.0
    %3555 = vmatprep.subr.mxu0 0.0
    %3556 = vmatpush1.xpose.msra.mxu0 0.0
    %3557 = vmatprep.subr.mxu0 0.0
    %3558 = vmatpush1.xpose.msra.mxu0 0.0
    %3559 = vmatprep.subr.mxu0 0.0
    %3560 = vmatpush1.xpose.msra.mxu0 0.0
    %3561 = vmatprep.subr.mxu0 0.0
    %3562 = vmatpush1.xpose.msra.mxu0 0.0
    %3563 = vmatprep.subr.mxu0 0.0
    %3564 = vmatpush1.xpose.msra.mxu0 0.0
    %3565 = vmatprep.subr.mxu0 0.0
    %3566 = vmatpush1.xpose.msra.mxu0 0.0
    %3567 = vmatprep.subr.mxu0 0.0
    %3568 = vmatpush1.xpose.msra.mxu0 0.0
    %3569 = vmatprep.subr.mxu0 0.0
    %3570 = vmatpush1.xpose.msra.mxu0 0.0
    %3571 = vmatprep.subr.mxu0 0.0
    %3572 = vmatpush1.xpose.msra.mxu0 0.0
    %3573 = vmatprep.subr.mxu0 0.0
    %3574 = vmatpush1.xpose.msra.mxu0 0.0
    %3575 = vmatprep.subr.mxu0 0.0
    %3576 = vmatpush1.xpose.msra.mxu0 0.0
    %3577 = vmatprep.subr.mxu0 0.0
    %3578 = vmatpush1.xpose.msra.mxu0 0.0
    %3579 = vmatprep.subr.mxu0 0.0
    %3580 = vmatpush1.xpose.msra.mxu0 0.0
    %3581 = vmatprep.subr.mxu0 0.0
    %3582 = vmatpush1.xpose.msra.mxu0 0.0
    %3583 = vmatprep.subr.mxu0 0.0
    %3584 = vmatpush1.xpose.msra.mxu0 0.0
    %3585 = vmatprep.subr.mxu0 0.0
    %3586 = vmatpush1.xpose.msra.mxu0 0.0
    %3587 = vmatprep.mubr.f32.mxu0 0.0
    %3588 = vmatmul.mubr.f32.gmra.mrb[0].mxu0 %v3518
    %v3589 = vpop.f32.mrb[0].mxu0
    %v3590 = vadd.f32 %v1049, %v3589
    %v3591 = vpop.f32.mrb[0].mxu0
    %3592 = vmatprep.mubr.f32.mxu0 0.0
    %3593 = vmatmul.mubr.f32.gmra.mrb[0].mxu0 %v3521
    %v3594 = vpop.f32.mrb[0].mxu0
    %v3595 = vadd.f32 %v1050, %v3594
    %v3596 = vpop.f32.mrb[0].mxu0
    %3597 = vdwg.mxu0
    %v3598 = vsel %vm960, %v3590, -inf
    %3599 = vmax.xlane.f32.xlu0 %v3598
    %v3600 = vpop.xlane.xlu0 %3599
    %v3601 = vsel %vm960, %v3595, -inf
    %3602 = vmax.xlane.f32.xlu0 %v3601
    %v3603 = vpop.xlane.xlu0 %3602
    %v3604 = vsub.f32 %v3590, %v3600
    %v3605 = vsub.f32 %v3595, %v3603
    %v3606 = vmul.f32 %v3604, 1.442695
    %v3607 = vpow.pop %v3606
    %v3608 = vmul.f32 %v3605, 1.442695
    %v3609 = vpow.pop %v3608
    %v3610 = vsel %vm960, %v3607, 0.0
    %3611 = vadd.xlane.f32.xlu0 %v3610
    %v3612 = vpop.xlane.xlu0 %3611
    %v3613 = vsel %vm960, %v3609, 0.0
    %3614 = vadd.xlane.f32.xlu0 %v3613
    %v3615 = vpop.xlane.xlu0 %3614
    %v3616 = vrcp.pop %v3612
    %v3617 = vrcp.pop %v3615
    %v3618 = vmul.f32 %v3607, %v3616
    %v3619 = vmul.f32 %v3609, %v3617
    %3620 = vmatprep.subr.mxu0 0.0
    %3621 = vmatpush1.msra.mxu0 %v3438
    %3622 = vmatprep.subr.mxu0 0.0
    %3623 = vmatpush1.msra.mxu0 %v3439
    %3624 = vmatprep.subr.mxu0 0.0
    %3625 = vmatpush1.msra.mxu0 %v3440
    %3626 = vmatprep.subr.mxu0 0.0
    %3627 = vmatpush1.msra.mxu0 %v3441
    %3628 = vmatprep.subr.mxu0 0.0
    %3629 = vmatpush1.msra.mxu0 0.0
    %3630 = vmatprep.subr.mxu0 0.0
    %3631 = vmatpush1.msra.mxu0 0.0
    %3632 = vmatprep.subr.mxu0 0.0
    %3633 = vmatpush1.msra.mxu0 0.0
    %3634 = vmatprep.subr.mxu0 0.0
    %3635 = vmatpush1.msra.mxu0 0.0
    %3636 = vmatprep.subr.mxu0 0.0
    %3637 = vmatpush1.msra.mxu0 0.0
    %3638 = vmatprep.subr.mxu0 0.0
    %3639 = vmatpush1.msra.mxu0 0.0
    %3640 = vmatprep.subr.mxu0 0.0
    %3641 = vmatpush1.msra.mxu0 0.0
    %3642 = vmatprep.subr.mxu0 0.0
    %3643 = vmatpush1.msra.mxu0 0.0
    %3644 = vmatprep.subr.mxu0 0.0
    %3645 = vmatpush1.msra.mxu0 0.0
    %3646 = vmatprep.subr.mxu0 0.0
    %3647 = vmatpush1.msra.mxu0 0.0
    %3648 = vmatprep.subr.mxu0 0.0
    %3649 = vmatpush1.msra.mxu0 0.0
    %3650 = vmatprep.subr.mxu0 0.0
    %3651 = vmatpush1.msra.mxu0 0.0
    %3652 = vmatprep.subr.mxu0 0.0
    %3653 = vmatpush1.msra.mxu0 0.0
    %3654 = vmatprep.subr.mxu0 0.0
    %3655 = vmatpush1.msra.mxu0 0.0
    %3656 = vmatprep.subr.mxu0 0.0
    %3657 = vmatpush1.msra.mxu0 0.0
    %3658 = vmatprep.subr.mxu0 0.0
    %3659 = vmatpush1.msra.mxu0 0.0
    %3660 = vmatprep.subr.mxu0 0.0
    %3661 = vmatpush1.msra.mxu0 0.0
    %3662 = vmatprep.subr.mxu0 0.0
    %3663 = vmatpush1.msra.mxu0 0.0
    %3664 = vmatprep.subr.mxu0 0.0
    %3665 = vmatpush1.msra.mxu0 0.0
    %3666 = vmatprep.subr.mxu0 0.0
    %3667 = vmatpush1.msra.mxu0 0.0
    %3668 = vmatprep.subr.mxu0 0.0
    %3669 = vmatpush1.msra.mxu0 0.0
    %3670 = vmatprep.subr.mxu0 0.0
    %3671 = vmatpush1.msra.mxu0 0.0
    %3672 = vmatprep.subr.mxu0 0.0
    %3673 = vmatpush1.msra.mxu0 0.0
    %3674 = vmatprep.subr.mxu0 0.0
    %3675 = vmatpush1.msra.mxu0 0.0
    %3676 = vmatprep.subr.mxu0 0.0
    %3677 = vmatpush1.msra.mxu0 0.0
    %3678 = vmatprep.subr.mxu0 0.0
    %3679 = vmatpush1.msra.mxu0 0.0
    %3680 = vmatprep.subr.mxu0 0.0
    %3681 = vmatpush1.msra.mxu0 0.0
    %3682 = vmatprep.subr.mxu0 0.0
    %3683 = vmatpush1.msra.mxu0 0.0
    %3684 = vmatprep.mubr.f32.mxu0 0.0
    %3685 = vmatmul.mubr.f32.gmra.mrb[0].mxu0 %v2753
    %v3686 = vpop.f32.mrb[0].mxu0
    %v3687 = vadd.f32 0.0, %v3686
    %v3688 = vpop.f32.mrb[0].mxu0
    %3689 = vmatprep.mubr.f32.mxu0 0.0
    %3690 = vmatmul.mubr.f32.gmra.mrb[0].mxu0 %v2756
    %v3691 = vpop.f32.mrb[0].mxu0
    %v3692 = vadd.f32 0.0, %v3691
    %v3693 = vpop.f32.mrb[0].mxu0
    %3694 = vdwg.mxu0
    %v3696 = vsel %vm960, %v3618, 0
    %v3699 = vsel %vm960, %v3619, 0
    %3701 = vmatprep.subr.mxu0 0.0
    %3702 = vmatpush1.msra.mxu0 %v3687
    %3703 = vmatprep.subr.mxu0 0.0
    %3704 = vmatpush1.msra.mxu0 %v3692
    %3705 = vmatprep.subr.mxu0 0.0
    %3706 = vmatpush1.msra.mxu0 0.0
    %3707 = vmatprep.subr.mxu0 0.0
    %3708 = vmatpush1.msra.mxu0 0.0
    %3709 = vmatprep.subr.mxu0 0.0
    %3710 = vmatpush1.msra.mxu0 0.0
    %3711 = vmatprep.subr.mxu0 0.0
    %3712 = vmatpush1.msra.mxu0 0.0
    %3713 = vmatprep.subr.mxu0 0.0
    %3714 = vmatpush1.msra.mxu0 0.0
    %3715 = vmatprep.subr.mxu0 0.0
    %3716 = vmatpush1.msra.mxu0 0.0
    %3717 = vmatprep.subr.mxu0 0.0
    %3718 = vmatpush1.msra.mxu0 0.0
    %3719 = vmatprep.subr.mxu0 0.0
    %3720 = vmatpush1.msra.mxu0 0.0
    %3721 = vmatprep.subr.mxu0 0.0
    %3722 = vmatpush1.msra.mxu0 0.0
    %3723 = vmatprep.subr.mxu0 0.0
    %3724 = vmatpush1.msra.mxu0 0.0
    %3725 = vmatprep.subr.mxu0 0.0
    %3726 = vmatpush1.msra.mxu0 0.0
    %3727 = vmatprep.subr.mxu0 0.0
    %3728 = vmatpush1.msra.mxu0 0.0
    %3729 = vmatprep.subr.mxu0 0.0
    %3730 = vmatpush1.msra.mxu0 0.0
    %3731 = vmatprep.subr.mxu0 0.0
    %3732 = vmatpush1.msra.mxu0 0.0
    %3733 = vmatprep.subr.mxu0 0.0
    %3734 = vmatpush1.msra.mxu0 0.0
    %3735 = vmatprep.subr.mxu0 0.0
    %3736 = vmatpush1.msra.mxu0 0.0
    %3737 = vmatprep.subr.mxu0 0.0
    %3738 = vmatpush1.msra.mxu0 0.0
    %3739 = vmatprep.subr.mxu0 0.0
    %3740 = vmatpush1.msra.mxu0 0.0
    %3741 = vmatprep.subr.mxu0 0.0
    %3742 = vmatpush1.msra.mxu0 0.0
    %3743 = vmatprep.subr.mxu0 0.0
    %3744 = vmatpush1.msra.mxu0 0.0
    %3745 = vmatprep.subr.mxu0 0.0
    %3746 = vmatpush1.msra.mxu0 0.0
    %3747 = vmatprep.subr.mxu0 0.0
    %3748 = vmatpush1.msra.mxu0 0.0
    %3749 = vmatprep.subr.mxu0 0.0
    %3750 = vmatpush1.msra.mxu0 0.0
    %3751 = vmatprep.subr.mxu0 0.0
    %3752 = vmatpush1.msra.mxu0 0.0
    %3753 = vmatprep.subr.mxu0 0.0
    %3754 = vmatpush1.msra.mxu0 0.0
    %3755 = vmatprep.subr.mxu0 0.0
    %3756 = vmatpush1.msra.mxu0 0.0
    %3757 = vmatprep.subr.mxu0 0.0
    %3758 = vmatpush1.msra.mxu0 0.0
    %3759 = vmatprep.subr.mxu0 0.0
    %3760 = vmatpush1.msra.mxu0 0.0
    %3761 = vmatprep.subr.mxu0 0.0
    %3762 = vmatpush1.msra.mxu0 0.0
    %3763 = vmatprep.subr.mxu0 0.0
    %3764 = vmatpush1.msra.mxu0 0.0
    %3765 = vmatprep.mubr.f32.mxu0 0.0
    %3766 = vmatmul.mubr.f32.gmra.mrb[0].mxu0 %v3696
    %v3767 = vpop.f32.mrb[0].mxu0
    %v3768 = vadd.f32 0.0, %v3767
    %v3769 = vpop.f32.mrb[0].mxu0
    %3770 = vmatprep.mubr.f32.mxu0 0.0
    %3771 = vmatmul.mubr.f32.gmra.mrb[0].mxu0 %v3699
    %v3772 = vpop.f32.mrb[0].mxu0
    %v3773 = vadd.f32 0.0, %v3772
    %v3774 = vpop.f32.mrb[0].mxu0
    %3775 = vdwg.mxu0
    %v3776 = vadd.f32 %v3426, %v3768
    %v3777 = vadd.f32 %v3431, %v3773
    %v3778 = vld [vmem:[%s3 + $0x1e5] sm:$0xff]
    %v3779 = vld [vmem:[%s3 + $0x1ed] sm:$0xff]
    %v3780 = vld [vmem:[%s3 + $0x1f5] sm:$0xff]
    %v3781 = vld [vmem:[%s3 + $0x1fd] sm:$0xff]
    %v3782 = vld [vmem:[%s3 + $0x265] sm:$0xff]
    %v3783 = vld [vmem:[%s3 + $0x26d] sm:$0xff]
    %v3784 = vld [vmem:[%s3 + $0x275] sm:$0xff]
    %v3785 = vld [vmem:[%s3 + $0x27d] sm:$0xff]
    %3786 = vmatprep.subr.mxu0 0.0
    %3787 = vmatpush1.msra.mxu0 %v3778
    %3788 = vmatprep.subr.mxu0 0.0
    %3789 = vmatpush1.msra.mxu0 %v3779
    %3790 = vmatprep.subr.mxu0 0.0
    %3791 = vmatpush1.msra.mxu0 %v3780
    %3792 = vmatprep.subr.mxu0 0.0
    %3793 = vmatpush1.msra.mxu0 %v3781
    %3794 = vmatprep.subr.mxu0 0.0
    %3795 = vmatpush1.msra.mxu0 0.0
    %3796 = vmatprep.subr.mxu0 0.0
    %3797 = vmatpush1.msra.mxu0 0.0
    %3798 = vmatprep.subr.mxu0 0.0
    %3799 = vmatpush1.msra.mxu0 0.0
    %3800 = vmatprep.subr.mxu0 0.0
    %3801 = vmatpush1.msra.mxu0 0.0
    %3802 = vmatprep.subr.mxu0 0.0
    %3803 = vmatpush1.msra.mxu0 0.0
    %3804 = vmatprep.subr.mxu0 0.0
    %3805 = vmatpush1.msra.mxu0 0.0
    %3806 = vmatprep.subr.mxu0 0.0
    %3807 = vmatpush1.msra.mxu0 0.0
    %3808 = vmatprep.subr.mxu0 0.0
    %3809 = vmatpush1.msra.mxu0 0.0
    %3810 = vmatprep.subr.mxu0 0.0
    %3811 = vmatpush1.msra.mxu0 0.0
    %3812 = vmatprep.subr.mxu0 0.0
    %3813 = vmatpush1.msra.mxu0 0.0
    %3814 = vmatprep.subr.mxu0 0.0
    %3815 = vmatpush1.msra.mxu0 0.0
    %3816 = vmatprep.subr.mxu0 0.0
    %3817 = vmatpush1.msra.mxu0 0.0
    %3818 = vmatprep.subr.mxu0 0.0
    %3819 = vmatpush1.msra.mxu0 0.0
    %3820 = vmatprep.subr.mxu0 0.0
    %3821 = vmatpush1.msra.mxu0 0.0
    %3822 = vmatprep.subr.mxu0 0.0
    %3823 = vmatpush1.msra.mxu0 0.0
    %3824 = vmatprep.subr.mxu0 0.0
    %3825 = vmatpush1.msra.mxu0 0.0
    %3826 = vmatprep.subr.mxu0 0.0
    %3827 = vmatpush1.msra.mxu0 0.0
    %3828 = vmatprep.subr.mxu0 0.0
    %3829 = vmatpush1.msra.mxu0 0.0
    %3830 = vmatprep.subr.mxu0 0.0
    %3831 = vmatpush1.msra.mxu0 0.0
    %3832 = vmatprep.subr.mxu0 0.0
    %3833 = vmatpush1.msra.mxu0 0.0
    %3834 = vmatprep.subr.mxu0 0.0
    %3835 = vmatpush1.msra.mxu0 0.0
    %3836 = vmatprep.subr.mxu0 0.0
    %3837 = vmatpush1.msra.mxu0 0.0
    %3838 = vmatprep.subr.mxu0 0.0
    %3839 = vmatpush1.msra.mxu0 0.0
    %3840 = vmatprep.subr.mxu0 0.0
    %3841 = vmatpush1.msra.mxu0 0.0
    %3842 = vmatprep.subr.mxu0 0.0
    %3843 = vmatpush1.msra.mxu0 0.0
    %3844 = vmatprep.subr.mxu0 0.0
    %3845 = vmatpush1.msra.mxu0 0.0
    %3846 = vmatprep.subr.mxu0 0.0
    %3847 = vmatpush1.msra.mxu0 0.0
    %3848 = vmatprep.subr.mxu0 0.0
    %3849 = vmatpush1.msra.mxu0 0.0
    %3850 = vmatprep.mubr.f32.mxu0 0.0
    %3851 = vmatmul.mubr.f32.gmra.mrb[0].mxu0 %v2753
    %v3852 = vpop.f32.mrb[0].mxu0
    %v3853 = vadd.f32 0.0, %v3852
    %v3854 = vpop.f32.mrb[0].mxu0
    %3855 = vmatprep.mubr.f32.mxu0 0.0
    %3856 = vmatmul.mubr.f32.gmra.mrb[0].mxu0 %v2756
    %v3857 = vpop.f32.mrb[0].mxu0
    %v3858 = vadd.f32 0.0, %v3857
    %v3859 = vpop.f32.mrb[0].mxu0
    %3860 = vdwg.mxu0
    %v3862 = vsel %vm29, %v3853, 0
    %v3865 = vsel %vm29, %v3858, 0
    %3867 = vmatprep.subr.mxu0 0.0
    %3868 = vmatpush1.xpose.msra.mxu0 %v2753
    %3869 = vmatprep.subr.mxu0 0.0
    %3870 = vmatpush1.xpose.msra.mxu0 %v2756
    %3871 = vmatprep.subr.mxu0 0.0
    %3872 = vmatpush1.xpose.msra.mxu0 0.0
    %3873 = vmatprep.subr.mxu0 0.0
    %3874 = vmatpush1.xpose.msra.mxu0 0.0
    %3875 = vmatprep.subr.mxu0 0.0
    %3876 = vmatpush1.xpose.msra.mxu0 0.0
    %3877 = vmatprep.subr.mxu0 0.0
    %3878 = vmatpush1.xpose.msra.mxu0 0.0
    %3879 = vmatprep.subr.mxu0 0.0
    %3880 = vmatpush1.xpose.msra.mxu0 0.0
    %3881 = vmatprep.subr.mxu0 0.0
    %3882 = vmatpush1.xpose.msra.mxu0 0.0
    %3883 = vmatprep.subr.mxu0 0.0
    %3884 = vmatpush1.xpose.msra.mxu0 0.0
    %3885 = vmatprep.subr.mxu0 0.0
    %3886 = vmatpush1.xpose.msra.mxu0 0.0
    %3887 = vmatprep.subr.mxu0 0.0
    %3888 = vmatpush1.xpose.msra.mxu0 0.0
    %3889 = vmatprep.subr.mxu0 0.0
    %3890 = vmatpush1.xpose.msra.mxu0 0.0
    %3891 = vmatprep.subr.mxu0 0.0
    %3892 = vmatpush1.xpose.msra.mxu0 0.0
    %3893 = vmatprep.subr.mxu0 0.0
    %3894 = vmatpush1.xpose.msra.mxu0 0.0
    %3895 = vmatprep.subr.mxu0 0.0
    %3896 = vmatpush1.xpose.msra.mxu0 0.0
    %3897 = vmatprep.subr.mxu0 0.0
    %3898 = vmatpush1.xpose.msra.mxu0 0.0
    %3899 = vmatprep.subr.mxu0 0.0
    %3900 = vmatpush1.xpose.msra.mxu0 0.0
    %3901 = vmatprep.subr.mxu0 0.0
    %3902 = vmatpush1.xpose.msra.mxu0 0.0
    %3903 = vmatprep.subr.mxu0 0.0
    %3904 = vmatpush1.xpose.msra.mxu0 0.0
    %3905 = vmatprep.subr.mxu0 0.0
    %3906 = vmatpush1.xpose.msra.mxu0 0.0
    %3907 = vmatprep.subr.mxu0 0.0
    %3908 = vmatpush1.xpose.msra.mxu0 0.0
    %3909 = vmatprep.subr.mxu0 0.0
    %3910 = vmatpush1.xpose.msra.mxu0 0.0
    %3911 = vmatprep.subr.mxu0 0.0
    %3912 = vmatpush1.xpose.msra.mxu0 0.0
    %3913 = vmatprep.subr.mxu0 0.0
    %3914 = vmatpush1.xpose.msra.mxu0 0.0
    %3915 = vmatprep.subr.mxu0 0.0
    %3916 = vmatpush1.xpose.msra.mxu0 0.0
    %3917 = vmatprep.subr.mxu0 0.0
    %3918 = vmatpush1.xpose.msra.mxu0 0.0
    %3919 = vmatprep.subr.mxu0 0.0
    %3920 = vmatpush1.xpose.msra.mxu0 0.0
    %3921 = vmatprep.subr.mxu0 0.0
    %3922 = vmatpush1.xpose.msra.mxu0 0.0
    %3923 = vmatprep.subr.mxu0 0.0
    %3924 = vmatpush1.xpose.msra.mxu0 0.0
    %3925 = vmatprep.subr.mxu0 0.0
    %3926 = vmatpush1.xpose.msra.mxu0 0.0
    %3927 = vmatprep.subr.mxu0 0.0
    %3928 = vmatpush1.xpose.msra.mxu0 0.0
    %3929 = vmatprep.subr.mxu0 0.0
    %3930 = vmatpush1.xpose.msra.mxu0 0.0
    %3931 = vmatprep.mubr.f32.mxu0 0.0
    %3932 = vmatmul.mubr.f32.gmra.mrb[0].mxu0 %v3862
    %v3933 = vpop.f32.mrb[0].mxu0
    %v3934 = vadd.f32 %v1049, %v3933
    %v3935 = vpop.f32.mrb[0].mxu0
    %3936 = vmatprep.mubr.f32.mxu0 0.0
    %3937 = vmatmul.mubr.f32.gmra.mrb[0].mxu0 %v3865
    %v3938 = vpop.f32.mrb[0].mxu0
    %v3939 = vadd.f32 %v1050, %v3938
    %v3940 = vpop.f32.mrb[0].mxu0
    %3941 = vdwg.mxu0
    %v3942 = vsel %vm960, %v3934, -inf
    %3943 = vmax.xlane.f32.xlu0 %v3942
    %v3944 = vpop.xlane.xlu0 %3943
    %v3945 = vsel %vm960, %v3939, -inf
    %3946 = vmax.xlane.f32.xlu0 %v3945
    %v3947 = vpop.xlane.xlu0 %3946
    %v3948 = vsub.f32 %v3934, %v3944
    %v3949 = vsub.f32 %v3939, %v3947
    %v3950 = vmul.f32 %v3948, 1.442695
    %v3951 = vpow.pop %v3950
    %v3952 = vmul.f32 %v3949, 1.442695
    %v3953 = vpow.pop %v3952
    %v3954 = vsel %vm960, %v3951, 0.0
    %3955 = vadd.xlane.f32.xlu0 %v3954
    %v3956 = vpop.xlane.xlu0 %3955
    %v3957 = vsel %vm960, %v3953, 0.0
    %3958 = vadd.xlane.f32.xlu0 %v3957
    %v3959 = vpop.xlane.xlu0 %3958
    %v3960 = vrcp.pop %v3956
    %v3961 = vrcp.pop %v3959
    %v3962 = vmul.f32 %v3951, %v3960
    %v3963 = vmul.f32 %v3953, %v3961
    %3964 = vmatprep.subr.mxu0 0.0
    %3965 = vmatpush1.msra.mxu0 %v3782
    %3966 = vmatprep.subr.mxu0 0.0
    %3967 = vmatpush1.msra.mxu0 %v3783
    %3968 = vmatprep.subr.mxu0 0.0
    %3969 = vmatpush1.msra.mxu0 %v3784
    %3970 = vmatprep.subr.mxu0 0.0
    %3971 = vmatpush1.msra.mxu0 %v3785
    %3972 = vmatprep.subr.mxu0 0.0
    %3973 = vmatpush1.msra.mxu0 0.0
    %3974 = vmatprep.subr.mxu0 0.0
    %3975 = vmatpush1.msra.mxu0 0.0
    %3976 = vmatprep.subr.mxu0 0.0
    %3977 = vmatpush1.msra.mxu0 0.0
    %3978 = vmatprep.subr.mxu0 0.0
    %3979 = vmatpush1.msra.mxu0 0.0
    %3980 = vmatprep.subr.mxu0 0.0
    %3981 = vmatpush1.msra.mxu0 0.0
    %3982 = vmatprep.subr.mxu0 0.0
    %3983 = vmatpush1.msra.mxu0 0.0
    %3984 = vmatprep.subr.mxu0 0.0
    %3985 = vmatpush1.msra.mxu0 0.0
    %3986 = vmatprep.subr.mxu0 0.0
    %3987 = vmatpush1.msra.mxu0 0.0
    %3988 = vmatprep.subr.mxu0 0.0
    %3989 = vmatpush1.msra.mxu0 0.0
    %3990 = vmatprep.subr.mxu0 0.0
    %3991 = vmatpush1.msra.mxu0 0.0
    %3992 = vmatprep.subr.mxu0 0.0
    %3993 = vmatpush1.msra.mxu0 0.0
    %3994 = vmatprep.subr.mxu0 0.0
    %3995 = vmatpush1.msra.mxu0 0.0
    %3996 = vmatprep.subr.mxu0 0.0
    %3997 = vmatpush1.msra.mxu0 0.0
    %3998 = vmatprep.subr.mxu0 0.0
    %3999 = vmatpush1.msra.mxu0 0.0
    %4000 = vmatprep.subr.mxu0 0.0
    %4001 = vmatpush1.msra.mxu0 0.0
    %4002 = vmatprep.subr.mxu0 0.0
    %4003 = vmatpush1.msra.mxu0 0.0
    %4004 = vmatprep.subr.mxu0 0.0
    %4005 = vmatpush1.msra.mxu0 0.0
    %4006 = vmatprep.subr.mxu0 0.0
    %4007 = vmatpush1.msra.mxu0 0.0
    %4008 = vmatprep.subr.mxu0 0.0
    %4009 = vmatpush1.msra.mxu0 0.0
    %4010 = vmatprep.subr.mxu0 0.0
    %4011 = vmatpush1.msra.mxu0 0.0
    %4012 = vmatprep.subr.mxu0 0.0
    %4013 = vmatpush1.msra.mxu0 0.0
    %4014 = vmatprep.subr.mxu0 0.0
    %4015 = vmatpush1.msra.mxu0 0.0
    %4016 = vmatprep.subr.mxu0 0.0
    %4017 = vmatpush1.msra.mxu0 0.0
    %4018 = vmatprep.subr.mxu0 0.0
    %4019 = vmatpush1.msra.mxu0 0.0
    %4020 = vmatprep.subr.mxu0 0.0
    %4021 = vmatpush1.msra.mxu0 0.0
    %4022 = vmatprep.subr.mxu0 0.0
    %4023 = vmatpush1.msra.mxu0 0.0
    %4024 = vmatprep.subr.mxu0 0.0
    %4025 = vmatpush1.msra.mxu0 0.0
    %4026 = vmatprep.subr.mxu0 0.0
    %4027 = vmatpush1.msra.mxu0 0.0
    %4028 = vmatprep.mubr.f32.mxu0 0.0
    %4029 = vmatmul.mubr.f32.gmra.mrb[0].mxu0 %v2753
    %v4030 = vpop.f32.mrb[0].mxu0
    %v4031 = vadd.f32 0.0, %v4030
    %v4032 = vpop.f32.mrb[0].mxu0
    %4033 = vmatprep.mubr.f32.mxu0 0.0
    %4034 = vmatmul.mubr.f32.gmra.mrb[0].mxu0 %v2756
    %v4035 = vpop.f32.mrb[0].mxu0
    %v4036 = vadd.f32 0.0, %v4035
    %v4037 = vpop.f32.mrb[0].mxu0
    %4038 = vdwg.mxu0
    %v4040 = vsel %vm960, %v3962, 0
    %v4043 = vsel %vm960, %v3963, 0
    %4045 = vmatprep.subr.mxu0 0.0
    %4046 = vmatpush1.msra.mxu0 %v4031
    %4047 = vmatprep.subr.mxu0 0.0
    %4048 = vmatpush1.msra.mxu0 %v4036
    %4049 = vmatprep.subr.mxu0 0.0
    %4050 = vmatpush1.msra.mxu0 0.0
    %4051 = vmatprep.subr.mxu0 0.0
    %4052 = vmatpush1.msra.mxu0 0.0
    %4053 = vmatprep.subr.mxu0 0.0
    %4054 = vmatpush1.msra.mxu0 0.0
    %4055 = vmatprep.subr.mxu0 0.0
    %4056 = vmatpush1.msra.mxu0 0.0
    %4057 = vmatprep.subr.mxu0 0.0
    %4058 = vmatpush1.msra.mxu0 0.0
    %4059 = vmatprep.subr.mxu0 0.0
    %4060 = vmatpush1.msra.mxu0 0.0
    %4061 = vmatprep.subr.mxu0 0.0
    %4062 = vmatpush1.msra.mxu0 0.0
    %4063 = vmatprep.subr.mxu0 0.0
    %4064 = vmatpush1.msra.mxu0 0.0
    %4065 = vmatprep.subr.mxu0 0.0
    %4066 = vmatpush1.msra.mxu0 0.0
    %4067 = vmatprep.subr.mxu0 0.0
    %4068 = vmatpush1.msra.mxu0 0.0
    %4069 = vmatprep.subr.mxu0 0.0
    %4070 = vmatpush1.msra.mxu0 0.0
    %4071 = vmatprep.subr.mxu0 0.0
    %4072 = vmatpush1.msra.mxu0 0.0
    %4073 = vmatprep.subr.mxu0 0.0
    %4074 = vmatpush1.msra.mxu0 0.0
    %4075 = vmatprep.subr.mxu0 0.0
    %4076 = vmatpush1.msra.mxu0 0.0
    %4077 = vmatprep.subr.mxu0 0.0
    %4078 = vmatpush1.msra.mxu0 0.0
    %4079 = vmatprep.subr.mxu0 0.0
    %4080 = vmatpush1.msra.mxu0 0.0
    %4081 = vmatprep.subr.mxu0 0.0
    %4082 = vmatpush1.msra.mxu0 0.0
    %4083 = vmatprep.subr.mxu0 0.0
    %4084 = vmatpush1.msra.mxu0 0.0
    %4085 = vmatprep.subr.mxu0 0.0
    %4086 = vmatpush1.msra.mxu0 0.0
    %4087 = vmatprep.subr.mxu0 0.0
    %4088 = vmatpush1.msra.mxu0 0.0
    %4089 = vmatprep.subr.mxu0 0.0
    %4090 = vmatpush1.msra.mxu0 0.0
    %4091 = vmatprep.subr.mxu0 0.0
    %4092 = vmatpush1.msra.mxu0 0.0
    %4093 = vmatprep.subr.mxu0 0.0
    %4094 = vmatpush1.msra.mxu0 0.0
    %4095 = vmatprep.subr.mxu0 0.0
    %4096 = vmatpush1.msra.mxu0 0.0
    %4097 = vmatprep.subr.mxu0 0.0
    %4098 = vmatpush1.msra.mxu0 0.0
    %4099 = vmatprep.subr.mxu0 0.0
    %4100 = vmatpush1.msra.mxu0 0.0
    %4101 = vmatprep.subr.mxu0 0.0
    %4102 = vmatpush1.msra.mxu0 0.0
    %4103 = vmatprep.subr.mxu0 0.0
    %4104 = vmatpush1.msra.mxu0 0.0
    %4105 = vmatprep.subr.mxu0 0.0
    %4106 = vmatpush1.msra.mxu0 0.0
    %4107 = vmatprep.subr.mxu0 0.0
    %4108 = vmatpush1.msra.mxu0 0.0
    %4109 = vmatprep.mubr.f32.mxu0 0.0
    %4110 = vmatmul.mubr.f32.gmra.mrb[0].mxu0 %v4040
    %v4111 = vpop.f32.mrb[0].mxu0
    %v4112 = vadd.f32 0.0, %v4111
    %v4113 = vpop.f32.mrb[0].mxu0
    %4114 = vmatprep.mubr.f32.mxu0 0.0
    %4115 = vmatmul.mubr.f32.gmra.mrb[0].mxu0 %v4043
    %v4116 = vpop.f32.mrb[0].mxu0
    %v4117 = vadd.f32 0.0, %v4116
    %v4118 = vpop.f32.mrb[0].mxu0
    %4119 = vdwg.mxu0
    %v4120 = vadd.f32 %v3776, %v4112
    %v4121 = vadd.f32 %v3777, %v4117
    %v4122 = vadd.f32 %v2742, %v4120
    %v4123 = vadd.f32 %v2743, %v4121
    %v4124 = vld [vmem:[%s3 + $0x307] sm:$0x1]
    %v4125 = vld [vmem:[%s3 + $0x308] sm:$0x1]
    %v4126 = vsel %vm29, %v4122, 0.0
    %4127 = vadd.xlane.f32.xlu0 %v4126
    %v4128 = vpop.xlane.xlu0 %4127
    %v4129 = vsel %vm29, %v4123, 0.0
    %4130 = vadd.xlane.f32.xlu0 %v4129
    %v4131 = vpop.xlane.xlu0 %4130
    %v4132 = vmul.f32 %v4128, %v1059
    %v4133 = vmul.f32 %v4131, %v1059
    %v4134 = vsub.f32 %v4122, %v4132
    %v4135 = vsub.f32 %v4123, %v4133
    %v4136 = vmul.f32 %v4134, %v4134
    %v4137 = vmul.f32 %v4135, %v4135
    %v4138 = vsel %vm29, %v4136, 0.0
    %4139 = vadd.xlane.f32.xlu0 %v4138
    %v4140 = vpop.xlane.xlu0 %4139
    %v4141 = vsel %vm29, %v4137, 0.0
    %4142 = vadd.xlane.f32.xlu0 %v4141
    %v4143 = vpop.xlane.xlu0 %4142
    %v4144 = vmul.f32 %v4140, %v1059
    %v4145 = vmul.f32 %v4143, %v1059
    %v4146 = vadd.f32 %v4144, 1e-05
    %v4147 = vadd.f32 %v4145, 1e-05
    %v4148 = vrsqrt.pop %v4146
    %v4149 = vrsqrt.pop %v4147
    %v4150 = vmul.f32 %v4134, %v4148
    %v4151 = vmul.f32 %v4135, %v4149
    %v4152 = vlaneseq
    %v4153 = vshrl.u32 %v4152, 7
    %v4154 = vsub.s32 0, %v4153
    %v4155 = vrot.slane %v4124, %v4154
    %v4156 = vmul.f32 %v4150, %v4155
    %v4157 = vmul.f32 %v4151, %v4155
    %v4158 = vlaneseq
    %v4159 = vshrl.u32 %v4158, 7
    %v4160 = vsub.s32 0, %v4159
    %v4161 = vrot.slane %v4125, %v4160
    %v4162 = vadd.f32 %v4156, %v4161
    %v4163 = vadd.f32 %v4157, %v4161
    %v4164 = vld [vmem:[%s2 + $0x62] sm:$0xff]
    %v4165 = vld [vmem:[%s2 + $0x6a] sm:$0xff]
    %v4166 = vld [vmem:[%s2 + $0x72] sm:$0xff]
    %v4167 = vld [vmem:[%s2 + $0x7a] sm:$0xff]
    %v4168 = vld [vmem:[%s2 + $0x82] sm:$0x1]
    %v4169 = vlaneseq
    %v4170 = vshrl.u32 %v4169, 7
    %v4171 = vsub.s32 0, %v4170
    %v4172 = vrot.slane %v4168, %v4171
    %v4174 = vsel %vm29, %v4162, 0
    %v4177 = vsel %vm29, %v4163, 0
    %4179 = vmatprep.subr.mxu0 0.0
    %4180 = vmatpush1.msra.mxu0 %v4164
    %4181 = vmatprep.subr.mxu0 0.0
    %4182 = vmatpush1.msra.mxu0 %v4165
    %4183 = vmatprep.subr.mxu0 0.0
    %4184 = vmatpush1.msra.mxu0 %v4166
    %4185 = vmatprep.subr.mxu0 0.0
    %4186 = vmatpush1.msra.mxu0 %v4167
    %4187 = vmatprep.subr.mxu0 0.0
    %4188 = vmatpush1.msra.mxu0 0.0
    %4189 = vmatprep.subr.mxu0 0.0
    %4190 = vmatpush1.msra.mxu0 0.0
    %4191 = vmatprep.subr.mxu0 0.0
    %4192 = vmatpush1.msra.mxu0 0.0
    %4193 = vmatprep.subr.mxu0 0.0
    %4194 = vmatpush1.msra.mxu0 0.0
    %4195 = vmatprep.subr.mxu0 0.0
    %4196 = vmatpush1.msra.mxu0 0.0
    %4197 = vmatprep.subr.mxu0 0.0
    %4198 = vmatpush1.msra.mxu0 0.0
    %4199 = vmatprep.subr.mxu0 0.0
    %4200 = vmatpush1.msra.mxu0 0.0
    %4201 = vmatprep.subr.mxu0 0.0
    %4202 = vmatpush1.msra.mxu0 0.0
    %4203 = vmatprep.subr.mxu0 0.0
    %4204 = vmatpush1.msra.mxu0 0.0
    %4205 = vmatprep.subr.mxu0 0.0
    %4206 = vmatpush1.msra.mxu0 0.0
    %4207 = vmatprep.subr.mxu0 0.0
    %4208 = vmatpush1.msra.mxu0 0.0
    %4209 = vmatprep.subr.mxu0 0.0
    %4210 = vmatpush1.msra.mxu0 0.0
    %4211 = vmatprep.subr.mxu0 0.0
    %4212 = vmatpush1.msra.mxu0 0.0
    %4213 = vmatprep.subr.mxu0 0.0
    %4214 = vmatpush1.msra.mxu0 0.0
    %4215 = vmatprep.subr.mxu0 0.0
    %4216 = vmatpush1.msra.mxu0 0.0
    %4217 = vmatprep.subr.mxu0 0.0
    %4218 = vmatpush1.msra.mxu0 0.0
    %4219 = vmatprep.subr.mxu0 0.0
    %4220 = vmatpush1.msra.mxu0 0.0
    %4221 = vmatprep.subr.mxu0 0.0
    %4222 = vmatpush1.msra.mxu0 0.0
    %4223 = vmatprep.subr.mxu0 0.0
    %4224 = vmatpush1.msra.mxu0 0.0
    %4225 = vmatprep.subr.mxu0 0.0
    %4226 = vmatpush1.msra.mxu0 0.0
    %4227 = vmatprep.subr.mxu0 0.0
    %4228 = vmatpush1.msra.mxu0 0.0
    %4229 = vmatprep.subr.mxu0 0.0
    %4230 = vmatpush1.msra.mxu0 0.0
    %4231 = vmatprep.subr.mxu0 0.0
    %4232 = vmatpush1.msra.mxu0 0.0
    %4233 = vmatprep.subr.mxu0 0.0
    %4234 = vmatpush1.msra.mxu0 0.0
    %4235 = vmatprep.subr.mxu0 0.0
    %4236 = vmatpush1.msra.mxu0 0.0
    %4237 = vmatprep.subr.mxu0 0.0
    %4238 = vmatpush1.msra.mxu0 0.0
    %4239 = vmatprep.subr.mxu0 0.0
    %4240 = vmatpush1.msra.mxu0 0.0
    %4241 = vmatprep.subr.mxu0 0.0
    %4242 = vmatpush1.msra.mxu0 0.0
    %4243 = vmatprep.mubr.f32.mxu0 0.0
    %4244 = vmatmul.mubr.f32.gmra.mrb[0].mxu0 %v4174
    %v4245 = vpop.f32.mrb[0].mxu0
    %v4246 = vadd.f32 %v4172, %v4245
    %v4247 = vpop.f32.mrb[0].mxu0
    %4248 = vmatprep.mubr.f32.mxu0 0.0
    %4249 = vmatmul.mubr.f32.gmra.mrb[0].mxu0 %v4177
    %v4250 = vpop.f32.mrb[0].mxu0
    %v4251 = vadd.f32 %v4172, %v4250
    %v4252 = vpop.f32.mrb[0].mxu0
    %4253 = vdwg.mxu0
    %v4254 = vmax.f32 %v4246, 0.0
    %v4255 = vmax.f32 %v4251, 0.0
    %v4256 = vld [vmem:[%s3 + $0x285] sm:$0xff]
    %v4257 = vld [vmem:[%s3 + $0x28d] sm:$0xff]
    %v4258 = vld [vmem:[%s3 + $0x295] sm:$0xff]
    %v4259 = vld [vmem:[%s3 + $0x29d] sm:$0xff]
    %v4260 = vld [vmem:[%s3 + $0x2a5] sm:$0xff]
    %v4261 = vld [vmem:[%s3 + $0x2ad] sm:$0xff]
    %v4262 = vld [vmem:[%s3 + $0x2b5] sm:$0xff]
    %v4263 = vld [vmem:[%s3 + $0x2bd] sm:$0xff]
    %v4264 = vld [vmem:[%s3 + $0x2c5] sm:$0xff]
    %v4265 = vld [vmem:[%s3 + $0x2cd] sm:$0xff]
    %v4266 = vld [vmem:[%s3 + $0x2d5] sm:$0xff]
    %v4267 = vld [vmem:[%s3 + $0x2dd] sm:$0xff]
    %v4268 = vld [vmem:[%s3 + $0x2e5] sm:$0xff]
    %v4269 = vld [vmem:[%s3 + $0x2ed] sm:$0xff]
    %v4270 = vld [vmem:[%s3 + $0x2f5] sm:$0xff]
    %v4271 = vld [vmem:[%s3 + $0x2fd] sm:$0xff]
    %4272 = vmatprep.subr.mxu0 0.0
    %4273 = vmatpush1.msra.mxu0 %v4256
    %4274 = vmatprep.subr.mxu0 0.0
    %4275 = vmatpush1.msra.mxu0 %v4257
    %4276 = vmatprep.subr.mxu0 0.0
    %4277 = vmatpush1.msra.mxu0 %v4258
    %4278 = vmatprep.subr.mxu0 0.0
    %4279 = vmatpush1.msra.mxu0 %v4259
    %4280 = vmatprep.subr.mxu0 0.0
    %4281 = vmatpush1.msra.mxu0 %v4260
    %4282 = vmatprep.subr.mxu0 0.0
    %4283 = vmatpush1.msra.mxu0 %v4261
    %4284 = vmatprep.subr.mxu0 0.0
    %4285 = vmatpush1.msra.mxu0 %v4262
    %4286 = vmatprep.subr.mxu0 0.0
    %4287 = vmatpush1.msra.mxu0 %v4263
    %4288 = vmatprep.subr.mxu0 0.0
    %4289 = vmatpush1.msra.mxu0 %v4264
    %4290 = vmatprep.subr.mxu0 0.0
    %4291 = vmatpush1.msra.mxu0 %v4265
    %4292 = vmatprep.subr.mxu0 0.0
    %4293 = vmatpush1.msra.mxu0 %v4266
    %4294 = vmatprep.subr.mxu0 0.0
    %4295 = vmatpush1.msra.mxu0 %v4267
    %4296 = vmatprep.subr.mxu0 0.0
    %4297 = vmatpush1.msra.mxu0 %v4268
    %4298 = vmatprep.subr.mxu0 0.0
    %4299 = vmatpush1.msra.mxu0 %v4269
    %4300 = vmatprep.subr.mxu0 0.0
    %4301 = vmatpush1.msra.mxu0 %v4270
    %4302 = vmatprep.subr.mxu0 0.0
    %4303 = vmatpush1.msra.mxu0 %v4271
    %4304 = vmatprep.subr.mxu0 0.0
    %4305 = vmatpush1.msra.mxu0 0.0
    %4306 = vmatprep.subr.mxu0 0.0
    %4307 = vmatpush1.msra.mxu0 0.0
    %4308 = vmatprep.subr.mxu0 0.0
    %4309 = vmatpush1.msra.mxu0 0.0
    %4310 = vmatprep.subr.mxu0 0.0
    %4311 = vmatpush1.msra.mxu0 0.0
    %4312 = vmatprep.subr.mxu0 0.0
    %4313 = vmatpush1.msra.mxu0 0.0
    %4314 = vmatprep.subr.mxu0 0.0
    %4315 = vmatpush1.msra.mxu0 0.0
    %4316 = vmatprep.subr.mxu0 0.0
    %4317 = vmatpush1.msra.mxu0 0.0
    %4318 = vmatprep.subr.mxu0 0.0
    %4319 = vmatpush1.msra.mxu0 0.0
    %4320 = vmatprep.subr.mxu0 0.0
    %4321 = vmatpush1.msra.mxu0 0.0
    %4322 = vmatprep.subr.mxu0 0.0
    %4323 = vmatpush1.msra.mxu0 0.0
    %4324 = vmatprep.subr.mxu0 0.0
    %4325 = vmatpush1.msra.mxu0 0.0
    %4326 = vmatprep.subr.mxu0 0.0
    %4327 = vmatpush1.msra.mxu0 0.0
    %4328 = vmatprep.subr.mxu0 0.0
    %4329 = vmatpush1.msra.mxu0 0.0
    %4330 = vmatprep.subr.mxu0 0.0
    %4331 = vmatpush1.msra.mxu0 0.0
    %4332 = vmatprep.subr.mxu0 0.0
    %4333 = vmatpush1.msra.mxu0 0.0
    %4334 = vmatprep.subr.mxu0 0.0
    %4335 = vmatpush1.msra.mxu0 0.0
    %4336 = vmatprep.mubr.f32.mxu0 0.0
    %4337 = vmatmul.mubr.f32.gmra.mrb[0].mxu0 %v4254
    %v4338 = vpop.f32.mrb[0].mxu0
    %v4339 = vadd.f32 0.0, %v4338
    %v4340 = vpop.f32.mrb[0].mxu0
    %4341 = vmatprep.mubr.f32.mxu0 0.0
    %4342 = vmatmul.mubr.f32.gmra.mrb[0].mxu0 %v4255
    %v4343 = vpop.f32.mrb[0].mxu0
    %v4344 = vadd.f32 0.0, %v4343
    %v4345 = vpop.f32.mrb[0].mxu0
    %4346 = vdwg.mxu0
    %v4347 = vadd.f32 %v4162, %v4339
    %v4348 = vadd.f32 %v4163, %v4344
    %v4349 = vld [vmem:[%s3 + $0x309] sm:$0x1]
    %v4350 = vlaneseq
    %v4351 = vshrl.u32 %v4350, 7
    %v4352 = vsub.s32 0, %v4351
    %v4353 = vrot.slane %v4349, %v4352
    %v4354 = vadd.f32 %v4347, %v4353
    %v4355 = vadd.f32 %v4348, %v4353
    %v4356 = vld [vmem:[%s3 + $0x30a] sm:$0x1]
    %v4357 = vld [vmem:[%s3 + $0x30b] sm:$0x1]
    %v4358 = vsel %vm29, %v4354, 0.0
    %4359 = vadd.xlane.f32.xlu0 %v4358
    %v4360 = vpop.xlane.xlu0 %4359
    %v4361 = vsel %vm29, %v4355, 0.0
    %4362 = vadd.xlane.f32.xlu0 %v4361
    %v4363 = vpop.xlane.xlu0 %4362
    %v4364 = vmul.f32 %v4360, %v1059
    %v4365 = vmul.f32 %v4363, %v1059
    %v4366 = vsub.f32 %v4354, %v4364
    %v4367 = vsub.f32 %v4355, %v4365
    %v4368 = vmul.f32 %v4366, %v4366
    %v4369 = vmul.f32 %v4367, %v4367
    %v4370 = vsel %vm29, %v4368, 0.0
    %4371 = vadd.xlane.f32.xlu0 %v4370
    %v4372 = vpop.xlane.xlu0 %4371
    %v4373 = vsel %vm29, %v4369, 0.0
    %4374 = vadd.xlane.f32.xlu0 %v4373
    %v4375 = vpop.xlane.xlu0 %4374
    %v4376 = vmul.f32 %v4372, %v1059
    %v4377 = vmul.f32 %v4375, %v1059
    %v4378 = vadd.f32 %v4376, 1e-05
    %v4379 = vadd.f32 %v4377, 1e-05
    %v4380 = vrsqrt.pop %v4378
    %v4381 = vrsqrt.pop %v4379
    %v4382 = vmul.f32 %v4366, %v4380
    %v4383 = vmul.f32 %v4367, %v4381
    %v4384 = vlaneseq
    %v4385 = vshrl.u32 %v4384, 7
    %v4386 = vsub.s32 0, %v4385
    %v4387 = vrot.slane %v4356, %v4386
    %v4388 = vmul.f32 %v4382, %v4387
    %v4389 = vmul.f32 %v4383, %v4387
    %v4390 = vlaneseq
    %v4391 = vshrl.u32 %v4390, 7
    %v4392 = vsub.s32 0, %v4391
    %v4393 = vrot.slane %v4357, %v4392
    %v4394 = vadd.f32 %v4388, %v4393
    %v4395 = vadd.f32 %v4389, %v4393
    %v4396 = vld [vmem:[%s1] sm:$0xff]
    %v4398 = vsel %vm960, %v4396, 0
    %4400 = vmatprep.subr.mxu0 0.0
    %4401 = vmatpush1.msra.mxu0 %v4394
    %4402 = vmatprep.subr.mxu0 0.0
    %4403 = vmatpush1.msra.mxu0 %v4395
    %4404 = vmatprep.subr.mxu0 0.0
    %4405 = vmatpush1.msra.mxu0 0.0
    %4406 = vmatprep.subr.mxu0 0.0
    %4407 = vmatpush1.msra.mxu0 0.0
    %4408 = vmatprep.subr.mxu0 0.0
    %4409 = vmatpush1.msra.mxu0 0.0
    %4410 = vmatprep.subr.mxu0 0.0
    %4411 = vmatpush1.msra.mxu0 0.0
    %4412 = vmatprep.subr.mxu0 0.0
    %4413 = vmatpush1.msra.mxu0 0.0
    %4414 = vmatprep.subr.mxu0 0.0
    %4415 = vmatpush1.msra.mxu0 0.0
    %4416 = vmatprep.subr.mxu0 0.0
    %4417 = vmatpush1.msra.mxu0 0.0
    %4418 = vmatprep.subr.mxu0 0.0
    %4419 = vmatpush1.msra.mxu0 0.0
    %4420 = vmatprep.subr.mxu0 0.0
    %4421 = vmatpush1.msra.mxu0 0.0
    %4422 = vmatprep.subr.mxu0 0.0
    %4423 = vmatpush1.msra.mxu0 0.0
    %4424 = vmatprep.subr.mxu0 0.0
    %4425 = vmatpush1.msra.mxu0 0.0
    %4426 = vmatprep.subr.mxu0 0.0
    %4427 = vmatpush1.msra.mxu0 0.0
    %4428 = vmatprep.subr.mxu0 0.0
    %4429 = vmatpush1.msra.mxu0 0.0
    %4430 = vmatprep.subr.mxu0 0.0
    %4431 = vmatpush1.msra.mxu0 0.0
    %4432 = vmatprep.subr.mxu0 0.0
    %4433 = vmatpush1.msra.mxu0 0.0
    %4434 = vmatprep.subr.mxu0 0.0
    %4435 = vmatpush1.msra.mxu0 0.0
    %4436 = vmatprep.subr.mxu0 0.0
    %4437 = vmatpush1.msra.mxu0 0.0
    %4438 = vmatprep.subr.mxu0 0.0
    %4439 = vmatpush1.msra.mxu0 0.0
    %4440 = vmatprep.subr.mxu0 0.0
    %4441 = vmatpush1.msra.mxu0 0.0
    %4442 = vmatprep.subr.mxu0 0.0
    %4443 = vmatpush1.msra.mxu0 0.0
    %4444 = vmatprep.subr.mxu0 0.0
    %4445 = vmatpush1.msra.mxu0 0.0
    %4446 = vmatprep.subr.mxu0 0.0
    %4447 = vmatpush1.msra.mxu0 0.0
    %4448 = vmatprep.subr.mxu0 0.0
    %4449 = vmatpush1.msra.mxu0 0.0
    %4450 = vmatprep.subr.mxu0 0.0
    %4451 = vmatpush1.msra.mxu0 0.0
    %4452 = vmatprep.subr.mxu0 0.0
    %4453 = vmatpush1.msra.mxu0 0.0
    %4454 = vmatprep.subr.mxu0 0.0
    %4455 = vmatpush1.msra.mxu0 0.0
    %4456 = vmatprep.subr.mxu0 0.0
    %4457 = vmatpush1.msra.mxu0 0.0
    %4458 = vmatprep.subr.mxu0 0.0
    %4459 = vmatpush1.msra.mxu0 0.0
    %4460 = vmatprep.subr.mxu0 0.0
    %4461 = vmatpush1.msra.mxu0 0.0
    %4462 = vmatprep.subr.mxu0 0.0
    %4463 = vmatpush1.msra.mxu0 0.0
    %4464 = vmatprep.mubr.f32.mxu0 0.0
    %4465 = vmatmul.mubr.f32.gmra.mrb[0].mxu0 %v4398
    %v4466 = vpop.f32.mrb[0].mxu0
    %v4467 = vadd.f32 0.0, %v4466
    %v4468 = vpop.f32.mrb[0].mxu0
    %4469 = vdwg.mxu0
    %v4470 = vld [vmem:[%s3 + $0x30c] sm:$0xff]
    %v4471 = vld [vmem:[%s3 + $0x314] sm:$0xff]
    %v4472 = vld [vmem:[%s3 + $0x31c] sm:$0xff]
    %v4473 = vld [vmem:[%s3 + $0x324] sm:$0xff]
    %v4474 = vld [vmem:[%s3 + $0x32c] sm:$0x1]
    %v4475 = vlaneseq
    %v4476 = vshrl.u32 %v4475, 7
    %v4477 = vsub.s32 0, %v4476
    %v4478 = vrot.slane %v4474, %v4477
    %v4480 = vsel %vm29, %v4467, 0
    %4482 = vmatprep.subr.mxu0 0.0
    %4483 = vmatpush1.msra.mxu0 %v4470
    %4484 = vmatprep.subr.mxu0 0.0
    %4485 = vmatpush1.msra.mxu0 %v4471
    %4486 = vmatprep.subr.mxu0 0.0
    %4487 = vmatpush1.msra.mxu0 %v4472
    %4488 = vmatprep.subr.mxu0 0.0
    %4489 = vmatpush1.msra.mxu0 %v4473
    %4490 = vmatprep.subr.mxu0 0.0
    %4491 = vmatpush1.msra.mxu0 0.0
    %4492 = vmatprep.subr.mxu0 0.0
    %4493 = vmatpush1.msra.mxu0 0.0
    %4494 = vmatprep.subr.mxu0 0.0
    %4495 = vmatpush1.msra.mxu0 0.0
    %4496 = vmatprep.subr.mxu0 0.0
    %4497 = vmatpush1.msra.mxu0 0.0
    %4498 = vmatprep.subr.mxu0 0.0
    %4499 = vmatpush1.msra.mxu0 0.0
    %4500 = vmatprep.subr.mxu0 0.0
    %4501 = vmatpush1.msra.mxu0 0.0
    %4502 = vmatprep.subr.mxu0 0.0
    %4503 = vmatpush1.msra.mxu0 0.0
    %4504 = vmatprep.subr.mxu0 0.0
    %4505 = vmatpush1.msra.mxu0 0.0
    %4506 = vmatprep.subr.mxu0 0.0
    %4507 = vmatpush1.msra.mxu0 0.0
    %4508 = vmatprep.subr.mxu0 0.0
    %4509 = vmatpush1.msra.mxu0 0.0
    %4510 = vmatprep.subr.mxu0 0.0
    %4511 = vmatpush1.msra.mxu0 0.0
    %4512 = vmatprep.subr.mxu0 0.0
    %4513 = vmatpush1.msra.mxu0 0.0
    %4514 = vmatprep.subr.mxu0 0.0
    %4515 = vmatpush1.msra.mxu0 0.0
    %4516 = vmatprep.subr.mxu0 0.0
    %4517 = vmatpush1.msra.mxu0 0.0
    %4518 = vmatprep.subr.mxu0 0.0
    %4519 = vmatpush1.msra.mxu0 0.0
    %4520 = vmatprep.subr.mxu0 0.0
    %4521 = vmatpush1.msra.mxu0 0.0
    %4522 = vmatprep.subr.mxu0 0.0
    %4523 = vmatpush1.msra.mxu0 0.0
    %4524 = vmatprep.subr.mxu0 0.0
    %4525 = vmatpush1.msra.mxu0 0.0
    %4526 = vmatprep.subr.mxu0 0.0
    %4527 = vmatpush1.msra.mxu0 0.0
    %4528 = vmatprep.subr.mxu0 0.0
    %4529 = vmatpush1.msra.mxu0 0.0
    %4530 = vmatprep.subr.mxu0 0.0
    %4531 = vmatpush1.msra.mxu0 0.0
    %4532 = vmatprep.subr.mxu0 0.0
    %4533 = vmatpush1.msra.mxu0 0.0
    %4534 = vmatprep.subr.mxu0 0.0
    %4535 = vmatpush1.msra.mxu0 0.0
    %4536 = vmatprep.subr.mxu0 0.0
    %4537 = vmatpush1.msra.mxu0 0.0
    %4538 = vmatprep.subr.mxu0 0.0
    %4539 = vmatpush1.msra.mxu0 0.0
    %4540 = vmatprep.subr.mxu0 0.0
    %4541 = vmatpush1.msra.mxu0 0.0
    %4542 = vmatprep.subr.mxu0 0.0
    %4543 = vmatpush1.msra.mxu0 0.0
    %4544 = vmatprep.subr.mxu0 0.0
    %4545 = vmatpush1.msra.mxu0 0.0
    %4546 = vmatprep.mubr.f32.mxu0 0.0
    %4547 = vmatmul.mubr.f32.gmra.mrb[0].mxu0 %v4480
    %v4548 = vpop.f32.mrb[0].mxu0
    %v4549 = vadd.f32 %v4478, %v4548
    %v4550 = vpop.f32.mrb[0].mxu0
    %4551 = vdwg.mxu0
    %v4552 = vmul.f32 %v4549, 0.5
    %v4553 = vmul.f32 %v4549, 0.70710677
    %v4554 = verf.f32.pop %v4553
    %v4555 = vadd.f32 %v4554, 1.0
    %v4556 = vmul.f32 %v4552, %v4555
    %v4557 = vld [vmem:[%s3 + $0x32d] sm:$0xff]
    %v4558 = vld [vmem:[%s3 + $0x335] sm:$0xff]
    %v4560 = vsel %vm960, %v4556, 0
    %4562 = vmatprep.subr.mxu0 0.0
    %4563 = vmatpush1.msra.mxu0 %v4557
    %4564 = vmatprep.subr.mxu0 0.0
    %4565 = vmatpush1.msra.mxu0 %v4558
    %4566 = vmatprep.subr.mxu0 0.0
    %4567 = vmatpush1.msra.mxu0 0.0
    %4568 = vmatprep.subr.mxu0 0.0
    %4569 = vmatpush1.msra.mxu0 0.0
    %4570 = vmatprep.subr.mxu0 0.0
    %4571 = vmatpush1.msra.mxu0 0.0
    %4572 = vmatprep.subr.mxu0 0.0
    %4573 = vmatpush1.msra.mxu0 0.0
    %4574 = vmatprep.subr.mxu0 0.0
    %4575 = vmatpush1.msra.mxu0 0.0
    %4576 = vmatprep.subr.mxu0 0.0
    %4577 = vmatpush1.msra.mxu0 0.0
    %4578 = vmatprep.subr.mxu0 0.0
    %4579 = vmatpush1.msra.mxu0 0.0
    %4580 = vmatprep.subr.mxu0 0.0
    %4581 = vmatpush1.msra.mxu0 0.0
    %4582 = vmatprep.subr.mxu0 0.0
    %4583 = vmatpush1.msra.mxu0 0.0
    %4584 = vmatprep.subr.mxu0 0.0
    %4585 = vmatpush1.msra.mxu0 0.0
    %4586 = vmatprep.subr.mxu0 0.0
    %4587 = vmatpush1.msra.mxu0 0.0
    %4588 = vmatprep.subr.mxu0 0.0
    %4589 = vmatpush1.msra.mxu0 0.0
    %4590 = vmatprep.subr.mxu0 0.0
    %4591 = vmatpush1.msra.mxu0 0.0
    %4592 = vmatprep.subr.mxu0 0.0
    %4593 = vmatpush1.msra.mxu0 0.0
    %4594 = vmatprep.subr.mxu0 0.0
    %4595 = vmatpush1.msra.mxu0 0.0
    %4596 = vmatprep.subr.mxu0 0.0
    %4597 = vmatpush1.msra.mxu0 0.0
    %4598 = vmatprep.subr.mxu0 0.0
    %4599 = vmatpush1.msra.mxu0 0.0
    %4600 = vmatprep.subr.mxu0 0.0
    %4601 = vmatpush1.msra.mxu0 0.0
    %4602 = vmatprep.subr.mxu0 0.0
    %4603 = vmatpush1.msra.mxu0 0.0
    %4604 = vmatprep.subr.mxu0 0.0
    %4605 = vmatpush1.msra.mxu0 0.0
    %4606 = vmatprep.subr.mxu0 0.0
    %4607 = vmatpush1.msra.mxu0 0.0
    %4608 = vmatprep.subr.mxu0 0.0
    %4609 = vmatpush1.msra.mxu0 0.0
    %4610 = vmatprep.subr.mxu0 0.0
    %4611 = vmatpush1.msra.mxu0 0.0
    %4612 = vmatprep.subr.mxu0 0.0
    %4613 = vmatpush1.msra.mxu0 0.0
    %4614 = vmatprep.subr.mxu0 0.0
    %4615 = vmatpush1.msra.mxu0 0.0
    %4616 = vmatprep.subr.mxu0 0.0
    %4617 = vmatpush1.msra.mxu0 0.0
    %4618 = vmatprep.subr.mxu0 0.0
    %4619 = vmatpush1.msra.mxu0 0.0
    %4620 = vmatprep.subr.mxu0 0.0
    %4621 = vmatpush1.msra.mxu0 0.0
    %4622 = vmatprep.subr.mxu0 0.0
    %4623 = vmatpush1.msra.mxu0 0.0
    %4624 = vmatprep.subr.mxu0 0.0
    %4625 = vmatpush1.msra.mxu0 0.0
    %4626 = vmatprep.mubr.f32.mxu0 0.0
    %4627 = vmatmul.mubr.f32.gmra.mrb[0].mxu0 %v4560
    %v4628 = vpop.f32.mrb[0].mxu0
    %v4629 = vadd.f32 0.0, %v4628
    %v4630 = vpop.f32.mrb[0].mxu0
    %4631 = vdwg.mxu0
    %vm4632 = vcmask 7168
    %v4633 = vsel %vm4632, %v4629, -inf
    %v4634 = vrot.slane %v4633, 4
    %v4635 = vmax.f32 %v4633, %v4634
    %v4636 = vrot.slane %v4635, 2
    %v4637 = vmax.f32 %v4635, %v4636
    %v4638 = vrot.slane %v4637, 1
    %v4639 = vmax.f32 %v4637, %v4638
    %v4640 = vsub.f32 %v4629, %v4639
    %v4641 = vmul.f32 %v4640, 1.442695
    %v4642 = vpow.pop %v4641
    %v4643 = vld [vmem:[%s3 + $0x35d] sm:$0x3]
    %vm4644 = vcmask 64512
    %v4646 = vsel %vm4644, %v4643, 0
    %4648 = vmatprep.subr.mxu0 0.0
    %4649 = vmatpush1.msra.mxu0 %v4642
    %4650 = vmatprep.subr.mxu0 0.0
    %4651 = vmatpush1.msra.mxu0 0.0
    %4652 = vmatprep.subr.mxu0 0.0
    %4653 = vmatpush1.msra.mxu0 0.0
    %4654 = vmatprep.subr.mxu0 0.0
    %4655 = vmatpush1.msra.mxu0 0.0
    %4656 = vmatprep.subr.mxu0 0.0
    %4657 = vmatpush1.msra.mxu0 0.0
    %4658 = vmatprep.subr.mxu0 0.0
    %4659 = vmatpush1.msra.mxu0 0.0
    %4660 = vmatprep.subr.mxu0 0.0
    %4661 = vmatpush1.msra.mxu0 0.0
    %4662 = vmatprep.subr.mxu0 0.0
    %4663 = vmatpush1.msra.mxu0 0.0
    %4664 = vmatprep.subr.mxu0 0.0
    %4665 = vmatpush1.msra.mxu0 0.0
    %4666 = vmatprep.subr.mxu0 0.0
    %4667 = vmatpush1.msra.mxu0 0.0
    %4668 = vmatprep.subr.mxu0 0.0
    %4669 = vmatpush1.msra.mxu0 0.0
    %4670 = vmatprep.subr.mxu0 0.0
    %4671 = vmatpush1.msra.mxu0 0.0
    %4672 = vmatprep.subr.mxu0 0.0
    %4673 = vmatpush1.msra.mxu0 0.0
    %4674 = vmatprep.subr.mxu0 0.0
    %4675 = vmatpush1.msra.mxu0 0.0
    %4676 = vmatprep.subr.mxu0 0.0
    %4677 = vmatpush1.msra.mxu0 0.0
    %4678 = vmatprep.subr.mxu0 0.0
    %4679 = vmatpush1.msra.mxu0 0.0
    %4680 = vmatprep.subr.mxu0 0.0
    %4681 = vmatpush1.msra.mxu0 0.0
    %4682 = vmatprep.subr.mxu0 0.0
    %4683 = vmatpush1.msra.mxu0 0.0
    %4684 = vmatprep.subr.mxu0 0.0
    %4685 = vmatpush1.msra.mxu0 0.0
    %4686 = vmatprep.subr.mxu0 0.0
    %4687 = vmatpush1.msra.mxu0 0.0
    %4688 = vmatprep.subr.mxu0 0.0
    %4689 = vmatpush1.msra.mxu0 0.0
    %4690 = vmatprep.subr.mxu0 0.0
    %4691 = vmatpush1.msra.mxu0 0.0
    %4692 = vmatprep.subr.mxu0 0.0
    %4693 = vmatpush1.msra.mxu0 0.0
    %4694 = vmatprep.subr.mxu0 0.0
    %4695 = vmatpush1.msra.mxu0 0.0
    %4696 = vmatprep.subr.mxu0 0.0
    %4697 = vmatpush1.msra.mxu0 0.0
    %4698 = vmatprep.subr.mxu0 0.0
    %4699 = vmatpush1.msra.mxu0 0.0
    %4700 = vmatprep.subr.mxu0 0.0
    %4701 = vmatpush1.msra.mxu0 0.0
    %4702 = vmatprep.subr.mxu0 0.0
    %4703 = vmatpush1.msra.mxu0 0.0
    %4704 = vmatprep.subr.mxu0 0.0
    %4705 = vmatpush1.msra.mxu0 0.0
    %4706 = vmatprep.subr.mxu0 0.0
    %4707 = vmatpush1.msra.mxu0 0.0
    %4708 = vmatprep.subr.mxu0 0.0
    %4709 = vmatpush1.msra.mxu0 0.0
    %4710 = vmatprep.subr.mxu0 0.0
    %4711 = vmatpush1.msra.mxu0 0.0
    %4712 = vmatprep.mubr.f32.mxu0 0.0
    %4713 = vmatmul.mubr.f32.gmra.mrb[0].mxu0 %v4646
    %v4714 = vpop.f32.mrb[0].mxu0
    %v4715 = vadd.f32 0.0, %v4714
    %v4716 = vpop.f32.mrb[0].mxu0
    %4717 = vdwg.mxu0
    %v4718 = vlog2.pop %v4715
    %v4719 = vmul.f32 %v4718, 0.6931472
    %v4720 = vadd.f32 %v4639, %v4719
    %v4721 = vld [vmem:[%s1 + $0x8] sm:$0x1]
    %v4723 = vsel %vm4644, %v4721, 0
    %4725 = vmatprep.subr.mxu0 0.0
    %4726 = vmatpush1.msra.mxu0 %v4629
    %4727 = vmatprep.subr.mxu0 0.0
    %4728 = vmatpush1.msra.mxu0 0.0
    %4729 = vmatprep.subr.mxu0 0.0
    %4730 = vmatpush1.msra.mxu0 0.0
    %4731 = vmatprep.subr.mxu0 0.0
    %4732 = vmatpush1.msra.mxu0 0.0
    %4733 = vmatprep.subr.mxu0 0.0
    %4734 = vmatpush1.msra.mxu0 0.0
    %4735 = vmatprep.subr.mxu0 0.0
    %4736 = vmatpush1.msra.mxu0 0.0
    %4737 = vmatprep.subr.mxu0 0.0
    %4738 = vmatpush1.msra.mxu0 0.0
    %4739 = vmatprep.subr.mxu0 0.0
    %4740 = vmatpush1.msra.mxu0 0.0
    %4741 = vmatprep.subr.mxu0 0.0
    %4742 = vmatpush1.msra.mxu0 0.0
    %4743 = vmatprep.subr.mxu0 0.0
    %4744 = vmatpush1.msra.mxu0 0.0
    %4745 = vmatprep.subr.mxu0 0.0
    %4746 = vmatpush1.msra.mxu0 0.0
    %4747 = vmatprep.subr.mxu0 0.0
    %4748 = vmatpush1.msra.mxu0 0.0
    %4749 = vmatprep.subr.mxu0 0.0
    %4750 = vmatpush1.msra.mxu0 0.0
    %4751 = vmatprep.subr.mxu0 0.0
    %4752 = vmatpush1.msra.mxu0 0.0
    %4753 = vmatprep.subr.mxu0 0.0
    %4754 = vmatpush1.msra.mxu0 0.0
    %4755 = vmatprep.subr.mxu0 0.0
    %4756 = vmatpush1.msra.mxu0 0.0
    %4757 = vmatprep.subr.mxu0 0.0
    %4758 = vmatpush1.msra.mxu0 0.0
    %4759 = vmatprep.subr.mxu0 0.0
    %4760 = vmatpush1.msra.mxu0 0.0
    %4761 = vmatprep.subr.mxu0 0.0
    %4762 = vmatpush1.msra.mxu0 0.0
    %4763 = vmatprep.subr.mxu0 0.0
    %4764 = vmatpush1.msra.mxu0 0.0
    %4765 = vmatprep.subr.mxu0 0.0
    %4766 = vmatpush1.msra.mxu0 0.0
    %4767 = vmatprep.subr.mxu0 0.0
    %4768 = vmatpush1.msra.mxu0 0.0
    %4769 = vmatprep.subr.mxu0 0.0
    %4770 = vmatpush1.msra.mxu0 0.0
    %4771 = vmatprep.subr.mxu0 0.0
    %4772 = vmatpush1.msra.mxu0 0.0
    %4773 = vmatprep.subr.mxu0 0.0
    %4774 = vmatpush1.msra.mxu0 0.0
    %4775 = vmatprep.subr.mxu0 0.0
    %4776 = vmatpush1.msra.mxu0 0.0
    %4777 = vmatprep.subr.mxu0 0.0
    %4778 = vmatpush1.msra.mxu0 0.0
    %4779 = vmatprep.subr.mxu0 0.0
    %4780 = vmatpush1.msra.mxu0 0.0
    %4781 = vmatprep.subr.mxu0 0.0
    %4782 = vmatpush1.msra.mxu0 0.0
    %4783 = vmatprep.subr.mxu0 0.0
    %4784 = vmatpush1.msra.mxu0 0.0
    %4785 = vmatprep.subr.mxu0 0.0
    %4786 = vmatpush1.msra.mxu0 0.0
    %4787 = vmatprep.subr.mxu0 0.0
    %4788 = vmatpush1.msra.mxu0 0.0
    %4789 = vmatprep.mubr.f32.mxu0 0.0
    %4790 = vmatmul.mubr.f32.gmra.mrb[0].mxu0 %v4723
    %v4791 = vpop.f32.mrb[0].mxu0
    %v4792 = vadd.f32 0.0, %v4791
    %v4793 = vpop.f32.mrb[0].mxu0
    %4794 = vdwg.mxu0
    %vm4795 = vcmask 1024
    %v4796 = vsel %vm4795, %v4720, 0.0
    %v4797 = vrot.slane %v4796, 4
    %v4798 = vadd.f32 %v4796, %v4797
    %v4799 = vrot.slane %v4798, 2
    %v4800 = vadd.f32 %v4798, %v4799
    %v4801 = vrot.slane %v4800, 1
    %v4802 = vadd.f32 %v4800, %v4801
    %v4803 = vsub.f32 %v4802, %v4792
    %v4804 = vmul.f32 %v4803, 0.5
    %vm4805 = vcmask 0
    %4806 = vst.msk [vmem:[#allocation2] sm:$0x1] %vm4805, %v4804
    // Predicated region
    $region18: #{bert_forward.1} parent=1 // pred_check
      _
    $region19: #{bert_forward.1} parent=1 // pred_check_branch
      %4808 = sbr.rel (0) target = $region21
    $region20: #{bert_forward.1} parent=1 // pred_region
      %s4810 = ssub.s32 16, 16
      %4811 = vsyncadd [#allocation3], %s4810
      %s4813 = sshll.u32 [#allocation2], 4
      %s4814 = int_to_ptr.vmem [resolvable:$true] %s4813
      %4816 = dma.vmem_to_hbm [thread:$0]  %s4814, 16, %s4, [#allocation3]
    $region21: #{bert_forward.1} parent=1 // pred_fallthru
      _
    // Predicated region
    $region22: #{bert_forward.1} parent=1 // pred_check
      _
    $region23: #{bert_forward.1} parent=1 // pred_check_branch
      %4818 = sbr.rel (0) target = $region25
    $region24: #{bert_forward.1} parent=1 // pred_region
      %4819 = dma.done [#allocation3], 16
    $region25: #{bert_forward.1} parent=1 // pred_fallthru
      _
    %4820 = vsyncpa [#allocation3], 1

</llo_original>
